<compile_context>
chip_gen: v7x
topology: tpu7x:2x2x1
jax: 0.10.0
libtpu: 0.0.40
codegen_flags: <defaults>
</compile_context>

<pallas_src>
import jax
import jax.numpy as jnp
from jax.experimental import pallas as pl
from jax.experimental.pallas import tpu as pltpu

DIM = 32          # PCA-downsampled sentence-vector size (args.down_dim)
DEC = 200         # decoder hidden width (nn.Linear(dim*4, 200))
DEC_PAD = 256     # lane-padded decoder width (zero-padded -> numerically identical)
BP = 8            # sublane-padded batch
GATE = 4 * DIM    # fused LSTM gate width = 128 lanes

# slab-A row offsets (width 128): LSTM layer 0/1 weights, biases, projection W
_WIH0, _WHH0, _WIH1, _WHH1 = 0, 32, 64, 96
_B0, _B1, _WPROJ = 128, 136, 144
_SLAB_A_ROWS = 176
# slab-B row offsets (width 256): decoder Linear(128,200) / Linear(200,1)
_W1, _B1D, _W2 = 0, 128, 136
_SLAB_B_ROWS = 144


def _transition_kernel(x_ref, m_ref, r_ref, wa_ref, wb_ref, out_ref):
    t_steps = x_ref.shape[0]
    bp = x_ref.shape[1]
    d = x_ref.shape[2]

    # Hoisted weight loads (one VMEM read each, reused across all time steps).
    wih0 = wa_ref[_WIH0:_WIH0 + d, :]          # (32, 128)
    whh0 = wa_ref[_WHH0:_WHH0 + d, :]
    wih1 = wa_ref[_WIH1:_WIH1 + d, :]
    whh1 = wa_ref[_WHH1:_WHH1 + d, :]
    b0 = wa_ref[_B0:_B0 + 1, :]                # (1, 128) = b_ih + b_hh (layer 0)
    b1 = wa_ref[_B1:_B1 + 1, :]
    wproj = wa_ref[_WPROJ:_WPROJ + d, :]       # (32, 128), cols >= 32 are zero
    w1 = wb_ref[_W1:_W1 + GATE, :]             # (128, 256), cols >= 200 are zero
    b1d = wb_ref[_B1D:_B1D + 1, :]             # (1, 256), col 200 == 1 (b2 carrier)
    w2 = wb_ref[_W2:_W2 + 1, :]                # (1, 256), col 200 == b2

    def lstm_cell(xt, h, c, wih, whh, b):
        gates = (jnp.dot(xt, wih, preferred_element_type=jnp.float32)
                 + jnp.dot(h, whh, preferred_element_type=jnp.float32) + b)
        i = jax.nn.sigmoid(gates[:, 0:d])
        f = jax.nn.sigmoid(gates[:, d:2 * d])
        g = jnp.tanh(gates[:, 2 * d:3 * d])
        o = jax.nn.sigmoid(gates[:, 3 * d:4 * d])
        c_new = f * c + i * g
        return o * jnp.tanh(c_new), c_new

    zeros = jnp.zeros((bp, d), jnp.float32)
    h1, c1, h2, c2 = zeros, zeros, zeros, zeros
    pooled = jnp.full((bp, d), -1e30, jnp.float32)

    for t in range(t_steps):                   # T = 8, static unroll
        xt = x_ref[t]                          # (BP, 32)
        h1, c1 = lstm_cell(xt, h1, c1, wih0, whh0, b0)
        h2, c2 = lstm_cell(h1, h2, c2, wih1, whh1, b1)
        # outp_l semantics: padded steps contribute exactly 0 to the max-pool.
        pooled = jnp.maximum(pooled, m_ref[t] * h2)

    # hidden_rep @ W   (W stored zero-padded to 128 lanes)
    hw = jnp.dot(pooled, wproj, preferred_element_type=jnp.float32)[:, 0:d]
    r = r_ref[...]
    # rep = cat([hW, r, |hW - r|, hW * r]) -> (BP, 128), full MXU contraction dim
    rep = jnp.concatenate([hw, r, jnp.abs(hw - r), hw * r], axis=-1)

    hdec = jax.nn.relu(jnp.dot(rep, w1, preferred_element_type=jnp.float32) + b1d)
    # Linear(200,1) as a lane reduction; b2 folded in via the constant-1 unit.
    logit = jnp.sum(hdec * w2, axis=-1, keepdims=True)       # (BP, 1)
    prob = jax.nn.sigmoid(logit)
    out_ref[...] = jnp.broadcast_to(prob, out_ref.shape)     # single (8,128) store


def _prepare_inputs(dials, dial_length, response):
    """Pad batch to BP sublanes, transpose to (T, BP, D), build f32 step masks."""
    b, t, d = dials.shape
    valid = (jnp.arange(t)[None, :] < dial_length[:, None]).astype(jnp.float32)   # (B,T)
    x = jnp.pad(dials.astype(jnp.float32), ((0, BP - b), (0, 0), (0, 0)))
    x = jnp.transpose(x, (1, 0, 2))                                               # (T,BP,D)
    m = jnp.pad(valid, ((0, BP - b), (0, 0)))                                     # (BP,T)
    m = jnp.broadcast_to(jnp.transpose(m)[:, :, None], (t, BP, d))                # (T,BP,D)
    r = jnp.pad(response.astype(jnp.float32), ((0, BP - b), (0, 0)))              # (BP,D)
    return x, m, r


def transition_predictor_forward(dials, dial_length, response, slab_a, slab_b):
    """dials: f32 [B,T,DIM] turn vectors, dial_length: i32 [B], response: f32 [B,DIM].
    Returns sigmoid(decoder(...)) of shape [B, 1]."""
    b = dials.shape[0]
    x, m, r = _prepare_inputs(dials, dial_length, response)

    vmem = lambda: pl.BlockSpec(memory_space=pltpu.MemorySpace.VMEM)
    out = pl.pallas_call(
        _transition_kernel,
        out_shape=jax.ShapeDtypeStruct((BP, 128), jnp.float32),
        in_specs=[vmem() for _ in range(5)],
        out_specs=vmem(),
    )(x, m, r, slab_a, slab_b)
    return out[:b, :1]


def init_params(key):
    """Synthetic LSTM / W / decoder weights, packed into two lane-dense slabs."""
    ks = jax.random.split(key, 10)

    def nrm(k, shape, scale):
        return (scale * jax.random.normal(k, shape)).astype(jnp.float32)

    s = 1.0 / (DIM ** 0.5)
    wih0 = nrm(ks[0], (DIM, GATE), s)
    whh0 = nrm(ks[1], (DIM, GATE), s)
    b0 = nrm(ks[2], (GATE,), s)                       # b_ih_l0 + b_hh_l0 combined
    wih1 = nrm(ks[3], (DIM, GATE), s)
    whh1 = nrm(ks[4], (DIM, GATE), s)
    b1 = nrm(ks[5], (GATE,), s)
    wmat = nrm(ks[6], (DIM, DIM), (2.0 / (DIM + DIM)) ** 0.5)   # xavier-style W
    w1 = nrm(ks[7], (GATE, DEC), (1.0 / GATE) ** 0.5)
    b1d = nrm(ks[8], (DEC,), 0.1)
    w2 = nrm(ks[9], (DEC, 1), (1.0 / DEC) ** 0.5)
    b2 = jnp.float32(0.05)

    slab_a = jnp.zeros((_SLAB_A_ROWS, 128), jnp.float32)
    slab_a = slab_a.at[_WIH0:_WIH0 + DIM].set(wih0)
    slab_a = slab_a.at[_WHH0:_WHH0 + DIM].set(whh0)
    slab_a = slab_a.at[_WIH1:_WIH1 + DIM].set(wih1)
    slab_a = slab_a.at[_WHH1:_WHH1 + DIM].set(whh1)
    slab_a = slab_a.at[_B0].set(b0)
    slab_a = slab_a.at[_B1].set(b1)
    slab_a = slab_a.at[_WPROJ:_WPROJ + DIM, 0:DIM].set(wmat)

    slab_b = jnp.zeros((_SLAB_B_ROWS, DEC_PAD), jnp.float32)
    slab_b = slab_b.at[_W1:_W1 + GATE, 0:DEC].set(w1)
    slab_b = slab_b.at[_B1D, 0:DEC].set(b1d)
    slab_b = slab_b.at[_B1D, DEC].set(1.0)            # constant-1 hidden unit
    slab_b = slab_b.at[_W2, 0:DEC].set(w2[:, 0])
    slab_b = slab_b.at[_W2, DEC].set(b2)              # carries the output bias b2
    return slab_a, slab_b


def _reference_forward(x, m, r, slab_a, slab_b):
    """Pure-JAX mirror of the kernel math (for a correctness check)."""
    hp = jax.lax.Precision.HIGHEST
    dot = lambda a, b: jnp.dot(a, b, precision=hp)
    d = DIM
    wih0 = slab_a[_WIH0:_WIH0 + d]
    whh0 = slab_a[_WHH0:_WHH0 + d]
    wih1 = slab_a[_WIH1:_WIH1 + d]
    whh1 = slab_a[_WHH1:_WHH1 + d]
    b0 = slab_a[_B0:_B0 + 1]
    b1 = slab_a[_B1:_B1 + 1]
    wproj = slab_a[_WPROJ:_WPROJ + d]
    w1 = slab_b[_W1:_W1 + GATE]
    b1d = slab_b[_B1D:_B1D + 1]
    w2 = slab_b[_W2:_W2 + 1]

    t_steps, bp, _ = x.shape
    zeros = jnp.zeros((bp, d), jnp.float32)
    h1, c1, h2, c2 = zeros, zeros, zeros, zeros
    pooled = jnp.full((bp, d), -1e30, jnp.float32)

    def cell(xt, h, c, wih, whh, b):
        g = dot(xt, wih) + dot(h, whh) + b
        i = jax.nn.sigmoid(g[:, 0:d])
        f = jax.nn.sigmoid(g[:, d:2 * d])
        gg = jnp.tanh(g[:, 2 * d:3 * d])
        o = jax.nn.sigmoid(g[:, 3 * d:4 * d])
        c = f * c + i * gg
        return o * jnp.tanh(c), c

    for t in range(t_steps):
        h1, c1 = cell(x[t], h1, c1, wih0, whh0, b0)
        h2, c2 = cell(h1, h2, c2, wih1, whh1, b1)
        pooled = jnp.maximum(pooled, m[t] * h2)

    hw = dot(pooled, wproj)[:, 0:d]
    rep = jnp.concatenate([hw, r, jnp.abs(hw - r), hw * r], axis=-1)
    hdec = jax.nn.relu(dot(rep, w1) + b1d)
    logit = jnp.sum(hdec * w2, axis=-1, keepdims=True)
    return jax.nn.sigmoid(logit)


if __name__ == "__main__":
    key = jax.random.PRNGKey(0)
    k_par, k_dial, k_resp = jax.random.split(key, 3)
    slab_a, slab_b = init_params(k_par)

    B, T = 2, 8
    dial_length = jnp.array([8, 5], dtype=jnp.int32)
    valid = (jnp.arange(T)[None, :] < dial_length[:, None]).astype(jnp.float32)
    dials = 0.5 * jax.random.normal(k_dial, (B, T, DIM), jnp.float32) * valid[:, :, None]
    response = 0.5 * jax.random.normal(k_resp, (B, DIM), jnp.float32)

    probs = transition_predictor_forward(dials, dial_length, response, slab_a, slab_b)
    jax.block_until_ready(probs)
    assert probs.shape == (B, 1) and probs.dtype == jnp.float32

    x, m, r = _prepare_inputs(dials, dial_length, response)
    ref = _reference_forward(x, m, r, slab_a, slab_b)[:B, :1]
    assert float(jnp.max(jnp.abs(probs - ref))) < 1e-3, "kernel/reference mismatch"
    print("KERNEL_OK")
</pallas_src>

<mosaic_0001>
module attributes {stable_mosaic.version = 11 : i64} {
  func.func @_transition_kernel(%arg0: memref<8x8x32xf32, #tpu.memory_space<vmem>>, %arg1: memref<8x8x32xf32, #tpu.memory_space<vmem>>, %arg2: memref<8x32xf32, #tpu.memory_space<vmem>>, %arg3: memref<176x128xf32, #tpu.memory_space<vmem>>, %arg4: memref<144x256xf32, #tpu.memory_space<vmem>>, %arg5: memref<8x128xf32, #tpu.memory_space<vmem>>) attributes {dimension_semantics = [], scalar_prefetch = 0 : i64, scratch_operands = 0 : i64, tpu.core_type = #tpu.core_type<tc>} {
    %c0 = arith.constant 0 : index
    %c0_0 = arith.constant 0 : index
    %0 = vector.load %arg3[%c0, %c0_0] : memref<176x128xf32, #tpu.memory_space<vmem>>, vector<32x128xf32>
    %c32 = arith.constant 32 : index
    %c0_1 = arith.constant 0 : index
    %1 = vector.load %arg3[%c32, %c0_1] : memref<176x128xf32, #tpu.memory_space<vmem>>, vector<32x128xf32>
    %c64 = arith.constant 64 : index
    %c0_2 = arith.constant 0 : index
    %2 = vector.load %arg3[%c64, %c0_2] : memref<176x128xf32, #tpu.memory_space<vmem>>, vector<32x128xf32>
    %c96 = arith.constant 96 : index
    %c0_3 = arith.constant 0 : index
    %3 = vector.load %arg3[%c96, %c0_3] : memref<176x128xf32, #tpu.memory_space<vmem>>, vector<32x128xf32>
    %c128 = arith.constant 128 : index
    %c0_4 = arith.constant 0 : index
    %4 = vector.load %arg3[%c128, %c0_4] : memref<176x128xf32, #tpu.memory_space<vmem>>, vector<1x128xf32>
    %c136 = arith.constant 136 : index
    %c0_5 = arith.constant 0 : index
    %5 = vector.load %arg3[%c136, %c0_5] : memref<176x128xf32, #tpu.memory_space<vmem>>, vector<1x128xf32>
    %c144 = arith.constant 144 : index
    %c0_6 = arith.constant 0 : index
    %6 = vector.load %arg3[%c144, %c0_6] : memref<176x128xf32, #tpu.memory_space<vmem>>, vector<32x128xf32>
    %c0_7 = arith.constant 0 : index
    %c0_8 = arith.constant 0 : index
    %7 = vector.load %arg4[%c0_7, %c0_8] : memref<144x256xf32, #tpu.memory_space<vmem>>, vector<128x256xf32>
    %c128_9 = arith.constant 128 : index
    %c0_10 = arith.constant 0 : index
    %8 = vector.load %arg4[%c128_9, %c0_10] : memref<144x256xf32, #tpu.memory_space<vmem>>, vector<1x256xf32>
    %c136_11 = arith.constant 136 : index
    %c0_12 = arith.constant 0 : index
    %9 = vector.load %arg4[%c136_11, %c0_12] : memref<144x256xf32, #tpu.memory_space<vmem>>, vector<1x256xf32>
    %cst = arith.constant 0.000000e+00 : f32
    %10 = vector.broadcast %cst : f32 to vector<8x32xf32>
    %cst_13 = arith.constant -1.000000e+30 : f32
    %11 = vector.broadcast %cst_13 : f32 to vector<8x32xf32>
    %c0_14 = arith.constant 0 : index
    %c0_15 = arith.constant 0 : index
    %c0_16 = arith.constant 0 : index
    %12 = vector.load %arg0[%c0_14, %c0_15, %c0_16] : memref<8x8x32xf32, #tpu.memory_space<vmem>>, vector<1x8x32xf32>
    %13 = vector.shape_cast %12 : vector<1x8x32xf32> to vector<8x32xf32>
    %cst_17 = arith.constant dense<0.000000e+00> : vector<8x128xf32>
    %14 = tpu.matmul %13, %0, %cst_17 {dimension_numbers = #tpu.dot_dimension_numbers<[1], [0], [0], [1], [0, 0, 1, 1], [], []>} : vector<8x32xf32>, vector<32x128xf32>, vector<8x128xf32> -> vector<8x128xf32>
    %cst_18 = arith.constant dense<0.000000e+00> : vector<8x128xf32>
    %15 = tpu.matmul %10, %1, %cst_18 {dimension_numbers = #tpu.dot_dimension_numbers<[1], [0], [0], [1], [0, 0, 1, 1], [], []>} : vector<8x32xf32>, vector<32x128xf32>, vector<8x128xf32> -> vector<8x128xf32>
    %16 = arith.addf %14, %15 : vector<8x128xf32>
    %17 = vector.broadcast %4 : vector<1x128xf32> to vector<8x128xf32>
    %18 = arith.addf %16, %17 : vector<8x128xf32>
    %19 = vector.extract_strided_slice %18 {offsets = [0, 0], sizes = [8, 32], strides = [1, 1]} : vector<8x128xf32> to vector<8x32xf32>
    %20 = arith.negf %19 : vector<8x32xf32>
    %21 = math.exp %20 : vector<8x32xf32>
    %cst_19 = arith.constant 1.000000e+00 : f32
    %22 = vector.broadcast %cst_19 : f32 to vector<8x32xf32>
    %23 = arith.addf %22, %21 : vector<8x32xf32>
    %24 = arith.divf %22, %23 : vector<8x32xf32>
    %25 = vector.extract_strided_slice %18 {offsets = [0, 32], sizes = [8, 32], strides = [1, 1]} : vector<8x128xf32> to vector<8x32xf32>
    %26 = arith.negf %25 : vector<8x32xf32>
    %27 = math.exp %26 : vector<8x32xf32>
    %cst_20 = arith.constant 1.000000e+00 : f32
    %28 = vector.broadcast %cst_20 : f32 to vector<8x32xf32>
    %29 = arith.addf %28, %27 : vector<8x32xf32>
    %30 = arith.divf %28, %29 : vector<8x32xf32>
    %31 = vector.extract_strided_slice %18 {offsets = [0, 64], sizes = [8, 32], strides = [1, 1]} : vector<8x128xf32> to vector<8x32xf32>
    %32 = math.tanh %31 : vector<8x32xf32>
    %33 = vector.extract_strided_slice %18 {offsets = [0, 96], sizes = [8, 32], strides = [1, 1]} : vector<8x128xf32> to vector<8x32xf32>
    %34 = arith.negf %33 : vector<8x32xf32>
    %35 = math.exp %34 : vector<8x32xf32>
    %cst_21 = arith.constant 1.000000e+00 : f32
    %36 = vector.broadcast %cst_21 : f32 to vector<8x32xf32>
    %37 = arith.addf %36, %35 : vector<8x32xf32>
    %38 = arith.divf %36, %37 : vector<8x32xf32>
    %39 = arith.mulf %30, %10 : vector<8x32xf32>
    %40 = arith.mulf %24, %32 : vector<8x32xf32>
    %41 = arith.addf %39, %40 : vector<8x32xf32>
    %42 = math.tanh %41 : vector<8x32xf32>
    %43 = arith.mulf %38, %42 : vector<8x32xf32>
    %cst_22 = arith.constant dense<0.000000e+00> : vector<8x128xf32>
    %44 = tpu.matmul %43, %2, %cst_22 {dimension_numbers = #tpu.dot_dimension_numbers<[1], [0], [0], [1], [0, 0, 1, 1], [], []>} : vector<8x32xf32>, vector<32x128xf32>, vector<8x128xf32> -> vector<8x128xf32>
    %cst_23 = arith.constant dense<0.000000e+00> : vector<8x128xf32>
    %45 = tpu.matmul %10, %3, %cst_23 {dimension_numbers = #tpu.dot_dimension_numbers<[1], [0], [0], [1], [0, 0, 1, 1], [], []>} : vector<8x32xf32>, vector<32x128xf32>, vector<8x128xf32> -> vector<8x128xf32>
    %46 = arith.addf %44, %45 : vector<8x128xf32>
    %47 = vector.broadcast %5 : vector<1x128xf32> to vector<8x128xf32>
    %48 = arith.addf %46, %47 : vector<8x128xf32>
    %49 = vector.extract_strided_slice %48 {offsets = [0, 0], sizes = [8, 32], strides = [1, 1]} : vector<8x128xf32> to vector<8x32xf32>
    %50 = arith.negf %49 : vector<8x32xf32>
    %51 = math.exp %50 : vector<8x32xf32>
    %cst_24 = arith.constant 1.000000e+00 : f32
    %52 = vector.broadcast %cst_24 : f32 to vector<8x32xf32>
    %53 = arith.addf %52, %51 : vector<8x32xf32>
    %54 = arith.divf %52, %53 : vector<8x32xf32>
    %55 = vector.extract_strided_slice %48 {offsets = [0, 32], sizes = [8, 32], strides = [1, 1]} : vector<8x128xf32> to vector<8x32xf32>
    %56 = arith.negf %55 : vector<8x32xf32>
    %57 = math.exp %56 : vector<8x32xf32>
    %cst_25 = arith.constant 1.000000e+00 : f32
    %58 = vector.broadcast %cst_25 : f32 to vector<8x32xf32>
    %59 = arith.addf %58, %57 : vector<8x32xf32>
    %60 = arith.divf %58, %59 : vector<8x32xf32>
    %61 = vector.extract_strided_slice %48 {offsets = [0, 64], sizes = [8, 32], strides = [1, 1]} : vector<8x128xf32> to vector<8x32xf32>
    %62 = math.tanh %61 : vector<8x32xf32>
    %63 = vector.extract_strided_slice %48 {offsets = [0, 96], sizes = [8, 32], strides = [1, 1]} : vector<8x128xf32> to vector<8x32xf32>
    %64 = arith.negf %63 : vector<8x32xf32>
    %65 = math.exp %64 : vector<8x32xf32>
    %cst_26 = arith.constant 1.000000e+00 : f32
    %66 = vector.broadcast %cst_26 : f32 to vector<8x32xf32>
    %67 = arith.addf %66, %65 : vector<8x32xf32>
    %68 = arith.divf %66, %67 : vector<8x32xf32>
    %69 = arith.mulf %60, %10 : vector<8x32xf32>
    %70 = arith.mulf %54, %62 : vector<8x32xf32>
    %71 = arith.addf %69, %70 : vector<8x32xf32>
    %72 = math.tanh %71 : vector<8x32xf32>
    %73 = arith.mulf %68, %72 : vector<8x32xf32>
    %c0_27 = arith.constant 0 : index
    %c0_28 = arith.constant 0 : index
    %c0_29 = arith.constant 0 : index
    %74 = vector.load %arg1[%c0_27, %c0_28, %c0_29] : memref<8x8x32xf32, #tpu.memory_space<vmem>>, vector<1x8x32xf32>
    %75 = vector.shape_cast %74 : vector<1x8x32xf32> to vector<8x32xf32>
    %76 = arith.mulf %75, %73 : vector<8x32xf32>
    %77 = arith.maximumf %11, %76 : vector<8x32xf32>
    %c1 = arith.constant 1 : index
    %c0_30 = arith.constant 0 : index
    %c0_31 = arith.constant 0 : index
    %78 = vector.load %arg0[%c1, %c0_30, %c0_31] : memref<8x8x32xf32, #tpu.memory_space<vmem>>, vector<1x8x32xf32>
    %79 = vector.shape_cast %78 : vector<1x8x32xf32> to vector<8x32xf32>
    %cst_32 = arith.constant dense<0.000000e+00> : vector<8x128xf32>
    %80 = tpu.matmul %79, %0, %cst_32 {dimension_numbers = #tpu.dot_dimension_numbers<[1], [0], [0], [1], [0, 0, 1, 1], [], []>} : vector<8x32xf32>, vector<32x128xf32>, vector<8x128xf32> -> vector<8x128xf32>
    %cst_33 = arith.constant dense<0.000000e+00> : vector<8x128xf32>
    %81 = tpu.matmul %43, %1, %cst_33 {dimension_numbers = #tpu.dot_dimension_numbers<[1], [0], [0], [1], [0, 0, 1, 1], [], []>} : vector<8x32xf32>, vector<32x128xf32>, vector<8x128xf32> -> vector<8x128xf32>
    %82 = arith.addf %80, %81 : vector<8x128xf32>
    %83 = vector.broadcast %4 : vector<1x128xf32> to vector<8x128xf32>
    %84 = arith.addf %82, %83 : vector<8x128xf32>
    %85 = vector.extract_strided_slice %84 {offsets = [0, 0], sizes = [8, 32], strides = [1, 1]} : vector<8x128xf32> to vector<8x32xf32>
    %86 = arith.negf %85 : vector<8x32xf32>
    %87 = math.exp %86 : vector<8x32xf32>
    %cst_34 = arith.constant 1.000000e+00 : f32
    %88 = vector.broadcast %cst_34 : f32 to vector<8x32xf32>
    %89 = arith.addf %88, %87 : vector<8x32xf32>
    %90 = arith.divf %88, %89 : vector<8x32xf32>
    %91 = vector.extract_strided_slice %84 {offsets = [0, 32], sizes = [8, 32], strides = [1, 1]} : vector<8x128xf32> to vector<8x32xf32>
    %92 = arith.negf %91 : vector<8x32xf32>
    %93 = math.exp %92 : vector<8x32xf32>
    %cst_35 = arith.constant 1.000000e+00 : f32
    %94 = vector.broadcast %cst_35 : f32 to vector<8x32xf32>
    %95 = arith.addf %94, %93 : vector<8x32xf32>
    %96 = arith.divf %94, %95 : vector<8x32xf32>
    %97 = vector.extract_strided_slice %84 {offsets = [0, 64], sizes = [8, 32], strides = [1, 1]} : vector<8x128xf32> to vector<8x32xf32>
    %98 = math.tanh %97 : vector<8x32xf32>
    %99 = vector.extract_strided_slice %84 {offsets = [0, 96], sizes = [8, 32], strides = [1, 1]} : vector<8x128xf32> to vector<8x32xf32>
    %100 = arith.negf %99 : vector<8x32xf32>
    %101 = math.exp %100 : vector<8x32xf32>
    %cst_36 = arith.constant 1.000000e+00 : f32
    %102 = vector.broadcast %cst_36 : f32 to vector<8x32xf32>
    %103 = arith.addf %102, %101 : vector<8x32xf32>
    %104 = arith.divf %102, %103 : vector<8x32xf32>
    %105 = arith.mulf %96, %41 : vector<8x32xf32>
    %106 = arith.mulf %90, %98 : vector<8x32xf32>
    %107 = arith.addf %105, %106 : vector<8x32xf32>
    %108 = math.tanh %107 : vector<8x32xf32>
    %109 = arith.mulf %104, %108 : vector<8x32xf32>
    %cst_37 = arith.constant dense<0.000000e+00> : vector<8x128xf32>
    %110 = tpu.matmul %109, %2, %cst_37 {dimension_numbers = #tpu.dot_dimension_numbers<[1], [0], [0], [1], [0, 0, 1, 1], [], []>} : vector<8x32xf32>, vector<32x128xf32>, vector<8x128xf32> -> vector<8x128xf32>
    %cst_38 = arith.constant dense<0.000000e+00> : vector<8x128xf32>
    %111 = tpu.matmul %73, %3, %cst_38 {dimension_numbers = #tpu.dot_dimension_numbers<[1], [0], [0], [1], [0, 0, 1, 1], [], []>} : vector<8x32xf32>, vector<32x128xf32>, vector<8x128xf32> -> vector<8x128xf32>
    %112 = arith.addf %110, %111 : vector<8x128xf32>
    %113 = vector.broadcast %5 : vector<1x128xf32> to vector<8x128xf32>
    %114 = arith.addf %112, %113 : vector<8x128xf32>
    %115 = vector.extract_strided_slice %114 {offsets = [0, 0], sizes = [8, 32], strides = [1, 1]} : vector<8x128xf32> to vector<8x32xf32>
    %116 = arith.negf %115 : vector<8x32xf32>
    %117 = math.exp %116 : vector<8x32xf32>
    %cst_39 = arith.constant 1.000000e+00 : f32
    %118 = vector.broadcast %cst_39 : f32 to vector<8x32xf32>
    %119 = arith.addf %118, %117 : vector<8x32xf32>
    %120 = arith.divf %118, %119 : vector<8x32xf32>
    %121 = vector.extract_strided_slice %114 {offsets = [0, 32], sizes = [8, 32], strides = [1, 1]} : vector<8x128xf32> to vector<8x32xf32>
    %122 = arith.negf %121 : vector<8x32xf32>
    %123 = math.exp %122 : vector<8x32xf32>
    %cst_40 = arith.constant 1.000000e+00 : f32
    %124 = vector.broadcast %cst_40 : f32 to vector<8x32xf32>
    %125 = arith.addf %124, %123 : vector<8x32xf32>
    %126 = arith.divf %124, %125 : vector<8x32xf32>
    %127 = vector.extract_strided_slice %114 {offsets = [0, 64], sizes = [8, 32], strides = [1, 1]} : vector<8x128xf32> to vector<8x32xf32>
    %128 = math.tanh %127 : vector<8x32xf32>
    %129 = vector.extract_strided_slice %114 {offsets = [0, 96], sizes = [8, 32], strides = [1, 1]} : vector<8x128xf32> to vector<8x32xf32>
    %130 = arith.negf %129 : vector<8x32xf32>
    %131 = math.exp %130 : vector<8x32xf32>
    %cst_41 = arith.constant 1.000000e+00 : f32
    %132 = vector.broadcast %cst_41 : f32 to vector<8x32xf32>
    %133 = arith.addf %132, %131 : vector<8x32xf32>
    %134 = arith.divf %132, %133 : vector<8x32xf32>
    %135 = arith.mulf %126, %71 : vector<8x32xf32>
    %136 = arith.mulf %120, %128 : vector<8x32xf32>
    %137 = arith.addf %135, %136 : vector<8x32xf32>
    %138 = math.tanh %137 : vector<8x32xf32>
    %139 = arith.mulf %134, %138 : vector<8x32xf32>
    %c1_42 = arith.constant 1 : index
    %c0_43 = arith.constant 0 : index
    %c0_44 = arith.constant 0 : index
    %140 = vector.load %arg1[%c1_42, %c0_43, %c0_44] : memref<8x8x32xf32, #tpu.memory_space<vmem>>, vector<1x8x32xf32>
    %141 = vector.shape_cast %140 : vector<1x8x32xf32> to vector<8x32xf32>
    %142 = arith.mulf %141, %139 : vector<8x32xf32>
    %143 = arith.maximumf %77, %142 : vector<8x32xf32>
    %c2 = arith.constant 2 : index
    %c0_45 = arith.constant 0 : index
    %c0_46 = arith.constant 0 : index
    %144 = vector.load %arg0[%c2, %c0_45, %c0_46] : memref<8x8x32xf32, #tpu.memory_space<vmem>>, vector<1x8x32xf32>
    %145 = vector.shape_cast %144 : vector<1x8x32xf32> to vector<8x32xf32>
    %cst_47 = arith.constant dense<0.000000e+00> : vector<8x128xf32>
    %146 = tpu.matmul %145, %0, %cst_47 {dimension_numbers = #tpu.dot_dimension_numbers<[1], [0], [0], [1], [0, 0, 1, 1], [], []>} : vector<8x32xf32>, vector<32x128xf32>, vector<8x128xf32> -> vector<8x128xf32>
    %cst_48 = arith.constant dense<0.000000e+00> : vector<8x128xf32>
    %147 = tpu.matmul %109, %1, %cst_48 {dimension_numbers = #tpu.dot_dimension_numbers<[1], [0], [0], [1], [0, 0, 1, 1], [], []>} : vector<8x32xf32>, vector<32x128xf32>, vector<8x128xf32> -> vector<8x128xf32>
    %148 = arith.addf %146, %147 : vector<8x128xf32>
    %149 = vector.broadcast %4 : vector<1x128xf32> to vector<8x128xf32>
    %150 = arith.addf %148, %149 : vector<8x128xf32>
    %151 = vector.extract_strided_slice %150 {offsets = [0, 0], sizes = [8, 32], strides = [1, 1]} : vector<8x128xf32> to vector<8x32xf32>
    %152 = arith.negf %151 : vector<8x32xf32>
    %153 = math.exp %152 : vector<8x32xf32>
    %cst_49 = arith.constant 1.000000e+00 : f32
    %154 = vector.broadcast %cst_49 : f32 to vector<8x32xf32>
    %155 = arith.addf %154, %153 : vector<8x32xf32>
    %156 = arith.divf %154, %155 : vector<8x32xf32>
    %157 = vector.extract_strided_slice %150 {offsets = [0, 32], sizes = [8, 32], strides = [1, 1]} : vector<8x128xf32> to vector<8x32xf32>
    %158 = arith.negf %157 : vector<8x32xf32>
    %159 = math.exp %158 : vector<8x32xf32>
    %cst_50 = arith.constant 1.000000e+00 : f32
    %160 = vector.broadcast %cst_50 : f32 to vector<8x32xf32>
    %161 = arith.addf %160, %159 : vector<8x32xf32>
    %162 = arith.divf %160, %161 : vector<8x32xf32>
    %163 = vector.extract_strided_slice %150 {offsets = [0, 64], sizes = [8, 32], strides = [1, 1]} : vector<8x128xf32> to vector<8x32xf32>
    %164 = math.tanh %163 : vector<8x32xf32>
    %165 = vector.extract_strided_slice %150 {offsets = [0, 96], sizes = [8, 32], strides = [1, 1]} : vector<8x128xf32> to vector<8x32xf32>
    %166 = arith.negf %165 : vector<8x32xf32>
    %167 = math.exp %166 : vector<8x32xf32>
    %cst_51 = arith.constant 1.000000e+00 : f32
    %168 = vector.broadcast %cst_51 : f32 to vector<8x32xf32>
    %169 = arith.addf %168, %167 : vector<8x32xf32>
    %170 = arith.divf %168, %169 : vector<8x32xf32>
    %171 = arith.mulf %162, %107 : vector<8x32xf32>
    %172 = arith.mulf %156, %164 : vector<8x32xf32>
    %173 = arith.addf %171, %172 : vector<8x32xf32>
    %174 = math.tanh %173 : vector<8x32xf32>
    %175 = arith.mulf %170, %174 : vector<8x32xf32>
    %cst_52 = arith.constant dense<0.000000e+00> : vector<8x128xf32>
    %176 = tpu.matmul %175, %2, %cst_52 {dimension_numbers = #tpu.dot_dimension_numbers<[1], [0], [0], [1], [0, 0, 1, 1], [], []>} : vector<8x32xf32>, vector<32x128xf32>, vector<8x128xf32> -> vector<8x128xf32>
    %cst_53 = arith.constant dense<0.000000e+00> : vector<8x128xf32>
    %177 = tpu.matmul %139, %3, %cst_53 {dimension_numbers = #tpu.dot_dimension_numbers<[1], [0], [0], [1], [0, 0, 1, 1], [], []>} : vector<8x32xf32>, vector<32x128xf32>, vector<8x128xf32> -> vector<8x128xf32>
    %178 = arith.addf %176, %177 : vector<8x128xf32>
    %179 = vector.broadcast %5 : vector<1x128xf32> to vector<8x128xf32>
    %180 = arith.addf %178, %179 : vector<8x128xf32>
    %181 = vector.extract_strided_slice %180 {offsets = [0, 0], sizes = [8, 32], strides = [1, 1]} : vector<8x128xf32> to vector<8x32xf32>
    %182 = arith.negf %181 : vector<8x32xf32>
    %183 = math.exp %182 : vector<8x32xf32>
    %cst_54 = arith.constant 1.000000e+00 : f32
    %184 = vector.broadcast %cst_54 : f32 to vector<8x32xf32>
    %185 = arith.addf %184, %183 : vector<8x32xf32>
    %186 = arith.divf %184, %185 : vector<8x32xf32>
    %187 = vector.extract_strided_slice %180 {offsets = [0, 32], sizes = [8, 32], strides = [1, 1]} : vector<8x128xf32> to vector<8x32xf32>
    %188 = arith.negf %187 : vector<8x32xf32>
    %189 = math.exp %188 : vector<8x32xf32>
    %cst_55 = arith.constant 1.000000e+00 : f32
    %190 = vector.broadcast %cst_55 : f32 to vector<8x32xf32>
    %191 = arith.addf %190, %189 : vector<8x32xf32>
    %192 = arith.divf %190, %191 : vector<8x32xf32>
    %193 = vector.extract_strided_slice %180 {offsets = [0, 64], sizes = [8, 32], strides = [1, 1]} : vector<8x128xf32> to vector<8x32xf32>
    %194 = math.tanh %193 : vector<8x32xf32>
    %195 = vector.extract_strided_slice %180 {offsets = [0, 96], sizes = [8, 32], strides = [1, 1]} : vector<8x128xf32> to vector<8x32xf32>
    %196 = arith.negf %195 : vector<8x32xf32>
    %197 = math.exp %196 : vector<8x32xf32>
    %cst_56 = arith.constant 1.000000e+00 : f32
    %198 = vector.broadcast %cst_56 : f32 to vector<8x32xf32>
    %199 = arith.addf %198, %197 : vector<8x32xf32>
    %200 = arith.divf %198, %199 : vector<8x32xf32>
    %201 = arith.mulf %192, %137 : vector<8x32xf32>
    %202 = arith.mulf %186, %194 : vector<8x32xf32>
    %203 = arith.addf %201, %202 : vector<8x32xf32>
    %204 = math.tanh %203 : vector<8x32xf32>
    %205 = arith.mulf %200, %204 : vector<8x32xf32>
    %c2_57 = arith.constant 2 : index
    %c0_58 = arith.constant 0 : index
    %c0_59 = arith.constant 0 : index
    %206 = vector.load %arg1[%c2_57, %c0_58, %c0_59] : memref<8x8x32xf32, #tpu.memory_space<vmem>>, vector<1x8x32xf32>
    %207 = vector.shape_cast %206 : vector<1x8x32xf32> to vector<8x32xf32>
    %208 = arith.mulf %207, %205 : vector<8x32xf32>
    %209 = arith.maximumf %143, %208 : vector<8x32xf32>
    %c3 = arith.constant 3 : index
    %c0_60 = arith.constant 0 : index
    %c0_61 = arith.constant 0 : index
    %210 = vector.load %arg0[%c3, %c0_60, %c0_61] : memref<8x8x32xf32, #tpu.memory_space<vmem>>, vector<1x8x32xf32>
    %211 = vector.shape_cast %210 : vector<1x8x32xf32> to vector<8x32xf32>
    %cst_62 = arith.constant dense<0.000000e+00> : vector<8x128xf32>
    %212 = tpu.matmul %211, %0, %cst_62 {dimension_numbers = #tpu.dot_dimension_numbers<[1], [0], [0], [1], [0, 0, 1, 1], [], []>} : vector<8x32xf32>, vector<32x128xf32>, vector<8x128xf32> -> vector<8x128xf32>
    %cst_63 = arith.constant dense<0.000000e+00> : vector<8x128xf32>
    %213 = tpu.matmul %175, %1, %cst_63 {dimension_numbers = #tpu.dot_dimension_numbers<[1], [0], [0], [1], [0, 0, 1, 1], [], []>} : vector<8x32xf32>, vector<32x128xf32>, vector<8x128xf32> -> vector<8x128xf32>
    %214 = arith.addf %212, %213 : vector<8x128xf32>
    %215 = vector.broadcast %4 : vector<1x128xf32> to vector<8x128xf32>
    %216 = arith.addf %214, %215 : vector<8x128xf32>
    %217 = vector.extract_strided_slice %216 {offsets = [0, 0], sizes = [8, 32], strides = [1, 1]} : vector<8x128xf32> to vector<8x32xf32>
    %218 = arith.negf %217 : vector<8x32xf32>
    %219 = math.exp %218 : vector<8x32xf32>
    %cst_64 = arith.constant 1.000000e+00 : f32
    %220 = vector.broadcast %cst_64 : f32 to vector<8x32xf32>
    %221 = arith.addf %220, %219 : vector<8x32xf32>
    %222 = arith.divf %220, %221 : vector<8x32xf32>
    %223 = vector.extract_strided_slice %216 {offsets = [0, 32], sizes = [8, 32], strides = [1, 1]} : vector<8x128xf32> to vector<8x32xf32>
    %224 = arith.negf %223 : vector<8x32xf32>
    %225 = math.exp %224 : vector<8x32xf32>
    %cst_65 = arith.constant 1.000000e+00 : f32
    %226 = vector.broadcast %cst_65 : f32 to vector<8x32xf32>
    %227 = arith.addf %226, %225 : vector<8x32xf32>
    %228 = arith.divf %226, %227 : vector<8x32xf32>
    %229 = vector.extract_strided_slice %216 {offsets = [0, 64], sizes = [8, 32], strides = [1, 1]} : vector<8x128xf32> to vector<8x32xf32>
    %230 = math.tanh %229 : vector<8x32xf32>
    %231 = vector.extract_strided_slice %216 {offsets = [0, 96], sizes = [8, 32], strides = [1, 1]} : vector<8x128xf32> to vector<8x32xf32>
    %232 = arith.negf %231 : vector<8x32xf32>
    %233 = math.exp %232 : vector<8x32xf32>
    %cst_66 = arith.constant 1.000000e+00 : f32
    %234 = vector.broadcast %cst_66 : f32 to vector<8x32xf32>
    %235 = arith.addf %234, %233 : vector<8x32xf32>
    %236 = arith.divf %234, %235 : vector<8x32xf32>
    %237 = arith.mulf %228, %173 : vector<8x32xf32>
    %238 = arith.mulf %222, %230 : vector<8x32xf32>
    %239 = arith.addf %237, %238 : vector<8x32xf32>
    %240 = math.tanh %239 : vector<8x32xf32>
    %241 = arith.mulf %236, %240 : vector<8x32xf32>
    %cst_67 = arith.constant dense<0.000000e+00> : vector<8x128xf32>
    %242 = tpu.matmul %241, %2, %cst_67 {dimension_numbers = #tpu.dot_dimension_numbers<[1], [0], [0], [1], [0, 0, 1, 1], [], []>} : vector<8x32xf32>, vector<32x128xf32>, vector<8x128xf32> -> vector<8x128xf32>
    %cst_68 = arith.constant dense<0.000000e+00> : vector<8x128xf32>
    %243 = tpu.matmul %205, %3, %cst_68 {dimension_numbers = #tpu.dot_dimension_numbers<[1], [0], [0], [1], [0, 0, 1, 1], [], []>} : vector<8x32xf32>, vector<32x128xf32>, vector<8x128xf32> -> vector<8x128xf32>
    %244 = arith.addf %242, %243 : vector<8x128xf32>
    %245 = vector.broadcast %5 : vector<1x128xf32> to vector<8x128xf32>
    %246 = arith.addf %244, %245 : vector<8x128xf32>
    %247 = vector.extract_strided_slice %246 {offsets = [0, 0], sizes = [8, 32], strides = [1, 1]} : vector<8x128xf32> to vector<8x32xf32>
    %248 = arith.negf %247 : vector<8x32xf32>
    %249 = math.exp %248 : vector<8x32xf32>
    %cst_69 = arith.constant 1.000000e+00 : f32
    %250 = vector.broadcast %cst_69 : f32 to vector<8x32xf32>
    %251 = arith.addf %250, %249 : vector<8x32xf32>
    %252 = arith.divf %250, %251 : vector<8x32xf32>
    %253 = vector.extract_strided_slice %246 {offsets = [0, 32], sizes = [8, 32], strides = [1, 1]} : vector<8x128xf32> to vector<8x32xf32>
    %254 = arith.negf %253 : vector<8x32xf32>
    %255 = math.exp %254 : vector<8x32xf32>
    %cst_70 = arith.constant 1.000000e+00 : f32
    %256 = vector.broadcast %cst_70 : f32 to vector<8x32xf32>
    %257 = arith.addf %256, %255 : vector<8x32xf32>
    %258 = arith.divf %256, %257 : vector<8x32xf32>
    %259 = vector.extract_strided_slice %246 {offsets = [0, 64], sizes = [8, 32], strides = [1, 1]} : vector<8x128xf32> to vector<8x32xf32>
    %260 = math.tanh %259 : vector<8x32xf32>
    %261 = vector.extract_strided_slice %246 {offsets = [0, 96], sizes = [8, 32], strides = [1, 1]} : vector<8x128xf32> to vector<8x32xf32>
    %262 = arith.negf %261 : vector<8x32xf32>
    %263 = math.exp %262 : vector<8x32xf32>
    %cst_71 = arith.constant 1.000000e+00 : f32
    %264 = vector.broadcast %cst_71 : f32 to vector<8x32xf32>
    %265 = arith.addf %264, %263 : vector<8x32xf32>
    %266 = arith.divf %264, %265 : vector<8x32xf32>
    %267 = arith.mulf %258, %203 : vector<8x32xf32>
    %268 = arith.mulf %252, %260 : vector<8x32xf32>
    %269 = arith.addf %267, %268 : vector<8x32xf32>
    %270 = math.tanh %269 : vector<8x32xf32>
    %271 = arith.mulf %266, %270 : vector<8x32xf32>
    %c3_72 = arith.constant 3 : index
    %c0_73 = arith.constant 0 : index
    %c0_74 = arith.constant 0 : index
    %272 = vector.load %arg1[%c3_72, %c0_73, %c0_74] : memref<8x8x32xf32, #tpu.memory_space<vmem>>, vector<1x8x32xf32>
    %273 = vector.shape_cast %272 : vector<1x8x32xf32> to vector<8x32xf32>
    %274 = arith.mulf %273, %271 : vector<8x32xf32>
    %275 = arith.maximumf %209, %274 : vector<8x32xf32>
    %c4 = arith.constant 4 : index
    %c0_75 = arith.constant 0 : index
    %c0_76 = arith.constant 0 : index
    %276 = vector.load %arg0[%c4, %c0_75, %c0_76] : memref<8x8x32xf32, #tpu.memory_space<vmem>>, vector<1x8x32xf32>
    %277 = vector.shape_cast %276 : vector<1x8x32xf32> to vector<8x32xf32>
    %cst_77 = arith.constant dense<0.000000e+00> : vector<8x128xf32>
    %278 = tpu.matmul %277, %0, %cst_77 {dimension_numbers = #tpu.dot_dimension_numbers<[1], [0], [0], [1], [0, 0, 1, 1], [], []>} : vector<8x32xf32>, vector<32x128xf32>, vector<8x128xf32> -> vector<8x128xf32>
    %cst_78 = arith.constant dense<0.000000e+00> : vector<8x128xf32>
    %279 = tpu.matmul %241, %1, %cst_78 {dimension_numbers = #tpu.dot_dimension_numbers<[1], [0], [0], [1], [0, 0, 1, 1], [], []>} : vector<8x32xf32>, vector<32x128xf32>, vector<8x128xf32> -> vector<8x128xf32>
    %280 = arith.addf %278, %279 : vector<8x128xf32>
    %281 = vector.broadcast %4 : vector<1x128xf32> to vector<8x128xf32>
    %282 = arith.addf %280, %281 : vector<8x128xf32>
    %283 = vector.extract_strided_slice %282 {offsets = [0, 0], sizes = [8, 32], strides = [1, 1]} : vector<8x128xf32> to vector<8x32xf32>
    %284 = arith.negf %283 : vector<8x32xf32>
    %285 = math.exp %284 : vector<8x32xf32>
    %cst_79 = arith.constant 1.000000e+00 : f32
    %286 = vector.broadcast %cst_79 : f32 to vector<8x32xf32>
    %287 = arith.addf %286, %285 : vector<8x32xf32>
    %288 = arith.divf %286, %287 : vector<8x32xf32>
    %289 = vector.extract_strided_slice %282 {offsets = [0, 32], sizes = [8, 32], strides = [1, 1]} : vector<8x128xf32> to vector<8x32xf32>
    %290 = arith.negf %289 : vector<8x32xf32>
    %291 = math.exp %290 : vector<8x32xf32>
    %cst_80 = arith.constant 1.000000e+00 : f32
    %292 = vector.broadcast %cst_80 : f32 to vector<8x32xf32>
    %293 = arith.addf %292, %291 : vector<8x32xf32>
    %294 = arith.divf %292, %293 : vector<8x32xf32>
    %295 = vector.extract_strided_slice %282 {offsets = [0, 64], sizes = [8, 32], strides = [1, 1]} : vector<8x128xf32> to vector<8x32xf32>
    %296 = math.tanh %295 : vector<8x32xf32>
    %297 = vector.extract_strided_slice %282 {offsets = [0, 96], sizes = [8, 32], strides = [1, 1]} : vector<8x128xf32> to vector<8x32xf32>
    %298 = arith.negf %297 : vector<8x32xf32>
    %299 = math.exp %298 : vector<8x32xf32>
    %cst_81 = arith.constant 1.000000e+00 : f32
    %300 = vector.broadcast %cst_81 : f32 to vector<8x32xf32>
    %301 = arith.addf %300, %299 : vector<8x32xf32>
    %302 = arith.divf %300, %301 : vector<8x32xf32>
    %303 = arith.mulf %294, %239 : vector<8x32xf32>
    %304 = arith.mulf %288, %296 : vector<8x32xf32>
    %305 = arith.addf %303, %304 : vector<8x32xf32>
    %306 = math.tanh %305 : vector<8x32xf32>
    %307 = arith.mulf %302, %306 : vector<8x32xf32>
    %cst_82 = arith.constant dense<0.000000e+00> : vector<8x128xf32>
    %308 = tpu.matmul %307, %2, %cst_82 {dimension_numbers = #tpu.dot_dimension_numbers<[1], [0], [0], [1], [0, 0, 1, 1], [], []>} : vector<8x32xf32>, vector<32x128xf32>, vector<8x128xf32> -> vector<8x128xf32>
    %cst_83 = arith.constant dense<0.000000e+00> : vector<8x128xf32>
    %309 = tpu.matmul %271, %3, %cst_83 {dimension_numbers = #tpu.dot_dimension_numbers<[1], [0], [0], [1], [0, 0, 1, 1], [], []>} : vector<8x32xf32>, vector<32x128xf32>, vector<8x128xf32> -> vector<8x128xf32>
    %310 = arith.addf %308, %309 : vector<8x128xf32>
    %311 = vector.broadcast %5 : vector<1x128xf32> to vector<8x128xf32>
    %312 = arith.addf %310, %311 : vector<8x128xf32>
    %313 = vector.extract_strided_slice %312 {offsets = [0, 0], sizes = [8, 32], strides = [1, 1]} : vector<8x128xf32> to vector<8x32xf32>
    %314 = arith.negf %313 : vector<8x32xf32>
    %315 = math.exp %314 : vector<8x32xf32>
    %cst_84 = arith.constant 1.000000e+00 : f32
    %316 = vector.broadcast %cst_84 : f32 to vector<8x32xf32>
    %317 = arith.addf %316, %315 : vector<8x32xf32>
    %318 = arith.divf %316, %317 : vector<8x32xf32>
    %319 = vector.extract_strided_slice %312 {offsets = [0, 32], sizes = [8, 32], strides = [1, 1]} : vector<8x128xf32> to vector<8x32xf32>
    %320 = arith.negf %319 : vector<8x32xf32>
    %321 = math.exp %320 : vector<8x32xf32>
    %cst_85 = arith.constant 1.000000e+00 : f32
    %322 = vector.broadcast %cst_85 : f32 to vector<8x32xf32>
    %323 = arith.addf %322, %321 : vector<8x32xf32>
    %324 = arith.divf %322, %323 : vector<8x32xf32>
    %325 = vector.extract_strided_slice %312 {offsets = [0, 64], sizes = [8, 32], strides = [1, 1]} : vector<8x128xf32> to vector<8x32xf32>
    %326 = math.tanh %325 : vector<8x32xf32>
    %327 = vector.extract_strided_slice %312 {offsets = [0, 96], sizes = [8, 32], strides = [1, 1]} : vector<8x128xf32> to vector<8x32xf32>
    %328 = arith.negf %327 : vector<8x32xf32>
    %329 = math.exp %328 : vector<8x32xf32>
    %cst_86 = arith.constant 1.000000e+00 : f32
    %330 = vector.broadcast %cst_86 : f32 to vector<8x32xf32>
    %331 = arith.addf %330, %329 : vector<8x32xf32>
    %332 = arith.divf %330, %331 : vector<8x32xf32>
    %333 = arith.mulf %324, %269 : vector<8x32xf32>
    %334 = arith.mulf %318, %326 : vector<8x32xf32>
    %335 = arith.addf %333, %334 : vector<8x32xf32>
    %336 = math.tanh %335 : vector<8x32xf32>
    %337 = arith.mulf %332, %336 : vector<8x32xf32>
    %c4_87 = arith.constant 4 : index
    %c0_88 = arith.constant 0 : index
    %c0_89 = arith.constant 0 : index
    %338 = vector.load %arg1[%c4_87, %c0_88, %c0_89] : memref<8x8x32xf32, #tpu.memory_space<vmem>>, vector<1x8x32xf32>
    %339 = vector.shape_cast %338 : vector<1x8x32xf32> to vector<8x32xf32>
    %340 = arith.mulf %339, %337 : vector<8x32xf32>
    %341 = arith.maximumf %275, %340 : vector<8x32xf32>
    %c5 = arith.constant 5 : index
    %c0_90 = arith.constant 0 : index
    %c0_91 = arith.constant 0 : index
    %342 = vector.load %arg0[%c5, %c0_90, %c0_91] : memref<8x8x32xf32, #tpu.memory_space<vmem>>, vector<1x8x32xf32>
    %343 = vector.shape_cast %342 : vector<1x8x32xf32> to vector<8x32xf32>
    %cst_92 = arith.constant dense<0.000000e+00> : vector<8x128xf32>
    %344 = tpu.matmul %343, %0, %cst_92 {dimension_numbers = #tpu.dot_dimension_numbers<[1], [0], [0], [1], [0, 0, 1, 1], [], []>} : vector<8x32xf32>, vector<32x128xf32>, vector<8x128xf32> -> vector<8x128xf32>
    %cst_93 = arith.constant dense<0.000000e+00> : vector<8x128xf32>
    %345 = tpu.matmul %307, %1, %cst_93 {dimension_numbers = #tpu.dot_dimension_numbers<[1], [0], [0], [1], [0, 0, 1, 1], [], []>} : vector<8x32xf32>, vector<32x128xf32>, vector<8x128xf32> -> vector<8x128xf32>
    %346 = arith.addf %344, %345 : vector<8x128xf32>
    %347 = vector.broadcast %4 : vector<1x128xf32> to vector<8x128xf32>
    %348 = arith.addf %346, %347 : vector<8x128xf32>
    %349 = vector.extract_strided_slice %348 {offsets = [0, 0], sizes = [8, 32], strides = [1, 1]} : vector<8x128xf32> to vector<8x32xf32>
    %350 = arith.negf %349 : vector<8x32xf32>
    %351 = math.exp %350 : vector<8x32xf32>
    %cst_94 = arith.constant 1.000000e+00 : f32
    %352 = vector.broadcast %cst_94 : f32 to vector<8x32xf32>
    %353 = arith.addf %352, %351 : vector<8x32xf32>
    %354 = arith.divf %352, %353 : vector<8x32xf32>
    %355 = vector.extract_strided_slice %348 {offsets = [0, 32], sizes = [8, 32], strides = [1, 1]} : vector<8x128xf32> to vector<8x32xf32>
    %356 = arith.negf %355 : vector<8x32xf32>
    %357 = math.exp %356 : vector<8x32xf32>
    %cst_95 = arith.constant 1.000000e+00 : f32
    %358 = vector.broadcast %cst_95 : f32 to vector<8x32xf32>
    %359 = arith.addf %358, %357 : vector<8x32xf32>
    %360 = arith.divf %358, %359 : vector<8x32xf32>
    %361 = vector.extract_strided_slice %348 {offsets = [0, 64], sizes = [8, 32], strides = [1, 1]} : vector<8x128xf32> to vector<8x32xf32>
    %362 = math.tanh %361 : vector<8x32xf32>
    %363 = vector.extract_strided_slice %348 {offsets = [0, 96], sizes = [8, 32], strides = [1, 1]} : vector<8x128xf32> to vector<8x32xf32>
    %364 = arith.negf %363 : vector<8x32xf32>
    %365 = math.exp %364 : vector<8x32xf32>
    %cst_96 = arith.constant 1.000000e+00 : f32
    %366 = vector.broadcast %cst_96 : f32 to vector<8x32xf32>
    %367 = arith.addf %366, %365 : vector<8x32xf32>
    %368 = arith.divf %366, %367 : vector<8x32xf32>
    %369 = arith.mulf %360, %305 : vector<8x32xf32>
    %370 = arith.mulf %354, %362 : vector<8x32xf32>
    %371 = arith.addf %369, %370 : vector<8x32xf32>
    %372 = math.tanh %371 : vector<8x32xf32>
    %373 = arith.mulf %368, %372 : vector<8x32xf32>
    %cst_97 = arith.constant dense<0.000000e+00> : vector<8x128xf32>
    %374 = tpu.matmul %373, %2, %cst_97 {dimension_numbers = #tpu.dot_dimension_numbers<[1], [0], [0], [1], [0, 0, 1, 1], [], []>} : vector<8x32xf32>, vector<32x128xf32>, vector<8x128xf32> -> vector<8x128xf32>
    %cst_98 = arith.constant dense<0.000000e+00> : vector<8x128xf32>
    %375 = tpu.matmul %337, %3, %cst_98 {dimension_numbers = #tpu.dot_dimension_numbers<[1], [0], [0], [1], [0, 0, 1, 1], [], []>} : vector<8x32xf32>, vector<32x128xf32>, vector<8x128xf32> -> vector<8x128xf32>
    %376 = arith.addf %374, %375 : vector<8x128xf32>
    %377 = vector.broadcast %5 : vector<1x128xf32> to vector<8x128xf32>
    %378 = arith.addf %376, %377 : vector<8x128xf32>
    %379 = vector.extract_strided_slice %378 {offsets = [0, 0], sizes = [8, 32], strides = [1, 1]} : vector<8x128xf32> to vector<8x32xf32>
    %380 = arith.negf %379 : vector<8x32xf32>
    %381 = math.exp %380 : vector<8x32xf32>
    %cst_99 = arith.constant 1.000000e+00 : f32
    %382 = vector.broadcast %cst_99 : f32 to vector<8x32xf32>
    %383 = arith.addf %382, %381 : vector<8x32xf32>
    %384 = arith.divf %382, %383 : vector<8x32xf32>
    %385 = vector.extract_strided_slice %378 {offsets = [0, 32], sizes = [8, 32], strides = [1, 1]} : vector<8x128xf32> to vector<8x32xf32>
    %386 = arith.negf %385 : vector<8x32xf32>
    %387 = math.exp %386 : vector<8x32xf32>
    %cst_100 = arith.constant 1.000000e+00 : f32
    %388 = vector.broadcast %cst_100 : f32 to vector<8x32xf32>
    %389 = arith.addf %388, %387 : vector<8x32xf32>
    %390 = arith.divf %388, %389 : vector<8x32xf32>
    %391 = vector.extract_strided_slice %378 {offsets = [0, 64], sizes = [8, 32], strides = [1, 1]} : vector<8x128xf32> to vector<8x32xf32>
    %392 = math.tanh %391 : vector<8x32xf32>
    %393 = vector.extract_strided_slice %378 {offsets = [0, 96], sizes = [8, 32], strides = [1, 1]} : vector<8x128xf32> to vector<8x32xf32>
    %394 = arith.negf %393 : vector<8x32xf32>
    %395 = math.exp %394 : vector<8x32xf32>
    %cst_101 = arith.constant 1.000000e+00 : f32
    %396 = vector.broadcast %cst_101 : f32 to vector<8x32xf32>
    %397 = arith.addf %396, %395 : vector<8x32xf32>
    %398 = arith.divf %396, %397 : vector<8x32xf32>
    %399 = arith.mulf %390, %335 : vector<8x32xf32>
    %400 = arith.mulf %384, %392 : vector<8x32xf32>
    %401 = arith.addf %399, %400 : vector<8x32xf32>
    %402 = math.tanh %401 : vector<8x32xf32>
    %403 = arith.mulf %398, %402 : vector<8x32xf32>
    %c5_102 = arith.constant 5 : index
    %c0_103 = arith.constant 0 : index
    %c0_104 = arith.constant 0 : index
    %404 = vector.load %arg1[%c5_102, %c0_103, %c0_104] : memref<8x8x32xf32, #tpu.memory_space<vmem>>, vector<1x8x32xf32>
    %405 = vector.shape_cast %404 : vector<1x8x32xf32> to vector<8x32xf32>
    %406 = arith.mulf %405, %403 : vector<8x32xf32>
    %407 = arith.maximumf %341, %406 : vector<8x32xf32>
    %c6 = arith.constant 6 : index
    %c0_105 = arith.constant 0 : index
    %c0_106 = arith.constant 0 : index
    %408 = vector.load %arg0[%c6, %c0_105, %c0_106] : memref<8x8x32xf32, #tpu.memory_space<vmem>>, vector<1x8x32xf32>
    %409 = vector.shape_cast %408 : vector<1x8x32xf32> to vector<8x32xf32>
    %cst_107 = arith.constant dense<0.000000e+00> : vector<8x128xf32>
    %410 = tpu.matmul %409, %0, %cst_107 {dimension_numbers = #tpu.dot_dimension_numbers<[1], [0], [0], [1], [0, 0, 1, 1], [], []>} : vector<8x32xf32>, vector<32x128xf32>, vector<8x128xf32> -> vector<8x128xf32>
    %cst_108 = arith.constant dense<0.000000e+00> : vector<8x128xf32>
    %411 = tpu.matmul %373, %1, %cst_108 {dimension_numbers = #tpu.dot_dimension_numbers<[1], [0], [0], [1], [0, 0, 1, 1], [], []>} : vector<8x32xf32>, vector<32x128xf32>, vector<8x128xf32> -> vector<8x128xf32>
    %412 = arith.addf %410, %411 : vector<8x128xf32>
    %413 = vector.broadcast %4 : vector<1x128xf32> to vector<8x128xf32>
    %414 = arith.addf %412, %413 : vector<8x128xf32>
    %415 = vector.extract_strided_slice %414 {offsets = [0, 0], sizes = [8, 32], strides = [1, 1]} : vector<8x128xf32> to vector<8x32xf32>
    %416 = arith.negf %415 : vector<8x32xf32>
    %417 = math.exp %416 : vector<8x32xf32>
    %cst_109 = arith.constant 1.000000e+00 : f32
    %418 = vector.broadcast %cst_109 : f32 to vector<8x32xf32>
    %419 = arith.addf %418, %417 : vector<8x32xf32>
    %420 = arith.divf %418, %419 : vector<8x32xf32>
    %421 = vector.extract_strided_slice %414 {offsets = [0, 32], sizes = [8, 32], strides = [1, 1]} : vector<8x128xf32> to vector<8x32xf32>
    %422 = arith.negf %421 : vector<8x32xf32>
    %423 = math.exp %422 : vector<8x32xf32>
    %cst_110 = arith.constant 1.000000e+00 : f32
    %424 = vector.broadcast %cst_110 : f32 to vector<8x32xf32>
    %425 = arith.addf %424, %423 : vector<8x32xf32>
    %426 = arith.divf %424, %425 : vector<8x32xf32>
    %427 = vector.extract_strided_slice %414 {offsets = [0, 64], sizes = [8, 32], strides = [1, 1]} : vector<8x128xf32> to vector<8x32xf32>
    %428 = math.tanh %427 : vector<8x32xf32>
    %429 = vector.extract_strided_slice %414 {offsets = [0, 96], sizes = [8, 32], strides = [1, 1]} : vector<8x128xf32> to vector<8x32xf32>
    %430 = arith.negf %429 : vector<8x32xf32>
    %431 = math.exp %430 : vector<8x32xf32>
    %cst_111 = arith.constant 1.000000e+00 : f32
    %432 = vector.broadcast %cst_111 : f32 to vector<8x32xf32>
    %433 = arith.addf %432, %431 : vector<8x32xf32>
    %434 = arith.divf %432, %433 : vector<8x32xf32>
    %435 = arith.mulf %426, %371 : vector<8x32xf32>
    %436 = arith.mulf %420, %428 : vector<8x32xf32>
    %437 = arith.addf %435, %436 : vector<8x32xf32>
    %438 = math.tanh %437 : vector<8x32xf32>
    %439 = arith.mulf %434, %438 : vector<8x32xf32>
    %cst_112 = arith.constant dense<0.000000e+00> : vector<8x128xf32>
    %440 = tpu.matmul %439, %2, %cst_112 {dimension_numbers = #tpu.dot_dimension_numbers<[1], [0], [0], [1], [0, 0, 1, 1], [], []>} : vector<8x32xf32>, vector<32x128xf32>, vector<8x128xf32> -> vector<8x128xf32>
    %cst_113 = arith.constant dense<0.000000e+00> : vector<8x128xf32>
    %441 = tpu.matmul %403, %3, %cst_113 {dimension_numbers = #tpu.dot_dimension_numbers<[1], [0], [0], [1], [0, 0, 1, 1], [], []>} : vector<8x32xf32>, vector<32x128xf32>, vector<8x128xf32> -> vector<8x128xf32>
    %442 = arith.addf %440, %441 : vector<8x128xf32>
    %443 = vector.broadcast %5 : vector<1x128xf32> to vector<8x128xf32>
    %444 = arith.addf %442, %443 : vector<8x128xf32>
    %445 = vector.extract_strided_slice %444 {offsets = [0, 0], sizes = [8, 32], strides = [1, 1]} : vector<8x128xf32> to vector<8x32xf32>
    %446 = arith.negf %445 : vector<8x32xf32>
    %447 = math.exp %446 : vector<8x32xf32>
    %cst_114 = arith.constant 1.000000e+00 : f32
    %448 = vector.broadcast %cst_114 : f32 to vector<8x32xf32>
    %449 = arith.addf %448, %447 : vector<8x32xf32>
    %450 = arith.divf %448, %449 : vector<8x32xf32>
    %451 = vector.extract_strided_slice %444 {offsets = [0, 32], sizes = [8, 32], strides = [1, 1]} : vector<8x128xf32> to vector<8x32xf32>
    %452 = arith.negf %451 : vector<8x32xf32>
    %453 = math.exp %452 : vector<8x32xf32>
    %cst_115 = arith.constant 1.000000e+00 : f32
    %454 = vector.broadcast %cst_115 : f32 to vector<8x32xf32>
    %455 = arith.addf %454, %453 : vector<8x32xf32>
    %456 = arith.divf %454, %455 : vector<8x32xf32>
    %457 = vector.extract_strided_slice %444 {offsets = [0, 64], sizes = [8, 32], strides = [1, 1]} : vector<8x128xf32> to vector<8x32xf32>
    %458 = math.tanh %457 : vector<8x32xf32>
    %459 = vector.extract_strided_slice %444 {offsets = [0, 96], sizes = [8, 32], strides = [1, 1]} : vector<8x128xf32> to vector<8x32xf32>
    %460 = arith.negf %459 : vector<8x32xf32>
    %461 = math.exp %460 : vector<8x32xf32>
    %cst_116 = arith.constant 1.000000e+00 : f32
    %462 = vector.broadcast %cst_116 : f32 to vector<8x32xf32>
    %463 = arith.addf %462, %461 : vector<8x32xf32>
    %464 = arith.divf %462, %463 : vector<8x32xf32>
    %465 = arith.mulf %456, %401 : vector<8x32xf32>
    %466 = arith.mulf %450, %458 : vector<8x32xf32>
    %467 = arith.addf %465, %466 : vector<8x32xf32>
    %468 = math.tanh %467 : vector<8x32xf32>
    %469 = arith.mulf %464, %468 : vector<8x32xf32>
    %c6_117 = arith.constant 6 : index
    %c0_118 = arith.constant 0 : index
    %c0_119 = arith.constant 0 : index
    %470 = vector.load %arg1[%c6_117, %c0_118, %c0_119] : memref<8x8x32xf32, #tpu.memory_space<vmem>>, vector<1x8x32xf32>
    %471 = vector.shape_cast %470 : vector<1x8x32xf32> to vector<8x32xf32>
    %472 = arith.mulf %471, %469 : vector<8x32xf32>
    %473 = arith.maximumf %407, %472 : vector<8x32xf32>
    %c7 = arith.constant 7 : index
    %c0_120 = arith.constant 0 : index
    %c0_121 = arith.constant 0 : index
    %474 = vector.load %arg0[%c7, %c0_120, %c0_121] : memref<8x8x32xf32, #tpu.memory_space<vmem>>, vector<1x8x32xf32>
    %475 = vector.shape_cast %474 : vector<1x8x32xf32> to vector<8x32xf32>
    %cst_122 = arith.constant dense<0.000000e+00> : vector<8x128xf32>
    %476 = tpu.matmul %475, %0, %cst_122 {dimension_numbers = #tpu.dot_dimension_numbers<[1], [0], [0], [1], [0, 0, 1, 1], [], []>} : vector<8x32xf32>, vector<32x128xf32>, vector<8x128xf32> -> vector<8x128xf32>
    %cst_123 = arith.constant dense<0.000000e+00> : vector<8x128xf32>
    %477 = tpu.matmul %439, %1, %cst_123 {dimension_numbers = #tpu.dot_dimension_numbers<[1], [0], [0], [1], [0, 0, 1, 1], [], []>} : vector<8x32xf32>, vector<32x128xf32>, vector<8x128xf32> -> vector<8x128xf32>
    %478 = arith.addf %476, %477 : vector<8x128xf32>
    %479 = vector.broadcast %4 : vector<1x128xf32> to vector<8x128xf32>
    %480 = arith.addf %478, %479 : vector<8x128xf32>
    %481 = vector.extract_strided_slice %480 {offsets = [0, 0], sizes = [8, 32], strides = [1, 1]} : vector<8x128xf32> to vector<8x32xf32>
    %482 = arith.negf %481 : vector<8x32xf32>
    %483 = math.exp %482 : vector<8x32xf32>
    %cst_124 = arith.constant 1.000000e+00 : f32
    %484 = vector.broadcast %cst_124 : f32 to vector<8x32xf32>
    %485 = arith.addf %484, %483 : vector<8x32xf32>
    %486 = arith.divf %484, %485 : vector<8x32xf32>
    %487 = vector.extract_strided_slice %480 {offsets = [0, 32], sizes = [8, 32], strides = [1, 1]} : vector<8x128xf32> to vector<8x32xf32>
    %488 = arith.negf %487 : vector<8x32xf32>
    %489 = math.exp %488 : vector<8x32xf32>
    %cst_125 = arith.constant 1.000000e+00 : f32
    %490 = vector.broadcast %cst_125 : f32 to vector<8x32xf32>
    %491 = arith.addf %490, %489 : vector<8x32xf32>
    %492 = arith.divf %490, %491 : vector<8x32xf32>
    %493 = vector.extract_strided_slice %480 {offsets = [0, 64], sizes = [8, 32], strides = [1, 1]} : vector<8x128xf32> to vector<8x32xf32>
    %494 = math.tanh %493 : vector<8x32xf32>
    %495 = vector.extract_strided_slice %480 {offsets = [0, 96], sizes = [8, 32], strides = [1, 1]} : vector<8x128xf32> to vector<8x32xf32>
    %496 = arith.negf %495 : vector<8x32xf32>
    %497 = math.exp %496 : vector<8x32xf32>
    %cst_126 = arith.constant 1.000000e+00 : f32
    %498 = vector.broadcast %cst_126 : f32 to vector<8x32xf32>
    %499 = arith.addf %498, %497 : vector<8x32xf32>
    %500 = arith.divf %498, %499 : vector<8x32xf32>
    %501 = arith.mulf %492, %437 : vector<8x32xf32>
    %502 = arith.mulf %486, %494 : vector<8x32xf32>
    %503 = arith.addf %501, %502 : vector<8x32xf32>
    %504 = math.tanh %503 : vector<8x32xf32>
    %505 = arith.mulf %500, %504 : vector<8x32xf32>
    %cst_127 = arith.constant dense<0.000000e+00> : vector<8x128xf32>
    %506 = tpu.matmul %505, %2, %cst_127 {dimension_numbers = #tpu.dot_dimension_numbers<[1], [0], [0], [1], [0, 0, 1, 1], [], []>} : vector<8x32xf32>, vector<32x128xf32>, vector<8x128xf32> -> vector<8x128xf32>
    %cst_128 = arith.constant dense<0.000000e+00> : vector<8x128xf32>
    %507 = tpu.matmul %469, %3, %cst_128 {dimension_numbers = #tpu.dot_dimension_numbers<[1], [0], [0], [1], [0, 0, 1, 1], [], []>} : vector<8x32xf32>, vector<32x128xf32>, vector<8x128xf32> -> vector<8x128xf32>
    %508 = arith.addf %506, %507 : vector<8x128xf32>
    %509 = vector.broadcast %5 : vector<1x128xf32> to vector<8x128xf32>
    %510 = arith.addf %508, %509 : vector<8x128xf32>
    %511 = vector.extract_strided_slice %510 {offsets = [0, 0], sizes = [8, 32], strides = [1, 1]} : vector<8x128xf32> to vector<8x32xf32>
    %512 = arith.negf %511 : vector<8x32xf32>
    %513 = math.exp %512 : vector<8x32xf32>
    %cst_129 = arith.constant 1.000000e+00 : f32
    %514 = vector.broadcast %cst_129 : f32 to vector<8x32xf32>
    %515 = arith.addf %514, %513 : vector<8x32xf32>
    %516 = arith.divf %514, %515 : vector<8x32xf32>
    %517 = vector.extract_strided_slice %510 {offsets = [0, 32], sizes = [8, 32], strides = [1, 1]} : vector<8x128xf32> to vector<8x32xf32>
    %518 = arith.negf %517 : vector<8x32xf32>
    %519 = math.exp %518 : vector<8x32xf32>
    %cst_130 = arith.constant 1.000000e+00 : f32
    %520 = vector.broadcast %cst_130 : f32 to vector<8x32xf32>
    %521 = arith.addf %520, %519 : vector<8x32xf32>
    %522 = arith.divf %520, %521 : vector<8x32xf32>
    %523 = vector.extract_strided_slice %510 {offsets = [0, 64], sizes = [8, 32], strides = [1, 1]} : vector<8x128xf32> to vector<8x32xf32>
    %524 = math.tanh %523 : vector<8x32xf32>
    %525 = vector.extract_strided_slice %510 {offsets = [0, 96], sizes = [8, 32], strides = [1, 1]} : vector<8x128xf32> to vector<8x32xf32>
    %526 = arith.negf %525 : vector<8x32xf32>
    %527 = math.exp %526 : vector<8x32xf32>
    %cst_131 = arith.constant 1.000000e+00 : f32
    %528 = vector.broadcast %cst_131 : f32 to vector<8x32xf32>
    %529 = arith.addf %528, %527 : vector<8x32xf32>
    %530 = arith.divf %528, %529 : vector<8x32xf32>
    %531 = arith.mulf %522, %467 : vector<8x32xf32>
    %532 = arith.mulf %516, %524 : vector<8x32xf32>
    %533 = arith.addf %531, %532 : vector<8x32xf32>
    %534 = math.tanh %533 : vector<8x32xf32>
    %535 = arith.mulf %530, %534 : vector<8x32xf32>
    %c7_132 = arith.constant 7 : index
    %c0_133 = arith.constant 0 : index
    %c0_134 = arith.constant 0 : index
    %536 = vector.load %arg1[%c7_132, %c0_133, %c0_134] : memref<8x8x32xf32, #tpu.memory_space<vmem>>, vector<1x8x32xf32>
    %537 = vector.shape_cast %536 : vector<1x8x32xf32> to vector<8x32xf32>
    %538 = arith.mulf %537, %535 : vector<8x32xf32>
    %539 = arith.maximumf %473, %538 : vector<8x32xf32>
    %cst_135 = arith.constant dense<0.000000e+00> : vector<8x128xf32>
    %540 = tpu.matmul %539, %6, %cst_135 {dimension_numbers = #tpu.dot_dimension_numbers<[1], [0], [0], [1], [0, 0, 1, 1], [], []>} : vector<8x32xf32>, vector<32x128xf32>, vector<8x128xf32> -> vector<8x128xf32>
    %541 = vector.extract_strided_slice %540 {offsets = [0, 0], sizes = [8, 32], strides = [1, 1]} : vector<8x128xf32> to vector<8x32xf32>
    %c0_136 = arith.constant 0 : index
    %c0_137 = arith.constant 0 : index
    %542 = vector.load %arg2[%c0_136, %c0_137] : memref<8x32xf32, #tpu.memory_space<vmem>>, vector<8x32xf32>
    %543 = arith.subf %541, %542 : vector<8x32xf32>
    %544 = math.absf %543 : vector<8x32xf32>
    %545 = arith.mulf %541, %542 : vector<8x32xf32>
    %546 = tpu.concatenate %541, %542, %544, %545 in 1 : vector<8x32xf32>, vector<8x32xf32>, vector<8x32xf32>, vector<8x32xf32> -> vector<8x128xf32>
    %cst_138 = arith.constant dense<0.000000e+00> : vector<8x256xf32>
    %547 = tpu.matmul %546, %7, %cst_138 {dimension_numbers = #tpu.dot_dimension_numbers<[1], [0], [0], [1], [0, 0, 1, 1], [], []>} : vector<8x128xf32>, vector<128x256xf32>, vector<8x256xf32> -> vector<8x256xf32>
    %548 = vector.broadcast %8 : vector<1x256xf32> to vector<8x256xf32>
    %549 = arith.addf %547, %548 : vector<8x256xf32>
    %cst_139 = arith.constant 0.000000e+00 : f32
    %550 = vector.broadcast %cst_139 : f32 to vector<8x256xf32>
    %551 = arith.maximumf %549, %550 : vector<8x256xf32>
    %552 = vector.broadcast %9 : vector<1x256xf32> to vector<8x256xf32>
    %553 = arith.mulf %551, %552 : vector<8x256xf32>
    %cst_140 = arith.constant dense<0.000000e+00> : vector<8xf32>
    %554 = vector.multi_reduction <add>, %553, %cst_140 [1] : vector<8x256xf32> to vector<8xf32>
    %555 = vector.shape_cast %554 : vector<8xf32> to vector<8x1xf32>
    %556 = arith.negf %555 : vector<8x1xf32>
    %557 = math.exp %556 : vector<8x1xf32>
    %cst_141 = arith.constant 1.000000e+00 : f32
    %558 = vector.broadcast %cst_141 : f32 to vector<8x1xf32>
    %559 = arith.addf %558, %557 : vector<8x1xf32>
    %560 = arith.divf %558, %559 : vector<8x1xf32>
    %561 = vector.shape_cast %560 : vector<8x1xf32> to vector<8x1xf32>
    %562 = vector.broadcast %561 : vector<8x1xf32> to vector<8x128xf32>
    %c0_142 = arith.constant 0 : index
    %c0_143 = arith.constant 0 : index
    %563 = vector.load %arg5[%c0_142, %c0_143] : memref<8x128xf32, #tpu.memory_space<vmem>>, vector<8x128xf32>
    tpu.vector_store %arg5[%c0_142, %c0_143], %562 {strides = array<i32>} : memref<8x128xf32, #tpu.memory_space<vmem>>, vector<8x128xf32>,
    return
  }
}

</mosaic_0001>

<llo_original>
// kernel: tpu_custom_call.1
$region0: #{tpu_custom_call.1}
  #allocation0 [shape = 'u32[]', space=smem, size = 0x4, offset = 0x4, fixed_abs, tag = 'smem constant byte address 0x4 - core index']
  #allocation1 [shape = 'u32[144,128]{1,0:T(1,128)}', space=vmem, size = 0x12000, scoped, tag = 'internal scratch']
  %s0 = inlined_call_operand.hbm [shape: f32[8,8,32], index: 0, kind: input, shape index: {}]
  %s1 = inlined_call_operand.hbm [shape: f32[8,8,32], index: 1, kind: input, shape index: {}]
  %s2 = inlined_call_operand.hbm [shape: f32[8,32], index: 2, kind: input, shape index: {}]
  %s3 = inlined_call_operand.hbm [shape: f32[176,128], index: 3, kind: input, shape index: {}]
  %s4 = inlined_call_operand.hbm [shape: f32[144,256], index: 4, kind: input, shape index: {}]
  %s5 = inlined_call_operand.hbm [shape: f32[8,128], index: 5, kind: output, shape index: {}]
  %s6 = sld [smem:[#allocation0]]
  $region50: #{tpu_custom_call.1} parent=0
    _
  %s8 = ssub.s32 1, %s6
  %s9 = scalar_select 0, %s8, %s6
  $region1: #{tpu_custom_call.1} parent=0
    #allocation2 [shape = 'u8[32768]{0}', space=vmem, size = 0x8000, scoped, tag = 'input window, operand 0, single buffered']
    #allocation3 [shape = 's32[1]{0}', space=sflag, size = 0x4, scoped, tag = 'scoped memory for tpu_custom_call.1']
    #allocation4 [shape = 's32[1]{0}', space=sflag, size = 0x4, scoped, tag = 'scoped memory for tpu_custom_call.1']
    #allocation5 [shape = 'u8[32768]{0}', space=vmem, size = 0x8000, scoped, tag = 'input window, operand 1, single buffered']
    #allocation6 [shape = 's32[1]{0}', space=sflag, size = 0x4, scoped, tag = 'scoped memory for tpu_custom_call.1']
    #allocation7 [shape = 'u8[4096]{0}', space=vmem, size = 0x1000, scoped, tag = 'input window, operand 2, single buffered']
    #allocation8 [shape = 'u8[90112]{0}', space=vmem, size = 0x16000, scoped, tag = 'input window, operand 3, single buffered']
    #allocation9 [shape = 's32[1]{0}', space=sflag, size = 0x4, scoped, tag = 'scoped memory for tpu_custom_call.1']
    #allocation10 [shape = 'u8[147456]{0}', space=vmem, size = 0x24000, scoped, tag = 'input window, operand 4, single buffered']
    #allocation11 [shape = 'u8[4096]{0}', space=vmem, size = 0x1000, scoped, tag = 'output window, operand 0, single buffered']
    %10 = vsyncpa [#allocation3], 0
    %11 = vsyncpa [#allocation6], 0
    %12 = vsyncpa [#allocation9], 0
    %13 = vsyncpa [#allocation4], 0
    // Predicated region
    $region2: #{tpu_custom_call.1} parent=1 // pred_check
      _
    $region3: #{tpu_custom_call.1} parent=1 // pred_check_branch
      %15 = sbr.rel (0) target = $region5
    $region4: #{tpu_custom_call.1} parent=1 // pred_region
      %s17 = ssub.s32 1024, 1024
      %18 = vsyncadd [#allocation3], %s17
      %s19 = sshll.u32 [#allocation2], 4
      %s20 = int_to_ptr.vmem [resolvable:$true] %s19
      %25 = dma.hbm_to_vmem [thread:$0]  %s0, 1024, %s20, [#allocation3], 128, 128, 8
    $region5: #{tpu_custom_call.1} parent=1 // pred_fallthru
      _
    // Predicated region
    $region6: #{tpu_custom_call.1} parent=1 // pred_check
      _
    $region7: #{tpu_custom_call.1} parent=1 // pred_check_branch
      %27 = sbr.rel (0) target = $region9
    $region8: #{tpu_custom_call.1} parent=1 // pred_region
      %s29 = ssub.s32 1024, 1024
      %30 = vsyncadd [#allocation6], %s29
      %s31 = sshll.u32 [#allocation5], 4
      %s32 = int_to_ptr.vmem [resolvable:$true] %s31
      %37 = dma.hbm_to_vmem [thread:$0]  %s1, 1024, %s32, [#allocation6], 128, 128, 8
    $region9: #{tpu_custom_call.1} parent=1 // pred_fallthru
      _
    // Predicated region
    $region10: #{tpu_custom_call.1} parent=1 // pred_check
      _
    $region11: #{tpu_custom_call.1} parent=1 // pred_check_branch
      %39 = sbr.rel (0) target = $region13
    $region12: #{tpu_custom_call.1} parent=1 // pred_region
      %s41 = ssub.s32 128, 128
      %42 = vsyncadd [#allocation6], %s41
      %s44 = sshll.u32 [#allocation7], 4
      %s45 = int_to_ptr.vmem [resolvable:$true] %s44
      %47 = dma.hbm_to_vmem [thread:$0]  %s2, 128, %s45, [#allocation6]
    $region13: #{tpu_custom_call.1} parent=1 // pred_fallthru
      _
    // Predicated region
    $region14: #{tpu_custom_call.1} parent=1 // pred_check
      _
    $region15: #{tpu_custom_call.1} parent=1 // pred_check_branch
      %49 = sbr.rel (0) target = $region17
    $region16: #{tpu_custom_call.1} parent=1 // pred_region
      %s51 = ssub.s32 2816, 2816
      %52 = vsyncadd [#allocation9], %s51
      %s53 = sshll.u32 [#allocation8], 4
      %s54 = int_to_ptr.vmem [resolvable:$true] %s53
      %59 = dma.hbm_to_vmem [thread:$0]  %s3, 2816, %s54, [#allocation9], 128, 128, 8
    $region17: #{tpu_custom_call.1} parent=1 // pred_fallthru
      _
    // Predicated region
    $region18: #{tpu_custom_call.1} parent=1 // pred_check
      _
    $region19: #{tpu_custom_call.1} parent=1 // pred_check_branch
      %61 = sbr.rel (0) target = $region21
    $region20: #{tpu_custom_call.1} parent=1 // pred_region
      %s63 = ssub.s32 4608, 4608
      %64 = vsyncadd [#allocation9], %s63
      %s65 = sshll.u32 [#allocation10], 4
      %s66 = int_to_ptr.vmem [resolvable:$true] %s65
      %71 = dma.hbm_to_vmem [thread:$0]  %s4, 4608, %s66, [#allocation9], 256, 256, 16
    $region21: #{tpu_custom_call.1} parent=1 // pred_fallthru
      _
    // Predicated region
    $region22: #{tpu_custom_call.1} parent=1 // pred_check
      _
    $region23: #{tpu_custom_call.1} parent=1 // pred_check_branch
      %73 = sbr.rel (0) target = $region25
    $region24: #{tpu_custom_call.1} parent=1 // pred_region
      %74 = dma.done [#allocation3], 1024
    $region25: #{tpu_custom_call.1} parent=1 // pred_fallthru
      _
    // Predicated region
    $region26: #{tpu_custom_call.1} parent=1 // pred_check
      _
    $region27: #{tpu_custom_call.1} parent=1 // pred_check_branch
      %76 = sbr.rel (0) target = $region29
    $region28: #{tpu_custom_call.1} parent=1 // pred_region
      %77 = dma.done [#allocation6], 1024
    $region29: #{tpu_custom_call.1} parent=1 // pred_fallthru
      _
    // Predicated region
    $region30: #{tpu_custom_call.1} parent=1 // pred_check
      _
    $region31: #{tpu_custom_call.1} parent=1 // pred_check_branch
      %79 = sbr.rel (0) target = $region33
    $region32: #{tpu_custom_call.1} parent=1 // pred_region
      %80 = dma.done [#allocation6], 128
    $region33: #{tpu_custom_call.1} parent=1 // pred_fallthru
      _
    // Predicated region
    $region34: #{tpu_custom_call.1} parent=1 // pred_check
      _
    $region35: #{tpu_custom_call.1} parent=1 // pred_check_branch
      %82 = sbr.rel (0) target = $region37
    $region36: #{tpu_custom_call.1} parent=1 // pred_region
      %83 = dma.done [#allocation9], 2816
    $region37: #{tpu_custom_call.1} parent=1 // pred_fallthru
      _
    // Predicated region
    $region38: #{tpu_custom_call.1} parent=1 // pred_check
      _
    $region39: #{tpu_custom_call.1} parent=1 // pred_check_branch
      %85 = sbr.rel (0) target = $region41
    $region40: #{tpu_custom_call.1} parent=1 // pred_region
      %86 = dma.done [#allocation9], 4608
    $region41: #{tpu_custom_call.1} parent=1 // pred_fallthru
      _
    %v87 = vld [vmem:[#allocation8] sm:$0xff]
    %v88 = vld [vmem:[#allocation8 + $0x8] sm:$0xff]
    %v89 = vld [vmem:[#allocation8 + $0x10] sm:$0xff]
    %v90 = vld [vmem:[#allocation8 + $0x18] sm:$0xff]
    %v91 = vld [vmem:[#allocation8 + $0x20] sm:$0xff]
    %v92 = vld [vmem:[#allocation8 + $0x28] sm:$0xff]
    %v93 = vld [vmem:[#allocation8 + $0x30] sm:$0xff]
    %v94 = vld [vmem:[#allocation8 + $0x38] sm:$0xff]
    %v95 = vld [vmem:[#allocation8 + $0x40] sm:$0xff]
    %v96 = vld [vmem:[#allocation8 + $0x48] sm:$0xff]
    %v97 = vld [vmem:[#allocation8 + $0x50] sm:$0xff]
    %v98 = vld [vmem:[#allocation8 + $0x58] sm:$0xff]
    %v99 = vld [vmem:[#allocation8 + $0x60] sm:$0xff]
    %v100 = vld [vmem:[#allocation8 + $0x68] sm:$0xff]
    %v101 = vld [vmem:[#allocation8 + $0x70] sm:$0xff]
    %v102 = vld [vmem:[#allocation8 + $0x78] sm:$0xff]
    %v103 = vld [vmem:[#allocation8 + $0x80] sm:$0x1]
    %v104 = vld [vmem:[#allocation8 + $0x88] sm:$0x1]
    %v105 = vld [vmem:[#allocation8 + $0x90] sm:$0xff]
    %v106 = vld [vmem:[#allocation8 + $0x98] sm:$0xff]
    %v107 = vld [vmem:[#allocation8 + $0xa0] sm:$0xff]
    %v108 = vld [vmem:[#allocation8 + $0xa8] sm:$0xff]
    %v109 = vld [vmem:[#allocation10] sm:$0xff]
    %v110 = vld [vmem:[#allocation10 + $0x8] sm:$0xff]
    %v111 = vld [vmem:[#allocation10 + $0x10] sm:$0xff]
    %v112 = vld [vmem:[#allocation10 + $0x18] sm:$0xff]
    %v113 = vld [vmem:[#allocation10 + $0x20] sm:$0xff]
    %v114 = vld [vmem:[#allocation10 + $0x28] sm:$0xff]
    %v115 = vld [vmem:[#allocation10 + $0x30] sm:$0xff]
    %v116 = vld [vmem:[#allocation10 + $0x38] sm:$0xff]
    %v117 = vld [vmem:[#allocation10 + $0x40] sm:$0xff]
    %v118 = vld [vmem:[#allocation10 + $0x48] sm:$0xff]
    %v119 = vld [vmem:[#allocation10 + $0x50] sm:$0xff]
    %v120 = vld [vmem:[#allocation10 + $0x58] sm:$0xff]
    %v121 = vld [vmem:[#allocation10 + $0x60] sm:$0xff]
    %v122 = vld [vmem:[#allocation10 + $0x68] sm:$0xff]
    %v123 = vld [vmem:[#allocation10 + $0x70] sm:$0xff]
    %v124 = vld [vmem:[#allocation10 + $0x78] sm:$0xff]
    %v125 = vld [vmem:[#allocation10 + $0x80] sm:$0xff]
    %v126 = vld [vmem:[#allocation10 + $0x88] sm:$0xff]
    %v127 = vld [vmem:[#allocation10 + $0x90] sm:$0xff]
    %v128 = vld [vmem:[#allocation10 + $0x98] sm:$0xff]
    %v129 = vld [vmem:[#allocation10 + $0xa0] sm:$0xff]
    %v130 = vld [vmem:[#allocation10 + $0xa8] sm:$0xff]
    %v131 = vld [vmem:[#allocation10 + $0xb0] sm:$0xff]
    %v132 = vld [vmem:[#allocation10 + $0xb8] sm:$0xff]
    %v133 = vld [vmem:[#allocation10 + $0xc0] sm:$0xff]
    %v134 = vld [vmem:[#allocation10 + $0xc8] sm:$0xff]
    %v135 = vld [vmem:[#allocation10 + $0xd0] sm:$0xff]
    %v136 = vld [vmem:[#allocation10 + $0xd8] sm:$0xff]
    %v137 = vld [vmem:[#allocation10 + $0xe0] sm:$0xff]
    %v138 = vld [vmem:[#allocation10 + $0xe8] sm:$0xff]
    %v139 = vld [vmem:[#allocation10 + $0xf0] sm:$0xff]
    %v140 = vld [vmem:[#allocation10 + $0xf8] sm:$0xff]
    %s141 = scalar_lea.vmem [#allocation10], 256
    %v142 = vld [vmem:[%s141] ss:$8 sm:$0x3]
    %s143 = scalar_lea.vmem [#allocation10], 272
    %v144 = vld [vmem:[%s143] ss:$8 sm:$0x3]
    %v145 = vld [vmem:[#allocation2] sm:$0xff]
    %vm146 = vcmask 261120
    %v148 = vsel %vm146, 0.0, 0
    %150 = vmatprep.subr.mxu0 0.0
    %151 = vmatpush1.msra.mxu0 %v91
    %152 = vmatprep.subr.mxu0 0.0
    %153 = vmatpush1.msra.mxu0 %v92
    %154 = vmatprep.subr.mxu0 0.0
    %155 = vmatpush1.msra.mxu0 %v93
    %156 = vmatprep.subr.mxu0 0.0
    %157 = vmatpush1.msra.mxu0 %v94
    %158 = vmatprep.subr.mxu0 0.0
    %159 = vmatpush1.msra.mxu0 0.0
    %160 = vmatprep.subr.mxu0 0.0
    %161 = vmatpush1.msra.mxu0 0.0
    %162 = vmatprep.subr.mxu0 0.0
    %163 = vmatpush1.msra.mxu0 0.0
    %164 = vmatprep.subr.mxu0 0.0
    %165 = vmatpush1.msra.mxu0 0.0
    %166 = vmatprep.subr.mxu0 0.0
    %167 = vmatpush1.msra.mxu0 0.0
    %168 = vmatprep.subr.mxu0 0.0
    %169 = vmatpush1.msra.mxu0 0.0
    %170 = vmatprep.subr.mxu0 0.0
    %171 = vmatpush1.msra.mxu0 0.0
    %172 = vmatprep.subr.mxu0 0.0
    %173 = vmatpush1.msra.mxu0 0.0
    %174 = vmatprep.subr.mxu0 0.0
    %175 = vmatpush1.msra.mxu0 0.0
    %176 = vmatprep.subr.mxu0 0.0
    %177 = vmatpush1.msra.mxu0 0.0
    %178 = vmatprep.subr.mxu0 0.0
    %179 = vmatpush1.msra.mxu0 0.0
    %180 = vmatprep.subr.mxu0 0.0
    %181 = vmatpush1.msra.mxu0 0.0
    %182 = vmatprep.subr.mxu0 0.0
    %183 = vmatpush1.msra.mxu0 0.0
    %184 = vmatprep.subr.mxu0 0.0
    %185 = vmatpush1.msra.mxu0 0.0
    %186 = vmatprep.subr.mxu0 0.0
    %187 = vmatpush1.msra.mxu0 0.0
    %188 = vmatprep.subr.mxu0 0.0
    %189 = vmatpush1.msra.mxu0 0.0
    %190 = vmatprep.subr.mxu0 0.0
    %191 = vmatpush1.msra.mxu0 0.0
    %192 = vmatprep.subr.mxu0 0.0
    %193 = vmatpush1.msra.mxu0 0.0
    %194 = vmatprep.subr.mxu0 0.0
    %195 = vmatpush1.msra.mxu0 0.0
    %196 = vmatprep.subr.mxu0 0.0
    %197 = vmatpush1.msra.mxu0 0.0
    %198 = vmatprep.subr.mxu0 0.0
    %199 = vmatpush1.msra.mxu0 0.0
    %200 = vmatprep.subr.mxu0 0.0
    %201 = vmatpush1.msra.mxu0 0.0
    %202 = vmatprep.subr.mxu0 0.0
    %203 = vmatpush1.msra.mxu0 0.0
    %204 = vmatprep.subr.mxu0 0.0
    %205 = vmatpush1.msra.mxu0 0.0
    %206 = vmatprep.subr.mxu0 0.0
    %207 = vmatpush1.msra.mxu0 0.0
    %208 = vmatprep.subr.mxu0 0.0
    %209 = vmatpush1.msra.mxu0 0.0
    %210 = vmatprep.subr.mxu0 0.0
    %211 = vmatpush1.msra.mxu0 0.0
    %212 = vmatprep.subr.mxu0 0.0
    %213 = vmatpush1.msra.mxu0 0.0
    %214 = vmatprep.mubr.f32.mxu0 0.0
    %215 = vmatmul.mubr.f32.gmra.mrb[0].mxu0 %v148
    %v216 = vpop.f32.mrb[0].mxu0
    %v217 = vadd.f32 0.0, %v216
    %v218 = vpop.f32.mrb[0].mxu0
    %219 = vdwg.mxu0
    %v221 = vsel %vm146, %v145, 0
    %223 = vmatprep.subr.mxu0 0.0
    %224 = vmatpush1.msra.mxu0 %v87
    %225 = vmatprep.subr.mxu0 0.0
    %226 = vmatpush1.msra.mxu0 %v88
    %227 = vmatprep.subr.mxu0 0.0
    %228 = vmatpush1.msra.mxu0 %v89
    %229 = vmatprep.subr.mxu0 0.0
    %230 = vmatpush1.msra.mxu0 %v90
    %231 = vmatprep.subr.mxu0 0.0
    %232 = vmatpush1.msra.mxu0 0.0
    %233 = vmatprep.subr.mxu0 0.0
    %234 = vmatpush1.msra.mxu0 0.0
    %235 = vmatprep.subr.mxu0 0.0
    %236 = vmatpush1.msra.mxu0 0.0
    %237 = vmatprep.subr.mxu0 0.0
    %238 = vmatpush1.msra.mxu0 0.0
    %239 = vmatprep.subr.mxu0 0.0
    %240 = vmatpush1.msra.mxu0 0.0
    %241 = vmatprep.subr.mxu0 0.0
    %242 = vmatpush1.msra.mxu0 0.0
    %243 = vmatprep.subr.mxu0 0.0
    %244 = vmatpush1.msra.mxu0 0.0
    %245 = vmatprep.subr.mxu0 0.0
    %246 = vmatpush1.msra.mxu0 0.0
    %247 = vmatprep.subr.mxu0 0.0
    %248 = vmatpush1.msra.mxu0 0.0
    %249 = vmatprep.subr.mxu0 0.0
    %250 = vmatpush1.msra.mxu0 0.0
    %251 = vmatprep.subr.mxu0 0.0
    %252 = vmatpush1.msra.mxu0 0.0
    %253 = vmatprep.subr.mxu0 0.0
    %254 = vmatpush1.msra.mxu0 0.0
    %255 = vmatprep.subr.mxu0 0.0
    %256 = vmatpush1.msra.mxu0 0.0
    %257 = vmatprep.subr.mxu0 0.0
    %258 = vmatpush1.msra.mxu0 0.0
    %259 = vmatprep.subr.mxu0 0.0
    %260 = vmatpush1.msra.mxu0 0.0
    %261 = vmatprep.subr.mxu0 0.0
    %262 = vmatpush1.msra.mxu0 0.0
    %263 = vmatprep.subr.mxu0 0.0
    %264 = vmatpush1.msra.mxu0 0.0
    %265 = vmatprep.subr.mxu0 0.0
    %266 = vmatpush1.msra.mxu0 0.0
    %267 = vmatprep.subr.mxu0 0.0
    %268 = vmatpush1.msra.mxu0 0.0
    %269 = vmatprep.subr.mxu0 0.0
    %270 = vmatpush1.msra.mxu0 0.0
    %271 = vmatprep.subr.mxu0 0.0
    %272 = vmatpush1.msra.mxu0 0.0
    %273 = vmatprep.subr.mxu0 0.0
    %274 = vmatpush1.msra.mxu0 0.0
    %275 = vmatprep.subr.mxu0 0.0
    %276 = vmatpush1.msra.mxu0 0.0
    %277 = vmatprep.subr.mxu0 0.0
    %278 = vmatpush1.msra.mxu0 0.0
    %279 = vmatprep.subr.mxu0 0.0
    %280 = vmatpush1.msra.mxu0 0.0
    %281 = vmatprep.subr.mxu0 0.0
    %282 = vmatpush1.msra.mxu0 0.0
    %283 = vmatprep.subr.mxu0 0.0
    %284 = vmatpush1.msra.mxu0 0.0
    %285 = vmatprep.subr.mxu0 0.0
    %286 = vmatpush1.msra.mxu0 0.0
    %287 = vmatprep.mubr.f32.mxu0 0.0
    %288 = vmatmul.mubr.f32.gmra.mrb[0].mxu0 %v221
    %v289 = vpop.f32.mrb[0].mxu0
    %v290 = vadd.f32 %v217, %v289
    %v291 = vpop.f32.mrb[0].mxu0
    %292 = vdwg.mxu0
    %v293 = vlaneseq
    %v294 = vshrl.u32 %v293, 7
    %v295 = vsub.s32 0, %v294
    %v296 = vrot.slane %v103, %v295
    %v297 = vadd.f32 %v290, %v296
    %v298 = vxor.u32 %v297, 2147483648
    %v299 = vmul.f32 %v298, 1.442695
    %v300 = vpow.pop %v299
    %v301 = vadd.f32 %v300, 1.0
    %v302 = vrcp.pop %v301
    %v303 = vmul.f32 1.0, %v302
    %v304 = vtanh.pop %v297
    %v305 = vmul.f32 %v303, 0.0
    %307 = vrot.lane.b32.xlu0 %v304, 64
    %v308 = vpop.permute.xlu0 %307
    %v310 = vmul.f32 %v303, %v308
    %312 = vrot.lane.b32.xlu0 %v310, 32
    %v313 = vpop.permute.xlu0 %312
    %v315 = vadd.f32 %v305, %v313
    %v316 = vtanh.pop %v315
    %318 = vrot.lane.b32.xlu0 %v316, 64
    %v319 = vpop.permute.xlu0 %318
    %v321 = vmul.f32 %v303, %v319
    %322 = vmatprep.subr.mxu0 0.0
    %323 = vmatpush1.msra.mxu0 %v99
    %324 = vmatprep.subr.mxu0 0.0
    %325 = vmatpush1.msra.mxu0 %v100
    %326 = vmatprep.subr.mxu0 0.0
    %327 = vmatpush1.msra.mxu0 %v101
    %328 = vmatprep.subr.mxu0 0.0
    %329 = vmatpush1.msra.mxu0 %v102
    %330 = vmatprep.subr.mxu0 0.0
    %331 = vmatpush1.msra.mxu0 0.0
    %332 = vmatprep.subr.mxu0 0.0
    %333 = vmatpush1.msra.mxu0 0.0
    %334 = vmatprep.subr.mxu0 0.0
    %335 = vmatpush1.msra.mxu0 0.0
    %336 = vmatprep.subr.mxu0 0.0
    %337 = vmatpush1.msra.mxu0 0.0
    %338 = vmatprep.subr.mxu0 0.0
    %339 = vmatpush1.msra.mxu0 0.0
    %340 = vmatprep.subr.mxu0 0.0
    %341 = vmatpush1.msra.mxu0 0.0
    %342 = vmatprep.subr.mxu0 0.0
    %343 = vmatpush1.msra.mxu0 0.0
    %344 = vmatprep.subr.mxu0 0.0
    %345 = vmatpush1.msra.mxu0 0.0
    %346 = vmatprep.subr.mxu0 0.0
    %347 = vmatpush1.msra.mxu0 0.0
    %348 = vmatprep.subr.mxu0 0.0
    %349 = vmatpush1.msra.mxu0 0.0
    %350 = vmatprep.subr.mxu0 0.0
    %351 = vmatpush1.msra.mxu0 0.0
    %352 = vmatprep.subr.mxu0 0.0
    %353 = vmatpush1.msra.mxu0 0.0
    %354 = vmatprep.subr.mxu0 0.0
    %355 = vmatpush1.msra.mxu0 0.0
    %356 = vmatprep.subr.mxu0 0.0
    %357 = vmatpush1.msra.mxu0 0.0
    %358 = vmatprep.subr.mxu0 0.0
    %359 = vmatpush1.msra.mxu0 0.0
    %360 = vmatprep.subr.mxu0 0.0
    %361 = vmatpush1.msra.mxu0 0.0
    %362 = vmatprep.subr.mxu0 0.0
    %363 = vmatpush1.msra.mxu0 0.0
    %364 = vmatprep.subr.mxu0 0.0
    %365 = vmatpush1.msra.mxu0 0.0
    %366 = vmatprep.subr.mxu0 0.0
    %367 = vmatpush1.msra.mxu0 0.0
    %368 = vmatprep.subr.mxu0 0.0
    %369 = vmatpush1.msra.mxu0 0.0
    %370 = vmatprep.subr.mxu0 0.0
    %371 = vmatpush1.msra.mxu0 0.0
    %372 = vmatprep.subr.mxu0 0.0
    %373 = vmatpush1.msra.mxu0 0.0
    %374 = vmatprep.subr.mxu0 0.0
    %375 = vmatpush1.msra.mxu0 0.0
    %376 = vmatprep.subr.mxu0 0.0
    %377 = vmatpush1.msra.mxu0 0.0
    %378 = vmatprep.subr.mxu0 0.0
    %379 = vmatpush1.msra.mxu0 0.0
    %380 = vmatprep.subr.mxu0 0.0
    %381 = vmatpush1.msra.mxu0 0.0
    %382 = vmatprep.subr.mxu0 0.0
    %383 = vmatpush1.msra.mxu0 0.0
    %384 = vmatprep.subr.mxu0 0.0
    %385 = vmatpush1.msra.mxu0 0.0
    %386 = vmatprep.mubr.f32.mxu0 0.0
    %387 = vmatmul.mubr.f32.gmra.mrb[0].mxu0 %v148
    %v388 = vpop.f32.mrb[0].mxu0
    %v389 = vadd.f32 0.0, %v388
    %v390 = vpop.f32.mrb[0].mxu0
    %391 = vdwg.mxu0
    %393 = vrot.lane.b32.xlu0 %v321, 32
    %v394 = vpop.permute.xlu0 %393
    %v395 = vsel %vm146, %v394, 0
    %397 = vmatprep.subr.mxu0 0.0
    %398 = vmatpush1.msra.mxu0 %v95
    %399 = vmatprep.subr.mxu0 0.0
    %400 = vmatpush1.msra.mxu0 %v96
    %401 = vmatprep.subr.mxu0 0.0
    %402 = vmatpush1.msra.mxu0 %v97
    %403 = vmatprep.subr.mxu0 0.0
    %404 = vmatpush1.msra.mxu0 %v98
    %405 = vmatprep.subr.mxu0 0.0
    %406 = vmatpush1.msra.mxu0 0.0
    %407 = vmatprep.subr.mxu0 0.0
    %408 = vmatpush1.msra.mxu0 0.0
    %409 = vmatprep.subr.mxu0 0.0
    %410 = vmatpush1.msra.mxu0 0.0
    %411 = vmatprep.subr.mxu0 0.0
    %412 = vmatpush1.msra.mxu0 0.0
    %413 = vmatprep.subr.mxu0 0.0
    %414 = vmatpush1.msra.mxu0 0.0
    %415 = vmatprep.subr.mxu0 0.0
    %416 = vmatpush1.msra.mxu0 0.0
    %417 = vmatprep.subr.mxu0 0.0
    %418 = vmatpush1.msra.mxu0 0.0
    %419 = vmatprep.subr.mxu0 0.0
    %420 = vmatpush1.msra.mxu0 0.0
    %421 = vmatprep.subr.mxu0 0.0
    %422 = vmatpush1.msra.mxu0 0.0
    %423 = vmatprep.subr.mxu0 0.0
    %424 = vmatpush1.msra.mxu0 0.0
    %425 = vmatprep.subr.mxu0 0.0
    %426 = vmatpush1.msra.mxu0 0.0
    %427 = vmatprep.subr.mxu0 0.0
    %428 = vmatpush1.msra.mxu0 0.0
    %429 = vmatprep.subr.mxu0 0.0
    %430 = vmatpush1.msra.mxu0 0.0
    %431 = vmatprep.subr.mxu0 0.0
    %432 = vmatpush1.msra.mxu0 0.0
    %433 = vmatprep.subr.mxu0 0.0
    %434 = vmatpush1.msra.mxu0 0.0
    %435 = vmatprep.subr.mxu0 0.0
    %436 = vmatpush1.msra.mxu0 0.0
    %437 = vmatprep.subr.mxu0 0.0
    %438 = vmatpush1.msra.mxu0 0.0
    %439 = vmatprep.subr.mxu0 0.0
    %440 = vmatpush1.msra.mxu0 0.0
    %441 = vmatprep.subr.mxu0 0.0
    %442 = vmatpush1.msra.mxu0 0.0
    %443 = vmatprep.subr.mxu0 0.0
    %444 = vmatpush1.msra.mxu0 0.0
    %445 = vmatprep.subr.mxu0 0.0
    %446 = vmatpush1.msra.mxu0 0.0
    %447 = vmatprep.subr.mxu0 0.0
    %448 = vmatpush1.msra.mxu0 0.0
    %449 = vmatprep.subr.mxu0 0.0
    %450 = vmatpush1.msra.mxu0 0.0
    %451 = vmatprep.subr.mxu0 0.0
    %452 = vmatpush1.msra.mxu0 0.0
    %453 = vmatprep.subr.mxu0 0.0
    %454 = vmatpush1.msra.mxu0 0.0
    %455 = vmatprep.subr.mxu0 0.0
    %456 = vmatpush1.msra.mxu0 0.0
    %457 = vmatprep.subr.mxu0 0.0
    %458 = vmatpush1.msra.mxu0 0.0
    %459 = vmatprep.subr.mxu0 0.0
    %460 = vmatpush1.msra.mxu0 0.0
    %461 = vmatprep.mubr.f32.mxu0 0.0
    %462 = vmatmul.mubr.f32.gmra.mrb[0].mxu0 %v395
    %v463 = vpop.f32.mrb[0].mxu0
    %v464 = vadd.f32 %v389, %v463
    %v465 = vpop.f32.mrb[0].mxu0
    %466 = vdwg.mxu0
    %v467 = vlaneseq
    %v468 = vshrl.u32 %v467, 7
    %v469 = vsub.s32 0, %v468
    %v470 = vrot.slane %v104, %v469
    %v471 = vadd.f32 %v464, %v470
    %v472 = vxor.u32 %v471, 2147483648
    %v473 = vmul.f32 %v472, 1.442695
    %v474 = vpow.pop %v473
    %v475 = vadd.f32 %v474, 1.0
    %v476 = vrcp.pop %v475
    %v477 = vmul.f32 1.0, %v476
    %v478 = vtanh.pop %v471
    %v479 = vmul.f32 %v477, 0.0
    %481 = vrot.lane.b32.xlu0 %v478, 64
    %v482 = vpop.permute.xlu0 %481
    %v484 = vmul.f32 %v477, %v482
    %486 = vrot.lane.b32.xlu0 %v484, 32
    %v487 = vpop.permute.xlu0 %486
    %v489 = vadd.f32 %v479, %v487
    %v490 = vtanh.pop %v489
    %492 = vrot.lane.b32.xlu0 %v490, 64
    %v493 = vpop.permute.xlu0 %492
    %v495 = vmul.f32 %v477, %v493
    %v496 = vld [vmem:[#allocation5] sm:$0xff]
    %498 = vrot.lane.b32.xlu0 %v495, 32
    %v499 = vpop.permute.xlu0 %498
    %v501 = vmul.f32 %v496, %v499
    %v502 = vmax.f32 %v501, -1e+30
    %s503 = scalar_lea.vmem [#allocation2], 8
    %v504 = vld [vmem:[%s503] sm:$0xff]
    %505 = vmatprep.subr.mxu0 0.0
    %506 = vmatpush1.msra.mxu0 %v91
    %507 = vmatprep.subr.mxu0 0.0
    %508 = vmatpush1.msra.mxu0 %v92
    %509 = vmatprep.subr.mxu0 0.0
    %510 = vmatpush1.msra.mxu0 %v93
    %511 = vmatprep.subr.mxu0 0.0
    %512 = vmatpush1.msra.mxu0 %v94
    %513 = vmatprep.subr.mxu0 0.0
    %514 = vmatpush1.msra.mxu0 0.0
    %515 = vmatprep.subr.mxu0 0.0
    %516 = vmatpush1.msra.mxu0 0.0
    %517 = vmatprep.subr.mxu0 0.0
    %518 = vmatpush1.msra.mxu0 0.0
    %519 = vmatprep.subr.mxu0 0.0
    %520 = vmatpush1.msra.mxu0 0.0
    %521 = vmatprep.subr.mxu0 0.0
    %522 = vmatpush1.msra.mxu0 0.0
    %523 = vmatprep.subr.mxu0 0.0
    %524 = vmatpush1.msra.mxu0 0.0
    %525 = vmatprep.subr.mxu0 0.0
    %526 = vmatpush1.msra.mxu0 0.0
    %527 = vmatprep.subr.mxu0 0.0
    %528 = vmatpush1.msra.mxu0 0.0
    %529 = vmatprep.subr.mxu0 0.0
    %530 = vmatpush1.msra.mxu0 0.0
    %531 = vmatprep.subr.mxu0 0.0
    %532 = vmatpush1.msra.mxu0 0.0
    %533 = vmatprep.subr.mxu0 0.0
    %534 = vmatpush1.msra.mxu0 0.0
    %535 = vmatprep.subr.mxu0 0.0
    %536 = vmatpush1.msra.mxu0 0.0
    %537 = vmatprep.subr.mxu0 0.0
    %538 = vmatpush1.msra.mxu0 0.0
    %539 = vmatprep.subr.mxu0 0.0
    %540 = vmatpush1.msra.mxu0 0.0
    %541 = vmatprep.subr.mxu0 0.0
    %542 = vmatpush1.msra.mxu0 0.0
    %543 = vmatprep.subr.mxu0 0.0
    %544 = vmatpush1.msra.mxu0 0.0
    %545 = vmatprep.subr.mxu0 0.0
    %546 = vmatpush1.msra.mxu0 0.0
    %547 = vmatprep.subr.mxu0 0.0
    %548 = vmatpush1.msra.mxu0 0.0
    %549 = vmatprep.subr.mxu0 0.0
    %550 = vmatpush1.msra.mxu0 0.0
    %551 = vmatprep.subr.mxu0 0.0
    %552 = vmatpush1.msra.mxu0 0.0
    %553 = vmatprep.subr.mxu0 0.0
    %554 = vmatpush1.msra.mxu0 0.0
    %555 = vmatprep.subr.mxu0 0.0
    %556 = vmatpush1.msra.mxu0 0.0
    %557 = vmatprep.subr.mxu0 0.0
    %558 = vmatpush1.msra.mxu0 0.0
    %559 = vmatprep.subr.mxu0 0.0
    %560 = vmatpush1.msra.mxu0 0.0
    %561 = vmatprep.subr.mxu0 0.0
    %562 = vmatpush1.msra.mxu0 0.0
    %563 = vmatprep.subr.mxu0 0.0
    %564 = vmatpush1.msra.mxu0 0.0
    %565 = vmatprep.subr.mxu0 0.0
    %566 = vmatpush1.msra.mxu0 0.0
    %567 = vmatprep.subr.mxu0 0.0
    %568 = vmatpush1.msra.mxu0 0.0
    %569 = vmatprep.mubr.f32.mxu0 0.0
    %570 = vmatmul.mubr.f32.gmra.mrb[0].mxu0 %v395
    %v571 = vpop.f32.mrb[0].mxu0
    %v572 = vadd.f32 0.0, %v571
    %v573 = vpop.f32.mrb[0].mxu0
    %574 = vdwg.mxu0
    %v576 = vsel %vm146, %v504, 0
    %578 = vmatprep.subr.mxu0 0.0
    %579 = vmatpush1.msra.mxu0 %v87
    %580 = vmatprep.subr.mxu0 0.0
    %581 = vmatpush1.msra.mxu0 %v88
    %582 = vmatprep.subr.mxu0 0.0
    %583 = vmatpush1.msra.mxu0 %v89
    %584 = vmatprep.subr.mxu0 0.0
    %585 = vmatpush1.msra.mxu0 %v90
    %586 = vmatprep.subr.mxu0 0.0
    %587 = vmatpush1.msra.mxu0 0.0
    %588 = vmatprep.subr.mxu0 0.0
    %589 = vmatpush1.msra.mxu0 0.0
    %590 = vmatprep.subr.mxu0 0.0
    %591 = vmatpush1.msra.mxu0 0.0
    %592 = vmatprep.subr.mxu0 0.0
    %593 = vmatpush1.msra.mxu0 0.0
    %594 = vmatprep.subr.mxu0 0.0
    %595 = vmatpush1.msra.mxu0 0.0
    %596 = vmatprep.subr.mxu0 0.0
    %597 = vmatpush1.msra.mxu0 0.0
    %598 = vmatprep.subr.mxu0 0.0
    %599 = vmatpush1.msra.mxu0 0.0
    %600 = vmatprep.subr.mxu0 0.0
    %601 = vmatpush1.msra.mxu0 0.0
    %602 = vmatprep.subr.mxu0 0.0
    %603 = vmatpush1.msra.mxu0 0.0
    %604 = vmatprep.subr.mxu0 0.0
    %605 = vmatpush1.msra.mxu0 0.0
    %606 = vmatprep.subr.mxu0 0.0
    %607 = vmatpush1.msra.mxu0 0.0
    %608 = vmatprep.subr.mxu0 0.0
    %609 = vmatpush1.msra.mxu0 0.0
    %610 = vmatprep.subr.mxu0 0.0
    %611 = vmatpush1.msra.mxu0 0.0
    %612 = vmatprep.subr.mxu0 0.0
    %613 = vmatpush1.msra.mxu0 0.0
    %614 = vmatprep.subr.mxu0 0.0
    %615 = vmatpush1.msra.mxu0 0.0
    %616 = vmatprep.subr.mxu0 0.0
    %617 = vmatpush1.msra.mxu0 0.0
    %618 = vmatprep.subr.mxu0 0.0
    %619 = vmatpush1.msra.mxu0 0.0
    %620 = vmatprep.subr.mxu0 0.0
    %621 = vmatpush1.msra.mxu0 0.0
    %622 = vmatprep.subr.mxu0 0.0
    %623 = vmatpush1.msra.mxu0 0.0
    %624 = vmatprep.subr.mxu0 0.0
    %625 = vmatpush1.msra.mxu0 0.0
    %626 = vmatprep.subr.mxu0 0.0
    %627 = vmatpush1.msra.mxu0 0.0
    %628 = vmatprep.subr.mxu0 0.0
    %629 = vmatpush1.msra.mxu0 0.0
    %630 = vmatprep.subr.mxu0 0.0
    %631 = vmatpush1.msra.mxu0 0.0
    %632 = vmatprep.subr.mxu0 0.0
    %633 = vmatpush1.msra.mxu0 0.0
    %634 = vmatprep.subr.mxu0 0.0
    %635 = vmatpush1.msra.mxu0 0.0
    %636 = vmatprep.subr.mxu0 0.0
    %637 = vmatpush1.msra.mxu0 0.0
    %638 = vmatprep.subr.mxu0 0.0
    %639 = vmatpush1.msra.mxu0 0.0
    %640 = vmatprep.subr.mxu0 0.0
    %641 = vmatpush1.msra.mxu0 0.0
    %642 = vmatprep.mubr.f32.mxu0 0.0
    %643 = vmatmul.mubr.f32.gmra.mrb[0].mxu0 %v576
    %v644 = vpop.f32.mrb[0].mxu0
    %v645 = vadd.f32 %v572, %v644
    %v646 = vpop.f32.mrb[0].mxu0
    %647 = vdwg.mxu0
    %v648 = vadd.f32 %v645, %v296
    %v649 = vxor.u32 %v648, 2147483648
    %v650 = vmul.f32 %v649, 1.442695
    %v651 = vpow.pop %v650
    %v652 = vadd.f32 %v651, 1.0
    %v653 = vrcp.pop %v652
    %v654 = vmul.f32 1.0, %v653
    %v655 = vtanh.pop %v648
    %v656 = vmul.f32 %v654, %v315
    %658 = vrot.lane.b32.xlu0 %v655, 64
    %v659 = vpop.permute.xlu0 %658
    %v661 = vmul.f32 %v654, %v659
    %663 = vrot.lane.b32.xlu0 %v661, 32
    %v664 = vpop.permute.xlu0 %663
    %v666 = vadd.f32 %v656, %v664
    %v667 = vtanh.pop %v666
    %669 = vrot.lane.b32.xlu0 %v667, 64
    %v670 = vpop.permute.xlu0 %669
    %v672 = vmul.f32 %v654, %v670
    %v673 = vsel %vm146, %v499, 0
    %675 = vmatprep.subr.mxu0 0.0
    %676 = vmatpush1.msra.mxu0 %v99
    %677 = vmatprep.subr.mxu0 0.0
    %678 = vmatpush1.msra.mxu0 %v100
    %679 = vmatprep.subr.mxu0 0.0
    %680 = vmatpush1.msra.mxu0 %v101
    %681 = vmatprep.subr.mxu0 0.0
    %682 = vmatpush1.msra.mxu0 %v102
    %683 = vmatprep.subr.mxu0 0.0
    %684 = vmatpush1.msra.mxu0 0.0
    %685 = vmatprep.subr.mxu0 0.0
    %686 = vmatpush1.msra.mxu0 0.0
    %687 = vmatprep.subr.mxu0 0.0
    %688 = vmatpush1.msra.mxu0 0.0
    %689 = vmatprep.subr.mxu0 0.0
    %690 = vmatpush1.msra.mxu0 0.0
    %691 = vmatprep.subr.mxu0 0.0
    %692 = vmatpush1.msra.mxu0 0.0
    %693 = vmatprep.subr.mxu0 0.0
    %694 = vmatpush1.msra.mxu0 0.0
    %695 = vmatprep.subr.mxu0 0.0
    %696 = vmatpush1.msra.mxu0 0.0
    %697 = vmatprep.subr.mxu0 0.0
    %698 = vmatpush1.msra.mxu0 0.0
    %699 = vmatprep.subr.mxu0 0.0
    %700 = vmatpush1.msra.mxu0 0.0
    %701 = vmatprep.subr.mxu0 0.0
    %702 = vmatpush1.msra.mxu0 0.0
    %703 = vmatprep.subr.mxu0 0.0
    %704 = vmatpush1.msra.mxu0 0.0
    %705 = vmatprep.subr.mxu0 0.0
    %706 = vmatpush1.msra.mxu0 0.0
    %707 = vmatprep.subr.mxu0 0.0
    %708 = vmatpush1.msra.mxu0 0.0
    %709 = vmatprep.subr.mxu0 0.0
    %710 = vmatpush1.msra.mxu0 0.0
    %711 = vmatprep.subr.mxu0 0.0
    %712 = vmatpush1.msra.mxu0 0.0
    %713 = vmatprep.subr.mxu0 0.0
    %714 = vmatpush1.msra.mxu0 0.0
    %715 = vmatprep.subr.mxu0 0.0
    %716 = vmatpush1.msra.mxu0 0.0
    %717 = vmatprep.subr.mxu0 0.0
    %718 = vmatpush1.msra.mxu0 0.0
    %719 = vmatprep.subr.mxu0 0.0
    %720 = vmatpush1.msra.mxu0 0.0
    %721 = vmatprep.subr.mxu0 0.0
    %722 = vmatpush1.msra.mxu0 0.0
    %723 = vmatprep.subr.mxu0 0.0
    %724 = vmatpush1.msra.mxu0 0.0
    %725 = vmatprep.subr.mxu0 0.0
    %726 = vmatpush1.msra.mxu0 0.0
    %727 = vmatprep.subr.mxu0 0.0
    %728 = vmatpush1.msra.mxu0 0.0
    %729 = vmatprep.subr.mxu0 0.0
    %730 = vmatpush1.msra.mxu0 0.0
    %731 = vmatprep.subr.mxu0 0.0
    %732 = vmatpush1.msra.mxu0 0.0
    %733 = vmatprep.subr.mxu0 0.0
    %734 = vmatpush1.msra.mxu0 0.0
    %735 = vmatprep.subr.mxu0 0.0
    %736 = vmatpush1.msra.mxu0 0.0
    %737 = vmatprep.subr.mxu0 0.0
    %738 = vmatpush1.msra.mxu0 0.0
    %739 = vmatprep.mubr.f32.mxu0 0.0
    %740 = vmatmul.mubr.f32.gmra.mrb[0].mxu0 %v673
    %v741 = vpop.f32.mrb[0].mxu0
    %v742 = vadd.f32 0.0, %v741
    %v743 = vpop.f32.mrb[0].mxu0
    %744 = vdwg.mxu0
    %746 = vrot.lane.b32.xlu0 %v672, 32
    %v747 = vpop.permute.xlu0 %746
    %v748 = vsel %vm146, %v747, 0
    %750 = vmatprep.subr.mxu0 0.0
    %751 = vmatpush1.msra.mxu0 %v95
    %752 = vmatprep.subr.mxu0 0.0
    %753 = vmatpush1.msra.mxu0 %v96
    %754 = vmatprep.subr.mxu0 0.0
    %755 = vmatpush1.msra.mxu0 %v97
    %756 = vmatprep.subr.mxu0 0.0
    %757 = vmatpush1.msra.mxu0 %v98
    %758 = vmatprep.subr.mxu0 0.0
    %759 = vmatpush1.msra.mxu0 0.0
    %760 = vmatprep.subr.mxu0 0.0
    %761 = vmatpush1.msra.mxu0 0.0
    %762 = vmatprep.subr.mxu0 0.0
    %763 = vmatpush1.msra.mxu0 0.0
    %764 = vmatprep.subr.mxu0 0.0
    %765 = vmatpush1.msra.mxu0 0.0
    %766 = vmatprep.subr.mxu0 0.0
    %767 = vmatpush1.msra.mxu0 0.0
    %768 = vmatprep.subr.mxu0 0.0
    %769 = vmatpush1.msra.mxu0 0.0
    %770 = vmatprep.subr.mxu0 0.0
    %771 = vmatpush1.msra.mxu0 0.0
    %772 = vmatprep.subr.mxu0 0.0
    %773 = vmatpush1.msra.mxu0 0.0
    %774 = vmatprep.subr.mxu0 0.0
    %775 = vmatpush1.msra.mxu0 0.0
    %776 = vmatprep.subr.mxu0 0.0
    %777 = vmatpush1.msra.mxu0 0.0
    %778 = vmatprep.subr.mxu0 0.0
    %779 = vmatpush1.msra.mxu0 0.0
    %780 = vmatprep.subr.mxu0 0.0
    %781 = vmatpush1.msra.mxu0 0.0
    %782 = vmatprep.subr.mxu0 0.0
    %783 = vmatpush1.msra.mxu0 0.0
    %784 = vmatprep.subr.mxu0 0.0
    %785 = vmatpush1.msra.mxu0 0.0
    %786 = vmatprep.subr.mxu0 0.0
    %787 = vmatpush1.msra.mxu0 0.0
    %788 = vmatprep.subr.mxu0 0.0
    %789 = vmatpush1.msra.mxu0 0.0
    %790 = vmatprep.subr.mxu0 0.0
    %791 = vmatpush1.msra.mxu0 0.0
    %792 = vmatprep.subr.mxu0 0.0
    %793 = vmatpush1.msra.mxu0 0.0
    %794 = vmatprep.subr.mxu0 0.0
    %795 = vmatpush1.msra.mxu0 0.0
    %796 = vmatprep.subr.mxu0 0.0
    %797 = vmatpush1.msra.mxu0 0.0
    %798 = vmatprep.subr.mxu0 0.0
    %799 = vmatpush1.msra.mxu0 0.0
    %800 = vmatprep.subr.mxu0 0.0
    %801 = vmatpush1.msra.mxu0 0.0
    %802 = vmatprep.subr.mxu0 0.0
    %803 = vmatpush1.msra.mxu0 0.0
    %804 = vmatprep.subr.mxu0 0.0
    %805 = vmatpush1.msra.mxu0 0.0
    %806 = vmatprep.subr.mxu0 0.0
    %807 = vmatpush1.msra.mxu0 0.0
    %808 = vmatprep.subr.mxu0 0.0
    %809 = vmatpush1.msra.mxu0 0.0
    %810 = vmatprep.subr.mxu0 0.0
    %811 = vmatpush1.msra.mxu0 0.0
    %812 = vmatprep.subr.mxu0 0.0
    %813 = vmatpush1.msra.mxu0 0.0
    %814 = vmatprep.mubr.f32.mxu0 0.0
    %815 = vmatmul.mubr.f32.gmra.mrb[0].mxu0 %v748
    %v816 = vpop.f32.mrb[0].mxu0
    %v817 = vadd.f32 %v742, %v816
    %v818 = vpop.f32.mrb[0].mxu0
    %819 = vdwg.mxu0
    %v820 = vadd.f32 %v817, %v470
    %v821 = vxor.u32 %v820, 2147483648
    %v822 = vmul.f32 %v821, 1.442695
    %v823 = vpow.pop %v822
    %v824 = vadd.f32 %v823, 1.0
    %v825 = vrcp.pop %v824
    %v826 = vmul.f32 1.0, %v825
    %v827 = vtanh.pop %v820
    %v828 = vmul.f32 %v826, %v489
    %830 = vrot.lane.b32.xlu0 %v827, 64
    %v831 = vpop.permute.xlu0 %830
    %v833 = vmul.f32 %v826, %v831
    %835 = vrot.lane.b32.xlu0 %v833, 32
    %v836 = vpop.permute.xlu0 %835
    %v838 = vadd.f32 %v828, %v836
    %v839 = vtanh.pop %v838
    %841 = vrot.lane.b32.xlu0 %v839, 64
    %v842 = vpop.permute.xlu0 %841
    %v844 = vmul.f32 %v826, %v842
    %s845 = scalar_lea.vmem [#allocation5], 8
    %v846 = vld [vmem:[%s845] sm:$0xff]
    %848 = vrot.lane.b32.xlu0 %v844, 32
    %v849 = vpop.permute.xlu0 %848
    %v851 = vmul.f32 %v846, %v849
    %v852 = vmax.f32 %v502, %v851
    %s853 = scalar_lea.vmem [#allocation2], 16
    %v854 = vld [vmem:[%s853] sm:$0xff]
    %855 = vmatprep.subr.mxu0 0.0
    %856 = vmatpush1.msra.mxu0 %v91
    %857 = vmatprep.subr.mxu0 0.0
    %858 = vmatpush1.msra.mxu0 %v92
    %859 = vmatprep.subr.mxu0 0.0
    %860 = vmatpush1.msra.mxu0 %v93
    %861 = vmatprep.subr.mxu0 0.0
    %862 = vmatpush1.msra.mxu0 %v94
    %863 = vmatprep.subr.mxu0 0.0
    %864 = vmatpush1.msra.mxu0 0.0
    %865 = vmatprep.subr.mxu0 0.0
    %866 = vmatpush1.msra.mxu0 0.0
    %867 = vmatprep.subr.mxu0 0.0
    %868 = vmatpush1.msra.mxu0 0.0
    %869 = vmatprep.subr.mxu0 0.0
    %870 = vmatpush1.msra.mxu0 0.0
    %871 = vmatprep.subr.mxu0 0.0
    %872 = vmatpush1.msra.mxu0 0.0
    %873 = vmatprep.subr.mxu0 0.0
    %874 = vmatpush1.msra.mxu0 0.0
    %875 = vmatprep.subr.mxu0 0.0
    %876 = vmatpush1.msra.mxu0 0.0
    %877 = vmatprep.subr.mxu0 0.0
    %878 = vmatpush1.msra.mxu0 0.0
    %879 = vmatprep.subr.mxu0 0.0
    %880 = vmatpush1.msra.mxu0 0.0
    %881 = vmatprep.subr.mxu0 0.0
    %882 = vmatpush1.msra.mxu0 0.0
    %883 = vmatprep.subr.mxu0 0.0
    %884 = vmatpush1.msra.mxu0 0.0
    %885 = vmatprep.subr.mxu0 0.0
    %886 = vmatpush1.msra.mxu0 0.0
    %887 = vmatprep.subr.mxu0 0.0
    %888 = vmatpush1.msra.mxu0 0.0
    %889 = vmatprep.subr.mxu0 0.0
    %890 = vmatpush1.msra.mxu0 0.0
    %891 = vmatprep.subr.mxu0 0.0
    %892 = vmatpush1.msra.mxu0 0.0
    %893 = vmatprep.subr.mxu0 0.0
    %894 = vmatpush1.msra.mxu0 0.0
    %895 = vmatprep.subr.mxu0 0.0
    %896 = vmatpush1.msra.mxu0 0.0
    %897 = vmatprep.subr.mxu0 0.0
    %898 = vmatpush1.msra.mxu0 0.0
    %899 = vmatprep.subr.mxu0 0.0
    %900 = vmatpush1.msra.mxu0 0.0
    %901 = vmatprep.subr.mxu0 0.0
    %902 = vmatpush1.msra.mxu0 0.0
    %903 = vmatprep.subr.mxu0 0.0
    %904 = vmatpush1.msra.mxu0 0.0
    %905 = vmatprep.subr.mxu0 0.0
    %906 = vmatpush1.msra.mxu0 0.0
    %907 = vmatprep.subr.mxu0 0.0
    %908 = vmatpush1.msra.mxu0 0.0
    %909 = vmatprep.subr.mxu0 0.0
    %910 = vmatpush1.msra.mxu0 0.0
    %911 = vmatprep.subr.mxu0 0.0
    %912 = vmatpush1.msra.mxu0 0.0
    %913 = vmatprep.subr.mxu0 0.0
    %914 = vmatpush1.msra.mxu0 0.0
    %915 = vmatprep.subr.mxu0 0.0
    %916 = vmatpush1.msra.mxu0 0.0
    %917 = vmatprep.subr.mxu0 0.0
    %918 = vmatpush1.msra.mxu0 0.0
    %919 = vmatprep.mubr.f32.mxu0 0.0
    %920 = vmatmul.mubr.f32.gmra.mrb[0].mxu0 %v748
    %v921 = vpop.f32.mrb[0].mxu0
    %v922 = vadd.f32 0.0, %v921
    %v923 = vpop.f32.mrb[0].mxu0
    %924 = vdwg.mxu0
    %v926 = vsel %vm146, %v854, 0
    %928 = vmatprep.subr.mxu0 0.0
    %929 = vmatpush1.msra.mxu0 %v87
    %930 = vmatprep.subr.mxu0 0.0
    %931 = vmatpush1.msra.mxu0 %v88
    %932 = vmatprep.subr.mxu0 0.0
    %933 = vmatpush1.msra.mxu0 %v89
    %934 = vmatprep.subr.mxu0 0.0
    %935 = vmatpush1.msra.mxu0 %v90
    %936 = vmatprep.subr.mxu0 0.0
    %937 = vmatpush1.msra.mxu0 0.0
    %938 = vmatprep.subr.mxu0 0.0
    %939 = vmatpush1.msra.mxu0 0.0
    %940 = vmatprep.subr.mxu0 0.0
    %941 = vmatpush1.msra.mxu0 0.0
    %942 = vmatprep.subr.mxu0 0.0
    %943 = vmatpush1.msra.mxu0 0.0
    %944 = vmatprep.subr.mxu0 0.0
    %945 = vmatpush1.msra.mxu0 0.0
    %946 = vmatprep.subr.mxu0 0.0
    %947 = vmatpush1.msra.mxu0 0.0
    %948 = vmatprep.subr.mxu0 0.0
    %949 = vmatpush1.msra.mxu0 0.0
    %950 = vmatprep.subr.mxu0 0.0
    %951 = vmatpush1.msra.mxu0 0.0
    %952 = vmatprep.subr.mxu0 0.0
    %953 = vmatpush1.msra.mxu0 0.0
    %954 = vmatprep.subr.mxu0 0.0
    %955 = vmatpush1.msra.mxu0 0.0
    %956 = vmatprep.subr.mxu0 0.0
    %957 = vmatpush1.msra.mxu0 0.0
    %958 = vmatprep.subr.mxu0 0.0
    %959 = vmatpush1.msra.mxu0 0.0
    %960 = vmatprep.subr.mxu0 0.0
    %961 = vmatpush1.msra.mxu0 0.0
    %962 = vmatprep.subr.mxu0 0.0
    %963 = vmatpush1.msra.mxu0 0.0
    %964 = vmatprep.subr.mxu0 0.0
    %965 = vmatpush1.msra.mxu0 0.0
    %966 = vmatprep.subr.mxu0 0.0
    %967 = vmatpush1.msra.mxu0 0.0
    %968 = vmatprep.subr.mxu0 0.0
    %969 = vmatpush1.msra.mxu0 0.0
    %970 = vmatprep.subr.mxu0 0.0
    %971 = vmatpush1.msra.mxu0 0.0
    %972 = vmatprep.subr.mxu0 0.0
    %973 = vmatpush1.msra.mxu0 0.0
    %974 = vmatprep.subr.mxu0 0.0
    %975 = vmatpush1.msra.mxu0 0.0
    %976 = vmatprep.subr.mxu0 0.0
    %977 = vmatpush1.msra.mxu0 0.0
    %978 = vmatprep.subr.mxu0 0.0
    %979 = vmatpush1.msra.mxu0 0.0
    %980 = vmatprep.subr.mxu0 0.0
    %981 = vmatpush1.msra.mxu0 0.0
    %982 = vmatprep.subr.mxu0 0.0
    %983 = vmatpush1.msra.mxu0 0.0
    %984 = vmatprep.subr.mxu0 0.0
    %985 = vmatpush1.msra.mxu0 0.0
    %986 = vmatprep.subr.mxu0 0.0
    %987 = vmatpush1.msra.mxu0 0.0
    %988 = vmatprep.subr.mxu0 0.0
    %989 = vmatpush1.msra.mxu0 0.0
    %990 = vmatprep.subr.mxu0 0.0
    %991 = vmatpush1.msra.mxu0 0.0
    %992 = vmatprep.mubr.f32.mxu0 0.0
    %993 = vmatmul.mubr.f32.gmra.mrb[0].mxu0 %v926
    %v994 = vpop.f32.mrb[0].mxu0
    %v995 = vadd.f32 %v922, %v994
    %v996 = vpop.f32.mrb[0].mxu0
    %997 = vdwg.mxu0
    %v998 = vadd.f32 %v995, %v296
    %v999 = vxor.u32 %v998, 2147483648
    %v1000 = vmul.f32 %v999, 1.442695
    %v1001 = vpow.pop %v1000
    %v1002 = vadd.f32 %v1001, 1.0
    %v1003 = vrcp.pop %v1002
    %v1004 = vmul.f32 1.0, %v1003
    %v1005 = vtanh.pop %v998
    %v1006 = vmul.f32 %v1004, %v666
    %1008 = vrot.lane.b32.xlu0 %v1005, 64
    %v1009 = vpop.permute.xlu0 %1008
    %v1011 = vmul.f32 %v1004, %v1009
    %1013 = vrot.lane.b32.xlu0 %v1011, 32
    %v1014 = vpop.permute.xlu0 %1013
    %v1016 = vadd.f32 %v1006, %v1014
    %v1017 = vtanh.pop %v1016
    %1019 = vrot.lane.b32.xlu0 %v1017, 64
    %v1020 = vpop.permute.xlu0 %1019
    %v1022 = vmul.f32 %v1004, %v1020
    %v1023 = vsel %vm146, %v849, 0
    %1025 = vmatprep.subr.mxu0 0.0
    %1026 = vmatpush1.msra.mxu0 %v99
    %1027 = vmatprep.subr.mxu0 0.0
    %1028 = vmatpush1.msra.mxu0 %v100
    %1029 = vmatprep.subr.mxu0 0.0
    %1030 = vmatpush1.msra.mxu0 %v101
    %1031 = vmatprep.subr.mxu0 0.0
    %1032 = vmatpush1.msra.mxu0 %v102
    %1033 = vmatprep.subr.mxu0 0.0
    %1034 = vmatpush1.msra.mxu0 0.0
    %1035 = vmatprep.subr.mxu0 0.0
    %1036 = vmatpush1.msra.mxu0 0.0
    %1037 = vmatprep.subr.mxu0 0.0
    %1038 = vmatpush1.msra.mxu0 0.0
    %1039 = vmatprep.subr.mxu0 0.0
    %1040 = vmatpush1.msra.mxu0 0.0
    %1041 = vmatprep.subr.mxu0 0.0
    %1042 = vmatpush1.msra.mxu0 0.0
    %1043 = vmatprep.subr.mxu0 0.0
    %1044 = vmatpush1.msra.mxu0 0.0
    %1045 = vmatprep.subr.mxu0 0.0
    %1046 = vmatpush1.msra.mxu0 0.0
    %1047 = vmatprep.subr.mxu0 0.0
    %1048 = vmatpush1.msra.mxu0 0.0
    %1049 = vmatprep.subr.mxu0 0.0
    %1050 = vmatpush1.msra.mxu0 0.0
    %1051 = vmatprep.subr.mxu0 0.0
    %1052 = vmatpush1.msra.mxu0 0.0
    %1053 = vmatprep.subr.mxu0 0.0
    %1054 = vmatpush1.msra.mxu0 0.0
    %1055 = vmatprep.subr.mxu0 0.0
    %1056 = vmatpush1.msra.mxu0 0.0
    %1057 = vmatprep.subr.mxu0 0.0
    %1058 = vmatpush1.msra.mxu0 0.0
    %1059 = vmatprep.subr.mxu0 0.0
    %1060 = vmatpush1.msra.mxu0 0.0
    %1061 = vmatprep.subr.mxu0 0.0
    %1062 = vmatpush1.msra.mxu0 0.0
    %1063 = vmatprep.subr.mxu0 0.0
    %1064 = vmatpush1.msra.mxu0 0.0
    %1065 = vmatprep.subr.mxu0 0.0
    %1066 = vmatpush1.msra.mxu0 0.0
    %1067 = vmatprep.subr.mxu0 0.0
    %1068 = vmatpush1.msra.mxu0 0.0
    %1069 = vmatprep.subr.mxu0 0.0
    %1070 = vmatpush1.msra.mxu0 0.0
    %1071 = vmatprep.subr.mxu0 0.0
    %1072 = vmatpush1.msra.mxu0 0.0
    %1073 = vmatprep.subr.mxu0 0.0
    %1074 = vmatpush1.msra.mxu0 0.0
    %1075 = vmatprep.subr.mxu0 0.0
    %1076 = vmatpush1.msra.mxu0 0.0
    %1077 = vmatprep.subr.mxu0 0.0
    %1078 = vmatpush1.msra.mxu0 0.0
    %1079 = vmatprep.subr.mxu0 0.0
    %1080 = vmatpush1.msra.mxu0 0.0
    %1081 = vmatprep.subr.mxu0 0.0
    %1082 = vmatpush1.msra.mxu0 0.0
    %1083 = vmatprep.subr.mxu0 0.0
    %1084 = vmatpush1.msra.mxu0 0.0
    %1085 = vmatprep.subr.mxu0 0.0
    %1086 = vmatpush1.msra.mxu0 0.0
    %1087 = vmatprep.subr.mxu0 0.0
    %1088 = vmatpush1.msra.mxu0 0.0
    %1089 = vmatprep.mubr.f32.mxu0 0.0
    %1090 = vmatmul.mubr.f32.gmra.mrb[0].mxu0 %v1023
    %v1091 = vpop.f32.mrb[0].mxu0
    %v1092 = vadd.f32 0.0, %v1091
    %v1093 = vpop.f32.mrb[0].mxu0
    %1094 = vdwg.mxu0
    %1096 = vrot.lane.b32.xlu0 %v1022, 32
    %v1097 = vpop.permute.xlu0 %1096
    %v1098 = vsel %vm146, %v1097, 0
    %1100 = vmatprep.subr.mxu0 0.0
    %1101 = vmatpush1.msra.mxu0 %v95
    %1102 = vmatprep.subr.mxu0 0.0
    %1103 = vmatpush1.msra.mxu0 %v96
    %1104 = vmatprep.subr.mxu0 0.0
    %1105 = vmatpush1.msra.mxu0 %v97
    %1106 = vmatprep.subr.mxu0 0.0
    %1107 = vmatpush1.msra.mxu0 %v98
    %1108 = vmatprep.subr.mxu0 0.0
    %1109 = vmatpush1.msra.mxu0 0.0
    %1110 = vmatprep.subr.mxu0 0.0
    %1111 = vmatpush1.msra.mxu0 0.0
    %1112 = vmatprep.subr.mxu0 0.0
    %1113 = vmatpush1.msra.mxu0 0.0
    %1114 = vmatprep.subr.mxu0 0.0
    %1115 = vmatpush1.msra.mxu0 0.0
    %1116 = vmatprep.subr.mxu0 0.0
    %1117 = vmatpush1.msra.mxu0 0.0
    %1118 = vmatprep.subr.mxu0 0.0
    %1119 = vmatpush1.msra.mxu0 0.0
    %1120 = vmatprep.subr.mxu0 0.0
    %1121 = vmatpush1.msra.mxu0 0.0
    %1122 = vmatprep.subr.mxu0 0.0
    %1123 = vmatpush1.msra.mxu0 0.0
    %1124 = vmatprep.subr.mxu0 0.0
    %1125 = vmatpush1.msra.mxu0 0.0
    %1126 = vmatprep.subr.mxu0 0.0
    %1127 = vmatpush1.msra.mxu0 0.0
    %1128 = vmatprep.subr.mxu0 0.0
    %1129 = vmatpush1.msra.mxu0 0.0
    %1130 = vmatprep.subr.mxu0 0.0
    %1131 = vmatpush1.msra.mxu0 0.0
    %1132 = vmatprep.subr.mxu0 0.0
    %1133 = vmatpush1.msra.mxu0 0.0
    %1134 = vmatprep.subr.mxu0 0.0
    %1135 = vmatpush1.msra.mxu0 0.0
    %1136 = vmatprep.subr.mxu0 0.0
    %1137 = vmatpush1.msra.mxu0 0.0
    %1138 = vmatprep.subr.mxu0 0.0
    %1139 = vmatpush1.msra.mxu0 0.0
    %1140 = vmatprep.subr.mxu0 0.0
    %1141 = vmatpush1.msra.mxu0 0.0
    %1142 = vmatprep.subr.mxu0 0.0
    %1143 = vmatpush1.msra.mxu0 0.0
    %1144 = vmatprep.subr.mxu0 0.0
    %1145 = vmatpush1.msra.mxu0 0.0
    %1146 = vmatprep.subr.mxu0 0.0
    %1147 = vmatpush1.msra.mxu0 0.0
    %1148 = vmatprep.subr.mxu0 0.0
    %1149 = vmatpush1.msra.mxu0 0.0
    %1150 = vmatprep.subr.mxu0 0.0
    %1151 = vmatpush1.msra.mxu0 0.0
    %1152 = vmatprep.subr.mxu0 0.0
    %1153 = vmatpush1.msra.mxu0 0.0
    %1154 = vmatprep.subr.mxu0 0.0
    %1155 = vmatpush1.msra.mxu0 0.0
    %1156 = vmatprep.subr.mxu0 0.0
    %1157 = vmatpush1.msra.mxu0 0.0
    %1158 = vmatprep.subr.mxu0 0.0
    %1159 = vmatpush1.msra.mxu0 0.0
    %1160 = vmatprep.subr.mxu0 0.0
    %1161 = vmatpush1.msra.mxu0 0.0
    %1162 = vmatprep.subr.mxu0 0.0
    %1163 = vmatpush1.msra.mxu0 0.0
    %1164 = vmatprep.mubr.f32.mxu0 0.0
    %1165 = vmatmul.mubr.f32.gmra.mrb[0].mxu0 %v1098
    %v1166 = vpop.f32.mrb[0].mxu0
    %v1167 = vadd.f32 %v1092, %v1166
    %v1168 = vpop.f32.mrb[0].mxu0
    %1169 = vdwg.mxu0
    %v1170 = vadd.f32 %v1167, %v470
    %v1171 = vxor.u32 %v1170, 2147483648
    %v1172 = vmul.f32 %v1171, 1.442695
    %v1173 = vpow.pop %v1172
    %v1174 = vadd.f32 %v1173, 1.0
    %v1175 = vrcp.pop %v1174
    %v1176 = vmul.f32 1.0, %v1175
    %v1177 = vtanh.pop %v1170
    %v1178 = vmul.f32 %v1176, %v838
    %1180 = vrot.lane.b32.xlu0 %v1177, 64
    %v1181 = vpop.permute.xlu0 %1180
    %v1183 = vmul.f32 %v1176, %v1181
    %1185 = vrot.lane.b32.xlu0 %v1183, 32
    %v1186 = vpop.permute.xlu0 %1185
    %v1188 = vadd.f32 %v1178, %v1186
    %v1189 = vtanh.pop %v1188
    %1191 = vrot.lane.b32.xlu0 %v1189, 64
    %v1192 = vpop.permute.xlu0 %1191
    %v1194 = vmul.f32 %v1176, %v1192
    %s1195 = scalar_lea.vmem [#allocation5], 16
    %v1196 = vld [vmem:[%s1195] sm:$0xff]
    %1198 = vrot.lane.b32.xlu0 %v1194, 32
    %v1199 = vpop.permute.xlu0 %1198
    %v1201 = vmul.f32 %v1196, %v1199
    %v1202 = vmax.f32 %v852, %v1201
    %s1203 = scalar_lea.vmem [#allocation2], 24
    %v1204 = vld [vmem:[%s1203] sm:$0xff]
    %1205 = vmatprep.subr.mxu0 0.0
    %1206 = vmatpush1.msra.mxu0 %v91
    %1207 = vmatprep.subr.mxu0 0.0
    %1208 = vmatpush1.msra.mxu0 %v92
    %1209 = vmatprep.subr.mxu0 0.0
    %1210 = vmatpush1.msra.mxu0 %v93
    %1211 = vmatprep.subr.mxu0 0.0
    %1212 = vmatpush1.msra.mxu0 %v94
    %1213 = vmatprep.subr.mxu0 0.0
    %1214 = vmatpush1.msra.mxu0 0.0
    %1215 = vmatprep.subr.mxu0 0.0
    %1216 = vmatpush1.msra.mxu0 0.0
    %1217 = vmatprep.subr.mxu0 0.0
    %1218 = vmatpush1.msra.mxu0 0.0
    %1219 = vmatprep.subr.mxu0 0.0
    %1220 = vmatpush1.msra.mxu0 0.0
    %1221 = vmatprep.subr.mxu0 0.0
    %1222 = vmatpush1.msra.mxu0 0.0
    %1223 = vmatprep.subr.mxu0 0.0
    %1224 = vmatpush1.msra.mxu0 0.0
    %1225 = vmatprep.subr.mxu0 0.0
    %1226 = vmatpush1.msra.mxu0 0.0
    %1227 = vmatprep.subr.mxu0 0.0
    %1228 = vmatpush1.msra.mxu0 0.0
    %1229 = vmatprep.subr.mxu0 0.0
    %1230 = vmatpush1.msra.mxu0 0.0
    %1231 = vmatprep.subr.mxu0 0.0
    %1232 = vmatpush1.msra.mxu0 0.0
    %1233 = vmatprep.subr.mxu0 0.0
    %1234 = vmatpush1.msra.mxu0 0.0
    %1235 = vmatprep.subr.mxu0 0.0
    %1236 = vmatpush1.msra.mxu0 0.0
    %1237 = vmatprep.subr.mxu0 0.0
    %1238 = vmatpush1.msra.mxu0 0.0
    %1239 = vmatprep.subr.mxu0 0.0
    %1240 = vmatpush1.msra.mxu0 0.0
    %1241 = vmatprep.subr.mxu0 0.0
    %1242 = vmatpush1.msra.mxu0 0.0
    %1243 = vmatprep.subr.mxu0 0.0
    %1244 = vmatpush1.msra.mxu0 0.0
    %1245 = vmatprep.subr.mxu0 0.0
    %1246 = vmatpush1.msra.mxu0 0.0
    %1247 = vmatprep.subr.mxu0 0.0
    %1248 = vmatpush1.msra.mxu0 0.0
    %1249 = vmatprep.subr.mxu0 0.0
    %1250 = vmatpush1.msra.mxu0 0.0
    %1251 = vmatprep.subr.mxu0 0.0
    %1252 = vmatpush1.msra.mxu0 0.0
    %1253 = vmatprep.subr.mxu0 0.0
    %1254 = vmatpush1.msra.mxu0 0.0
    %1255 = vmatprep.subr.mxu0 0.0
    %1256 = vmatpush1.msra.mxu0 0.0
    %1257 = vmatprep.subr.mxu0 0.0
    %1258 = vmatpush1.msra.mxu0 0.0
    %1259 = vmatprep.subr.mxu0 0.0
    %1260 = vmatpush1.msra.mxu0 0.0
    %1261 = vmatprep.subr.mxu0 0.0
    %1262 = vmatpush1.msra.mxu0 0.0
    %1263 = vmatprep.subr.mxu0 0.0
    %1264 = vmatpush1.msra.mxu0 0.0
    %1265 = vmatprep.subr.mxu0 0.0
    %1266 = vmatpush1.msra.mxu0 0.0
    %1267 = vmatprep.subr.mxu0 0.0
    %1268 = vmatpush1.msra.mxu0 0.0
    %1269 = vmatprep.mubr.f32.mxu0 0.0
    %1270 = vmatmul.mubr.f32.gmra.mrb[0].mxu0 %v1098
    %v1271 = vpop.f32.mrb[0].mxu0
    %v1272 = vadd.f32 0.0, %v1271
    %v1273 = vpop.f32.mrb[0].mxu0
    %1274 = vdwg.mxu0
    %v1276 = vsel %vm146, %v1204, 0
    %1278 = vmatprep.subr.mxu0 0.0
    %1279 = vmatpush1.msra.mxu0 %v87
    %1280 = vmatprep.subr.mxu0 0.0
    %1281 = vmatpush1.msra.mxu0 %v88
    %1282 = vmatprep.subr.mxu0 0.0
    %1283 = vmatpush1.msra.mxu0 %v89
    %1284 = vmatprep.subr.mxu0 0.0
    %1285 = vmatpush1.msra.mxu0 %v90
    %1286 = vmatprep.subr.mxu0 0.0
    %1287 = vmatpush1.msra.mxu0 0.0
    %1288 = vmatprep.subr.mxu0 0.0
    %1289 = vmatpush1.msra.mxu0 0.0
    %1290 = vmatprep.subr.mxu0 0.0
    %1291 = vmatpush1.msra.mxu0 0.0
    %1292 = vmatprep.subr.mxu0 0.0
    %1293 = vmatpush1.msra.mxu0 0.0
    %1294 = vmatprep.subr.mxu0 0.0
    %1295 = vmatpush1.msra.mxu0 0.0
    %1296 = vmatprep.subr.mxu0 0.0
    %1297 = vmatpush1.msra.mxu0 0.0
    %1298 = vmatprep.subr.mxu0 0.0
    %1299 = vmatpush1.msra.mxu0 0.0
    %1300 = vmatprep.subr.mxu0 0.0
    %1301 = vmatpush1.msra.mxu0 0.0
    %1302 = vmatprep.subr.mxu0 0.0
    %1303 = vmatpush1.msra.mxu0 0.0
    %1304 = vmatprep.subr.mxu0 0.0
    %1305 = vmatpush1.msra.mxu0 0.0
    %1306 = vmatprep.subr.mxu0 0.0
    %1307 = vmatpush1.msra.mxu0 0.0
    %1308 = vmatprep.subr.mxu0 0.0
    %1309 = vmatpush1.msra.mxu0 0.0
    %1310 = vmatprep.subr.mxu0 0.0
    %1311 = vmatpush1.msra.mxu0 0.0
    %1312 = vmatprep.subr.mxu0 0.0
    %1313 = vmatpush1.msra.mxu0 0.0
    %1314 = vmatprep.subr.mxu0 0.0
    %1315 = vmatpush1.msra.mxu0 0.0
    %1316 = vmatprep.subr.mxu0 0.0
    %1317 = vmatpush1.msra.mxu0 0.0
    %1318 = vmatprep.subr.mxu0 0.0
    %1319 = vmatpush1.msra.mxu0 0.0
    %1320 = vmatprep.subr.mxu0 0.0
    %1321 = vmatpush1.msra.mxu0 0.0
    %1322 = vmatprep.subr.mxu0 0.0
    %1323 = vmatpush1.msra.mxu0 0.0
    %1324 = vmatprep.subr.mxu0 0.0
    %1325 = vmatpush1.msra.mxu0 0.0
    %1326 = vmatprep.subr.mxu0 0.0
    %1327 = vmatpush1.msra.mxu0 0.0
    %1328 = vmatprep.subr.mxu0 0.0
    %1329 = vmatpush1.msra.mxu0 0.0
    %1330 = vmatprep.subr.mxu0 0.0
    %1331 = vmatpush1.msra.mxu0 0.0
    %1332 = vmatprep.subr.mxu0 0.0
    %1333 = vmatpush1.msra.mxu0 0.0
    %1334 = vmatprep.subr.mxu0 0.0
    %1335 = vmatpush1.msra.mxu0 0.0
    %1336 = vmatprep.subr.mxu0 0.0
    %1337 = vmatpush1.msra.mxu0 0.0
    %1338 = vmatprep.subr.mxu0 0.0
    %1339 = vmatpush1.msra.mxu0 0.0
    %1340 = vmatprep.subr.mxu0 0.0
    %1341 = vmatpush1.msra.mxu0 0.0
    %1342 = vmatprep.mubr.f32.mxu0 0.0
    %1343 = vmatmul.mubr.f32.gmra.mrb[0].mxu0 %v1276
    %v1344 = vpop.f32.mrb[0].mxu0
    %v1345 = vadd.f32 %v1272, %v1344
    %v1346 = vpop.f32.mrb[0].mxu0
    %1347 = vdwg.mxu0
    %v1348 = vadd.f32 %v1345, %v296
    %v1349 = vxor.u32 %v1348, 2147483648
    %v1350 = vmul.f32 %v1349, 1.442695
    %v1351 = vpow.pop %v1350
    %v1352 = vadd.f32 %v1351, 1.0
    %v1353 = vrcp.pop %v1352
    %v1354 = vmul.f32 1.0, %v1353
    %v1355 = vtanh.pop %v1348
    %v1356 = vmul.f32 %v1354, %v1016
    %1358 = vrot.lane.b32.xlu0 %v1355, 64
    %v1359 = vpop.permute.xlu0 %1358
    %v1361 = vmul.f32 %v1354, %v1359
    %1363 = vrot.lane.b32.xlu0 %v1361, 32
    %v1364 = vpop.permute.xlu0 %1363
    %v1366 = vadd.f32 %v1356, %v1364
    %v1367 = vtanh.pop %v1366
    %1369 = vrot.lane.b32.xlu0 %v1367, 64
    %v1370 = vpop.permute.xlu0 %1369
    %v1372 = vmul.f32 %v1354, %v1370
    %v1373 = vsel %vm146, %v1199, 0
    %1375 = vmatprep.subr.mxu0 0.0
    %1376 = vmatpush1.msra.mxu0 %v99
    %1377 = vmatprep.subr.mxu0 0.0
    %1378 = vmatpush1.msra.mxu0 %v100
    %1379 = vmatprep.subr.mxu0 0.0
    %1380 = vmatpush1.msra.mxu0 %v101
    %1381 = vmatprep.subr.mxu0 0.0
    %1382 = vmatpush1.msra.mxu0 %v102
    %1383 = vmatprep.subr.mxu0 0.0
    %1384 = vmatpush1.msra.mxu0 0.0
    %1385 = vmatprep.subr.mxu0 0.0
    %1386 = vmatpush1.msra.mxu0 0.0
    %1387 = vmatprep.subr.mxu0 0.0
    %1388 = vmatpush1.msra.mxu0 0.0
    %1389 = vmatprep.subr.mxu0 0.0
    %1390 = vmatpush1.msra.mxu0 0.0
    %1391 = vmatprep.subr.mxu0 0.0
    %1392 = vmatpush1.msra.mxu0 0.0
    %1393 = vmatprep.subr.mxu0 0.0
    %1394 = vmatpush1.msra.mxu0 0.0
    %1395 = vmatprep.subr.mxu0 0.0
    %1396 = vmatpush1.msra.mxu0 0.0
    %1397 = vmatprep.subr.mxu0 0.0
    %1398 = vmatpush1.msra.mxu0 0.0
    %1399 = vmatprep.subr.mxu0 0.0
    %1400 = vmatpush1.msra.mxu0 0.0
    %1401 = vmatprep.subr.mxu0 0.0
    %1402 = vmatpush1.msra.mxu0 0.0
    %1403 = vmatprep.subr.mxu0 0.0
    %1404 = vmatpush1.msra.mxu0 0.0
    %1405 = vmatprep.subr.mxu0 0.0
    %1406 = vmatpush1.msra.mxu0 0.0
    %1407 = vmatprep.subr.mxu0 0.0
    %1408 = vmatpush1.msra.mxu0 0.0
    %1409 = vmatprep.subr.mxu0 0.0
    %1410 = vmatpush1.msra.mxu0 0.0
    %1411 = vmatprep.subr.mxu0 0.0
    %1412 = vmatpush1.msra.mxu0 0.0
    %1413 = vmatprep.subr.mxu0 0.0
    %1414 = vmatpush1.msra.mxu0 0.0
    %1415 = vmatprep.subr.mxu0 0.0
    %1416 = vmatpush1.msra.mxu0 0.0
    %1417 = vmatprep.subr.mxu0 0.0
    %1418 = vmatpush1.msra.mxu0 0.0
    %1419 = vmatprep.subr.mxu0 0.0
    %1420 = vmatpush1.msra.mxu0 0.0
    %1421 = vmatprep.subr.mxu0 0.0
    %1422 = vmatpush1.msra.mxu0 0.0
    %1423 = vmatprep.subr.mxu0 0.0
    %1424 = vmatpush1.msra.mxu0 0.0
    %1425 = vmatprep.subr.mxu0 0.0
    %1426 = vmatpush1.msra.mxu0 0.0
    %1427 = vmatprep.subr.mxu0 0.0
    %1428 = vmatpush1.msra.mxu0 0.0
    %1429 = vmatprep.subr.mxu0 0.0
    %1430 = vmatpush1.msra.mxu0 0.0
    %1431 = vmatprep.subr.mxu0 0.0
    %1432 = vmatpush1.msra.mxu0 0.0
    %1433 = vmatprep.subr.mxu0 0.0
    %1434 = vmatpush1.msra.mxu0 0.0
    %1435 = vmatprep.subr.mxu0 0.0
    %1436 = vmatpush1.msra.mxu0 0.0
    %1437 = vmatprep.subr.mxu0 0.0
    %1438 = vmatpush1.msra.mxu0 0.0
    %1439 = vmatprep.mubr.f32.mxu0 0.0
    %1440 = vmatmul.mubr.f32.gmra.mrb[0].mxu0 %v1373
    %v1441 = vpop.f32.mrb[0].mxu0
    %v1442 = vadd.f32 0.0, %v1441
    %v1443 = vpop.f32.mrb[0].mxu0
    %1444 = vdwg.mxu0
    %1446 = vrot.lane.b32.xlu0 %v1372, 32
    %v1447 = vpop.permute.xlu0 %1446
    %v1448 = vsel %vm146, %v1447, 0
    %1450 = vmatprep.subr.mxu0 0.0
    %1451 = vmatpush1.msra.mxu0 %v95
    %1452 = vmatprep.subr.mxu0 0.0
    %1453 = vmatpush1.msra.mxu0 %v96
    %1454 = vmatprep.subr.mxu0 0.0
    %1455 = vmatpush1.msra.mxu0 %v97
    %1456 = vmatprep.subr.mxu0 0.0
    %1457 = vmatpush1.msra.mxu0 %v98
    %1458 = vmatprep.subr.mxu0 0.0
    %1459 = vmatpush1.msra.mxu0 0.0
    %1460 = vmatprep.subr.mxu0 0.0
    %1461 = vmatpush1.msra.mxu0 0.0
    %1462 = vmatprep.subr.mxu0 0.0
    %1463 = vmatpush1.msra.mxu0 0.0
    %1464 = vmatprep.subr.mxu0 0.0
    %1465 = vmatpush1.msra.mxu0 0.0
    %1466 = vmatprep.subr.mxu0 0.0
    %1467 = vmatpush1.msra.mxu0 0.0
    %1468 = vmatprep.subr.mxu0 0.0
    %1469 = vmatpush1.msra.mxu0 0.0
    %1470 = vmatprep.subr.mxu0 0.0
    %1471 = vmatpush1.msra.mxu0 0.0
    %1472 = vmatprep.subr.mxu0 0.0
    %1473 = vmatpush1.msra.mxu0 0.0
    %1474 = vmatprep.subr.mxu0 0.0
    %1475 = vmatpush1.msra.mxu0 0.0
    %1476 = vmatprep.subr.mxu0 0.0
    %1477 = vmatpush1.msra.mxu0 0.0
    %1478 = vmatprep.subr.mxu0 0.0
    %1479 = vmatpush1.msra.mxu0 0.0
    %1480 = vmatprep.subr.mxu0 0.0
    %1481 = vmatpush1.msra.mxu0 0.0
    %1482 = vmatprep.subr.mxu0 0.0
    %1483 = vmatpush1.msra.mxu0 0.0
    %1484 = vmatprep.subr.mxu0 0.0
    %1485 = vmatpush1.msra.mxu0 0.0
    %1486 = vmatprep.subr.mxu0 0.0
    %1487 = vmatpush1.msra.mxu0 0.0
    %1488 = vmatprep.subr.mxu0 0.0
    %1489 = vmatpush1.msra.mxu0 0.0
    %1490 = vmatprep.subr.mxu0 0.0
    %1491 = vmatpush1.msra.mxu0 0.0
    %1492 = vmatprep.subr.mxu0 0.0
    %1493 = vmatpush1.msra.mxu0 0.0
    %1494 = vmatprep.subr.mxu0 0.0
    %1495 = vmatpush1.msra.mxu0 0.0
    %1496 = vmatprep.subr.mxu0 0.0
    %1497 = vmatpush1.msra.mxu0 0.0
    %1498 = vmatprep.subr.mxu0 0.0
    %1499 = vmatpush1.msra.mxu0 0.0
    %1500 = vmatprep.subr.mxu0 0.0
    %1501 = vmatpush1.msra.mxu0 0.0
    %1502 = vmatprep.subr.mxu0 0.0
    %1503 = vmatpush1.msra.mxu0 0.0
    %1504 = vmatprep.subr.mxu0 0.0
    %1505 = vmatpush1.msra.mxu0 0.0
    %1506 = vmatprep.subr.mxu0 0.0
    %1507 = vmatpush1.msra.mxu0 0.0
    %1508 = vmatprep.subr.mxu0 0.0
    %1509 = vmatpush1.msra.mxu0 0.0
    %1510 = vmatprep.subr.mxu0 0.0
    %1511 = vmatpush1.msra.mxu0 0.0
    %1512 = vmatprep.subr.mxu0 0.0
    %1513 = vmatpush1.msra.mxu0 0.0
    %1514 = vmatprep.mubr.f32.mxu0 0.0
    %1515 = vmatmul.mubr.f32.gmra.mrb[0].mxu0 %v1448
    %v1516 = vpop.f32.mrb[0].mxu0
    %v1517 = vadd.f32 %v1442, %v1516
    %v1518 = vpop.f32.mrb[0].mxu0
    %1519 = vdwg.mxu0
    %v1520 = vadd.f32 %v1517, %v470
    %v1521 = vxor.u32 %v1520, 2147483648
    %v1522 = vmul.f32 %v1521, 1.442695
    %v1523 = vpow.pop %v1522
    %v1524 = vadd.f32 %v1523, 1.0
    %v1525 = vrcp.pop %v1524
    %v1526 = vmul.f32 1.0, %v1525
    %v1527 = vtanh.pop %v1520
    %v1528 = vmul.f32 %v1526, %v1188
    %1530 = vrot.lane.b32.xlu0 %v1527, 64
    %v1531 = vpop.permute.xlu0 %1530
    %v1533 = vmul.f32 %v1526, %v1531
    %1535 = vrot.lane.b32.xlu0 %v1533, 32
    %v1536 = vpop.permute.xlu0 %1535
    %v1538 = vadd.f32 %v1528, %v1536
    %v1539 = vtanh.pop %v1538
    %1541 = vrot.lane.b32.xlu0 %v1539, 64
    %v1542 = vpop.permute.xlu0 %1541
    %v1544 = vmul.f32 %v1526, %v1542
    %s1545 = scalar_lea.vmem [#allocation5], 24
    %v1546 = vld [vmem:[%s1545] sm:$0xff]
    %1548 = vrot.lane.b32.xlu0 %v1544, 32
    %v1549 = vpop.permute.xlu0 %1548
    %v1551 = vmul.f32 %v1546, %v1549
    %v1552 = vmax.f32 %v1202, %v1551
    %s1553 = scalar_lea.vmem [#allocation2], 32
    %v1554 = vld [vmem:[%s1553] sm:$0xff]
    %1555 = vmatprep.subr.mxu0 0.0
    %1556 = vmatpush1.msra.mxu0 %v91
    %1557 = vmatprep.subr.mxu0 0.0
    %1558 = vmatpush1.msra.mxu0 %v92
    %1559 = vmatprep.subr.mxu0 0.0
    %1560 = vmatpush1.msra.mxu0 %v93
    %1561 = vmatprep.subr.mxu0 0.0
    %1562 = vmatpush1.msra.mxu0 %v94
    %1563 = vmatprep.subr.mxu0 0.0
    %1564 = vmatpush1.msra.mxu0 0.0
    %1565 = vmatprep.subr.mxu0 0.0
    %1566 = vmatpush1.msra.mxu0 0.0
    %1567 = vmatprep.subr.mxu0 0.0
    %1568 = vmatpush1.msra.mxu0 0.0
    %1569 = vmatprep.subr.mxu0 0.0
    %1570 = vmatpush1.msra.mxu0 0.0
    %1571 = vmatprep.subr.mxu0 0.0
    %1572 = vmatpush1.msra.mxu0 0.0
    %1573 = vmatprep.subr.mxu0 0.0
    %1574 = vmatpush1.msra.mxu0 0.0
    %1575 = vmatprep.subr.mxu0 0.0
    %1576 = vmatpush1.msra.mxu0 0.0
    %1577 = vmatprep.subr.mxu0 0.0
    %1578 = vmatpush1.msra.mxu0 0.0
    %1579 = vmatprep.subr.mxu0 0.0
    %1580 = vmatpush1.msra.mxu0 0.0
    %1581 = vmatprep.subr.mxu0 0.0
    %1582 = vmatpush1.msra.mxu0 0.0
    %1583 = vmatprep.subr.mxu0 0.0
    %1584 = vmatpush1.msra.mxu0 0.0
    %1585 = vmatprep.subr.mxu0 0.0
    %1586 = vmatpush1.msra.mxu0 0.0
    %1587 = vmatprep.subr.mxu0 0.0
    %1588 = vmatpush1.msra.mxu0 0.0
    %1589 = vmatprep.subr.mxu0 0.0
    %1590 = vmatpush1.msra.mxu0 0.0
    %1591 = vmatprep.subr.mxu0 0.0
    %1592 = vmatpush1.msra.mxu0 0.0
    %1593 = vmatprep.subr.mxu0 0.0
    %1594 = vmatpush1.msra.mxu0 0.0
    %1595 = vmatprep.subr.mxu0 0.0
    %1596 = vmatpush1.msra.mxu0 0.0
    %1597 = vmatprep.subr.mxu0 0.0
    %1598 = vmatpush1.msra.mxu0 0.0
    %1599 = vmatprep.subr.mxu0 0.0
    %1600 = vmatpush1.msra.mxu0 0.0
    %1601 = vmatprep.subr.mxu0 0.0
    %1602 = vmatpush1.msra.mxu0 0.0
    %1603 = vmatprep.subr.mxu0 0.0
    %1604 = vmatpush1.msra.mxu0 0.0
    %1605 = vmatprep.subr.mxu0 0.0
    %1606 = vmatpush1.msra.mxu0 0.0
    %1607 = vmatprep.subr.mxu0 0.0
    %1608 = vmatpush1.msra.mxu0 0.0
    %1609 = vmatprep.subr.mxu0 0.0
    %1610 = vmatpush1.msra.mxu0 0.0
    %1611 = vmatprep.subr.mxu0 0.0
    %1612 = vmatpush1.msra.mxu0 0.0
    %1613 = vmatprep.subr.mxu0 0.0
    %1614 = vmatpush1.msra.mxu0 0.0
    %1615 = vmatprep.subr.mxu0 0.0
    %1616 = vmatpush1.msra.mxu0 0.0
    %1617 = vmatprep.subr.mxu0 0.0
    %1618 = vmatpush1.msra.mxu0 0.0
    %1619 = vmatprep.mubr.f32.mxu0 0.0
    %1620 = vmatmul.mubr.f32.gmra.mrb[0].mxu0 %v1448
    %v1621 = vpop.f32.mrb[0].mxu0
    %v1622 = vadd.f32 0.0, %v1621
    %v1623 = vpop.f32.mrb[0].mxu0
    %1624 = vdwg.mxu0
    %v1626 = vsel %vm146, %v1554, 0
    %1628 = vmatprep.subr.mxu0 0.0
    %1629 = vmatpush1.msra.mxu0 %v87
    %1630 = vmatprep.subr.mxu0 0.0
    %1631 = vmatpush1.msra.mxu0 %v88
    %1632 = vmatprep.subr.mxu0 0.0
    %1633 = vmatpush1.msra.mxu0 %v89
    %1634 = vmatprep.subr.mxu0 0.0
    %1635 = vmatpush1.msra.mxu0 %v90
    %1636 = vmatprep.subr.mxu0 0.0
    %1637 = vmatpush1.msra.mxu0 0.0
    %1638 = vmatprep.subr.mxu0 0.0
    %1639 = vmatpush1.msra.mxu0 0.0
    %1640 = vmatprep.subr.mxu0 0.0
    %1641 = vmatpush1.msra.mxu0 0.0
    %1642 = vmatprep.subr.mxu0 0.0
    %1643 = vmatpush1.msra.mxu0 0.0
    %1644 = vmatprep.subr.mxu0 0.0
    %1645 = vmatpush1.msra.mxu0 0.0
    %1646 = vmatprep.subr.mxu0 0.0
    %1647 = vmatpush1.msra.mxu0 0.0
    %1648 = vmatprep.subr.mxu0 0.0
    %1649 = vmatpush1.msra.mxu0 0.0
    %1650 = vmatprep.subr.mxu0 0.0
    %1651 = vmatpush1.msra.mxu0 0.0
    %1652 = vmatprep.subr.mxu0 0.0
    %1653 = vmatpush1.msra.mxu0 0.0
    %1654 = vmatprep.subr.mxu0 0.0
    %1655 = vmatpush1.msra.mxu0 0.0
    %1656 = vmatprep.subr.mxu0 0.0
    %1657 = vmatpush1.msra.mxu0 0.0
    %1658 = vmatprep.subr.mxu0 0.0
    %1659 = vmatpush1.msra.mxu0 0.0
    %1660 = vmatprep.subr.mxu0 0.0
    %1661 = vmatpush1.msra.mxu0 0.0
    %1662 = vmatprep.subr.mxu0 0.0
    %1663 = vmatpush1.msra.mxu0 0.0
    %1664 = vmatprep.subr.mxu0 0.0
    %1665 = vmatpush1.msra.mxu0 0.0
    %1666 = vmatprep.subr.mxu0 0.0
    %1667 = vmatpush1.msra.mxu0 0.0
    %1668 = vmatprep.subr.mxu0 0.0
    %1669 = vmatpush1.msra.mxu0 0.0
    %1670 = vmatprep.subr.mxu0 0.0
    %1671 = vmatpush1.msra.mxu0 0.0
    %1672 = vmatprep.subr.mxu0 0.0
    %1673 = vmatpush1.msra.mxu0 0.0
    %1674 = vmatprep.subr.mxu0 0.0
    %1675 = vmatpush1.msra.mxu0 0.0
    %1676 = vmatprep.subr.mxu0 0.0
    %1677 = vmatpush1.msra.mxu0 0.0
    %1678 = vmatprep.subr.mxu0 0.0
    %1679 = vmatpush1.msra.mxu0 0.0
    %1680 = vmatprep.subr.mxu0 0.0
    %1681 = vmatpush1.msra.mxu0 0.0
    %1682 = vmatprep.subr.mxu0 0.0
    %1683 = vmatpush1.msra.mxu0 0.0
    %1684 = vmatprep.subr.mxu0 0.0
    %1685 = vmatpush1.msra.mxu0 0.0
    %1686 = vmatprep.subr.mxu0 0.0
    %1687 = vmatpush1.msra.mxu0 0.0
    %1688 = vmatprep.subr.mxu0 0.0
    %1689 = vmatpush1.msra.mxu0 0.0
    %1690 = vmatprep.subr.mxu0 0.0
    %1691 = vmatpush1.msra.mxu0 0.0
    %1692 = vmatprep.mubr.f32.mxu0 0.0
    %1693 = vmatmul.mubr.f32.gmra.mrb[0].mxu0 %v1626
    %v1694 = vpop.f32.mrb[0].mxu0
    %v1695 = vadd.f32 %v1622, %v1694
    %v1696 = vpop.f32.mrb[0].mxu0
    %1697 = vdwg.mxu0
    %v1698 = vadd.f32 %v1695, %v296
    %v1699 = vxor.u32 %v1698, 2147483648
    %v1700 = vmul.f32 %v1699, 1.442695
    %v1701 = vpow.pop %v1700
    %v1702 = vadd.f32 %v1701, 1.0
    %v1703 = vrcp.pop %v1702
    %v1704 = vmul.f32 1.0, %v1703
    %v1705 = vtanh.pop %v1698
    %v1706 = vmul.f32 %v1704, %v1366
    %1708 = vrot.lane.b32.xlu0 %v1705, 64
    %v1709 = vpop.permute.xlu0 %1708
    %v1711 = vmul.f32 %v1704, %v1709
    %1713 = vrot.lane.b32.xlu0 %v1711, 32
    %v1714 = vpop.permute.xlu0 %1713
    %v1716 = vadd.f32 %v1706, %v1714
    %v1717 = vtanh.pop %v1716
    %1719 = vrot.lane.b32.xlu0 %v1717, 64
    %v1720 = vpop.permute.xlu0 %1719
    %v1722 = vmul.f32 %v1704, %v1720
    %v1723 = vsel %vm146, %v1549, 0
    %1725 = vmatprep.subr.mxu0 0.0
    %1726 = vmatpush1.msra.mxu0 %v99
    %1727 = vmatprep.subr.mxu0 0.0
    %1728 = vmatpush1.msra.mxu0 %v100
    %1729 = vmatprep.subr.mxu0 0.0
    %1730 = vmatpush1.msra.mxu0 %v101
    %1731 = vmatprep.subr.mxu0 0.0
    %1732 = vmatpush1.msra.mxu0 %v102
    %1733 = vmatprep.subr.mxu0 0.0
    %1734 = vmatpush1.msra.mxu0 0.0
    %1735 = vmatprep.subr.mxu0 0.0
    %1736 = vmatpush1.msra.mxu0 0.0
    %1737 = vmatprep.subr.mxu0 0.0
    %1738 = vmatpush1.msra.mxu0 0.0
    %1739 = vmatprep.subr.mxu0 0.0
    %1740 = vmatpush1.msra.mxu0 0.0
    %1741 = vmatprep.subr.mxu0 0.0
    %1742 = vmatpush1.msra.mxu0 0.0
    %1743 = vmatprep.subr.mxu0 0.0
    %1744 = vmatpush1.msra.mxu0 0.0
    %1745 = vmatprep.subr.mxu0 0.0
    %1746 = vmatpush1.msra.mxu0 0.0
    %1747 = vmatprep.subr.mxu0 0.0
    %1748 = vmatpush1.msra.mxu0 0.0
    %1749 = vmatprep.subr.mxu0 0.0
    %1750 = vmatpush1.msra.mxu0 0.0
    %1751 = vmatprep.subr.mxu0 0.0
    %1752 = vmatpush1.msra.mxu0 0.0
    %1753 = vmatprep.subr.mxu0 0.0
    %1754 = vmatpush1.msra.mxu0 0.0
    %1755 = vmatprep.subr.mxu0 0.0
    %1756 = vmatpush1.msra.mxu0 0.0
    %1757 = vmatprep.subr.mxu0 0.0
    %1758 = vmatpush1.msra.mxu0 0.0
    %1759 = vmatprep.subr.mxu0 0.0
    %1760 = vmatpush1.msra.mxu0 0.0
    %1761 = vmatprep.subr.mxu0 0.0
    %1762 = vmatpush1.msra.mxu0 0.0
    %1763 = vmatprep.subr.mxu0 0.0
    %1764 = vmatpush1.msra.mxu0 0.0
    %1765 = vmatprep.subr.mxu0 0.0
    %1766 = vmatpush1.msra.mxu0 0.0
    %1767 = vmatprep.subr.mxu0 0.0
    %1768 = vmatpush1.msra.mxu0 0.0
    %1769 = vmatprep.subr.mxu0 0.0
    %1770 = vmatpush1.msra.mxu0 0.0
    %1771 = vmatprep.subr.mxu0 0.0
    %1772 = vmatpush1.msra.mxu0 0.0
    %1773 = vmatprep.subr.mxu0 0.0
    %1774 = vmatpush1.msra.mxu0 0.0
    %1775 = vmatprep.subr.mxu0 0.0
    %1776 = vmatpush1.msra.mxu0 0.0
    %1777 = vmatprep.subr.mxu0 0.0
    %1778 = vmatpush1.msra.mxu0 0.0
    %1779 = vmatprep.subr.mxu0 0.0
    %1780 = vmatpush1.msra.mxu0 0.0
    %1781 = vmatprep.subr.mxu0 0.0
    %1782 = vmatpush1.msra.mxu0 0.0
    %1783 = vmatprep.subr.mxu0 0.0
    %1784 = vmatpush1.msra.mxu0 0.0
    %1785 = vmatprep.subr.mxu0 0.0
    %1786 = vmatpush1.msra.mxu0 0.0
    %1787 = vmatprep.subr.mxu0 0.0
    %1788 = vmatpush1.msra.mxu0 0.0
    %1789 = vmatprep.mubr.f32.mxu0 0.0
    %1790 = vmatmul.mubr.f32.gmra.mrb[0].mxu0 %v1723
    %v1791 = vpop.f32.mrb[0].mxu0
    %v1792 = vadd.f32 0.0, %v1791
    %v1793 = vpop.f32.mrb[0].mxu0
    %1794 = vdwg.mxu0
    %1796 = vrot.lane.b32.xlu0 %v1722, 32
    %v1797 = vpop.permute.xlu0 %1796
    %v1798 = vsel %vm146, %v1797, 0
    %1800 = vmatprep.subr.mxu0 0.0
    %1801 = vmatpush1.msra.mxu0 %v95
    %1802 = vmatprep.subr.mxu0 0.0
    %1803 = vmatpush1.msra.mxu0 %v96
    %1804 = vmatprep.subr.mxu0 0.0
    %1805 = vmatpush1.msra.mxu0 %v97
    %1806 = vmatprep.subr.mxu0 0.0
    %1807 = vmatpush1.msra.mxu0 %v98
    %1808 = vmatprep.subr.mxu0 0.0
    %1809 = vmatpush1.msra.mxu0 0.0
    %1810 = vmatprep.subr.mxu0 0.0
    %1811 = vmatpush1.msra.mxu0 0.0
    %1812 = vmatprep.subr.mxu0 0.0
    %1813 = vmatpush1.msra.mxu0 0.0
    %1814 = vmatprep.subr.mxu0 0.0
    %1815 = vmatpush1.msra.mxu0 0.0
    %1816 = vmatprep.subr.mxu0 0.0
    %1817 = vmatpush1.msra.mxu0 0.0
    %1818 = vmatprep.subr.mxu0 0.0
    %1819 = vmatpush1.msra.mxu0 0.0
    %1820 = vmatprep.subr.mxu0 0.0
    %1821 = vmatpush1.msra.mxu0 0.0
    %1822 = vmatprep.subr.mxu0 0.0
    %1823 = vmatpush1.msra.mxu0 0.0
    %1824 = vmatprep.subr.mxu0 0.0
    %1825 = vmatpush1.msra.mxu0 0.0
    %1826 = vmatprep.subr.mxu0 0.0
    %1827 = vmatpush1.msra.mxu0 0.0
    %1828 = vmatprep.subr.mxu0 0.0
    %1829 = vmatpush1.msra.mxu0 0.0
    %1830 = vmatprep.subr.mxu0 0.0
    %1831 = vmatpush1.msra.mxu0 0.0
    %1832 = vmatprep.subr.mxu0 0.0
    %1833 = vmatpush1.msra.mxu0 0.0
    %1834 = vmatprep.subr.mxu0 0.0
    %1835 = vmatpush1.msra.mxu0 0.0
    %1836 = vmatprep.subr.mxu0 0.0
    %1837 = vmatpush1.msra.mxu0 0.0
    %1838 = vmatprep.subr.mxu0 0.0
    %1839 = vmatpush1.msra.mxu0 0.0
    %1840 = vmatprep.subr.mxu0 0.0
    %1841 = vmatpush1.msra.mxu0 0.0
    %1842 = vmatprep.subr.mxu0 0.0
    %1843 = vmatpush1.msra.mxu0 0.0
    %1844 = vmatprep.subr.mxu0 0.0
    %1845 = vmatpush1.msra.mxu0 0.0
    %1846 = vmatprep.subr.mxu0 0.0
    %1847 = vmatpush1.msra.mxu0 0.0
    %1848 = vmatprep.subr.mxu0 0.0
    %1849 = vmatpush1.msra.mxu0 0.0
    %1850 = vmatprep.subr.mxu0 0.0
    %1851 = vmatpush1.msra.mxu0 0.0
    %1852 = vmatprep.subr.mxu0 0.0
    %1853 = vmatpush1.msra.mxu0 0.0
    %1854 = vmatprep.subr.mxu0 0.0
    %1855 = vmatpush1.msra.mxu0 0.0
    %1856 = vmatprep.subr.mxu0 0.0
    %1857 = vmatpush1.msra.mxu0 0.0
    %1858 = vmatprep.subr.mxu0 0.0
    %1859 = vmatpush1.msra.mxu0 0.0
    %1860 = vmatprep.subr.mxu0 0.0
    %1861 = vmatpush1.msra.mxu0 0.0
    %1862 = vmatprep.subr.mxu0 0.0
    %1863 = vmatpush1.msra.mxu0 0.0
    %1864 = vmatprep.mubr.f32.mxu0 0.0
    %1865 = vmatmul.mubr.f32.gmra.mrb[0].mxu0 %v1798
    %v1866 = vpop.f32.mrb[0].mxu0
    %v1867 = vadd.f32 %v1792, %v1866
    %v1868 = vpop.f32.mrb[0].mxu0
    %1869 = vdwg.mxu0
    %v1870 = vadd.f32 %v1867, %v470
    %v1871 = vxor.u32 %v1870, 2147483648
    %v1872 = vmul.f32 %v1871, 1.442695
    %v1873 = vpow.pop %v1872
    %v1874 = vadd.f32 %v1873, 1.0
    %v1875 = vrcp.pop %v1874
    %v1876 = vmul.f32 1.0, %v1875
    %v1877 = vtanh.pop %v1870
    %v1878 = vmul.f32 %v1876, %v1538
    %1880 = vrot.lane.b32.xlu0 %v1877, 64
    %v1881 = vpop.permute.xlu0 %1880
    %v1883 = vmul.f32 %v1876, %v1881
    %1885 = vrot.lane.b32.xlu0 %v1883, 32
    %v1886 = vpop.permute.xlu0 %1885
    %v1888 = vadd.f32 %v1878, %v1886
    %v1889 = vtanh.pop %v1888
    %1891 = vrot.lane.b32.xlu0 %v1889, 64
    %v1892 = vpop.permute.xlu0 %1891
    %v1894 = vmul.f32 %v1876, %v1892
    %s1895 = scalar_lea.vmem [#allocation5], 32
    %v1896 = vld [vmem:[%s1895] sm:$0xff]
    %1898 = vrot.lane.b32.xlu0 %v1894, 32
    %v1899 = vpop.permute.xlu0 %1898
    %v1901 = vmul.f32 %v1896, %v1899
    %v1902 = vmax.f32 %v1552, %v1901
    %s1903 = scalar_lea.vmem [#allocation2], 40
    %v1904 = vld [vmem:[%s1903] sm:$0xff]
    %1905 = vmatprep.subr.mxu0 0.0
    %1906 = vmatpush1.msra.mxu0 %v91
    %1907 = vmatprep.subr.mxu0 0.0
    %1908 = vmatpush1.msra.mxu0 %v92
    %1909 = vmatprep.subr.mxu0 0.0
    %1910 = vmatpush1.msra.mxu0 %v93
    %1911 = vmatprep.subr.mxu0 0.0
    %1912 = vmatpush1.msra.mxu0 %v94
    %1913 = vmatprep.subr.mxu0 0.0
    %1914 = vmatpush1.msra.mxu0 0.0
    %1915 = vmatprep.subr.mxu0 0.0
    %1916 = vmatpush1.msra.mxu0 0.0
    %1917 = vmatprep.subr.mxu0 0.0
    %1918 = vmatpush1.msra.mxu0 0.0
    %1919 = vmatprep.subr.mxu0 0.0
    %1920 = vmatpush1.msra.mxu0 0.0
    %1921 = vmatprep.subr.mxu0 0.0
    %1922 = vmatpush1.msra.mxu0 0.0
    %1923 = vmatprep.subr.mxu0 0.0
    %1924 = vmatpush1.msra.mxu0 0.0
    %1925 = vmatprep.subr.mxu0 0.0
    %1926 = vmatpush1.msra.mxu0 0.0
    %1927 = vmatprep.subr.mxu0 0.0
    %1928 = vmatpush1.msra.mxu0 0.0
    %1929 = vmatprep.subr.mxu0 0.0
    %1930 = vmatpush1.msra.mxu0 0.0
    %1931 = vmatprep.subr.mxu0 0.0
    %1932 = vmatpush1.msra.mxu0 0.0
    %1933 = vmatprep.subr.mxu0 0.0
    %1934 = vmatpush1.msra.mxu0 0.0
    %1935 = vmatprep.subr.mxu0 0.0
    %1936 = vmatpush1.msra.mxu0 0.0
    %1937 = vmatprep.subr.mxu0 0.0
    %1938 = vmatpush1.msra.mxu0 0.0
    %1939 = vmatprep.subr.mxu0 0.0
    %1940 = vmatpush1.msra.mxu0 0.0
    %1941 = vmatprep.subr.mxu0 0.0
    %1942 = vmatpush1.msra.mxu0 0.0
    %1943 = vmatprep.subr.mxu0 0.0
    %1944 = vmatpush1.msra.mxu0 0.0
    %1945 = vmatprep.subr.mxu0 0.0
    %1946 = vmatpush1.msra.mxu0 0.0
    %1947 = vmatprep.subr.mxu0 0.0
    %1948 = vmatpush1.msra.mxu0 0.0
    %1949 = vmatprep.subr.mxu0 0.0
    %1950 = vmatpush1.msra.mxu0 0.0
    %1951 = vmatprep.subr.mxu0 0.0
    %1952 = vmatpush1.msra.mxu0 0.0
    %1953 = vmatprep.subr.mxu0 0.0
    %1954 = vmatpush1.msra.mxu0 0.0
    %1955 = vmatprep.subr.mxu0 0.0
    %1956 = vmatpush1.msra.mxu0 0.0
    %1957 = vmatprep.subr.mxu0 0.0
    %1958 = vmatpush1.msra.mxu0 0.0
    %1959 = vmatprep.subr.mxu0 0.0
    %1960 = vmatpush1.msra.mxu0 0.0
    %1961 = vmatprep.subr.mxu0 0.0
    %1962 = vmatpush1.msra.mxu0 0.0
    %1963 = vmatprep.subr.mxu0 0.0
    %1964 = vmatpush1.msra.mxu0 0.0
    %1965 = vmatprep.subr.mxu0 0.0
    %1966 = vmatpush1.msra.mxu0 0.0
    %1967 = vmatprep.subr.mxu0 0.0
    %1968 = vmatpush1.msra.mxu0 0.0
    %1969 = vmatprep.mubr.f32.mxu0 0.0
    %1970 = vmatmul.mubr.f32.gmra.mrb[0].mxu0 %v1798
    %v1971 = vpop.f32.mrb[0].mxu0
    %v1972 = vadd.f32 0.0, %v1971
    %v1973 = vpop.f32.mrb[0].mxu0
    %1974 = vdwg.mxu0
    %v1976 = vsel %vm146, %v1904, 0
    %1978 = vmatprep.subr.mxu0 0.0
    %1979 = vmatpush1.msra.mxu0 %v87
    %1980 = vmatprep.subr.mxu0 0.0
    %1981 = vmatpush1.msra.mxu0 %v88
    %1982 = vmatprep.subr.mxu0 0.0
    %1983 = vmatpush1.msra.mxu0 %v89
    %1984 = vmatprep.subr.mxu0 0.0
    %1985 = vmatpush1.msra.mxu0 %v90
    %1986 = vmatprep.subr.mxu0 0.0
    %1987 = vmatpush1.msra.mxu0 0.0
    %1988 = vmatprep.subr.mxu0 0.0
    %1989 = vmatpush1.msra.mxu0 0.0
    %1990 = vmatprep.subr.mxu0 0.0
    %1991 = vmatpush1.msra.mxu0 0.0
    %1992 = vmatprep.subr.mxu0 0.0
    %1993 = vmatpush1.msra.mxu0 0.0
    %1994 = vmatprep.subr.mxu0 0.0
    %1995 = vmatpush1.msra.mxu0 0.0
    %1996 = vmatprep.subr.mxu0 0.0
    %1997 = vmatpush1.msra.mxu0 0.0
    %1998 = vmatprep.subr.mxu0 0.0
    %1999 = vmatpush1.msra.mxu0 0.0
    %2000 = vmatprep.subr.mxu0 0.0
    %2001 = vmatpush1.msra.mxu0 0.0
    %2002 = vmatprep.subr.mxu0 0.0
    %2003 = vmatpush1.msra.mxu0 0.0
    %2004 = vmatprep.subr.mxu0 0.0
    %2005 = vmatpush1.msra.mxu0 0.0
    %2006 = vmatprep.subr.mxu0 0.0
    %2007 = vmatpush1.msra.mxu0 0.0
    %2008 = vmatprep.subr.mxu0 0.0
    %2009 = vmatpush1.msra.mxu0 0.0
    %2010 = vmatprep.subr.mxu0 0.0
    %2011 = vmatpush1.msra.mxu0 0.0
    %2012 = vmatprep.subr.mxu0 0.0
    %2013 = vmatpush1.msra.mxu0 0.0
    %2014 = vmatprep.subr.mxu0 0.0
    %2015 = vmatpush1.msra.mxu0 0.0
    %2016 = vmatprep.subr.mxu0 0.0
    %2017 = vmatpush1.msra.mxu0 0.0
    %2018 = vmatprep.subr.mxu0 0.0
    %2019 = vmatpush1.msra.mxu0 0.0
    %2020 = vmatprep.subr.mxu0 0.0
    %2021 = vmatpush1.msra.mxu0 0.0
    %2022 = vmatprep.subr.mxu0 0.0
    %2023 = vmatpush1.msra.mxu0 0.0
    %2024 = vmatprep.subr.mxu0 0.0
    %2025 = vmatpush1.msra.mxu0 0.0
    %2026 = vmatprep.subr.mxu0 0.0
    %2027 = vmatpush1.msra.mxu0 0.0
    %2028 = vmatprep.subr.mxu0 0.0
    %2029 = vmatpush1.msra.mxu0 0.0
    %2030 = vmatprep.subr.mxu0 0.0
    %2031 = vmatpush1.msra.mxu0 0.0
    %2032 = vmatprep.subr.mxu0 0.0
    %2033 = vmatpush1.msra.mxu0 0.0
    %2034 = vmatprep.subr.mxu0 0.0
    %2035 = vmatpush1.msra.mxu0 0.0
    %2036 = vmatprep.subr.mxu0 0.0
    %2037 = vmatpush1.msra.mxu0 0.0
    %2038 = vmatprep.subr.mxu0 0.0
    %2039 = vmatpush1.msra.mxu0 0.0
    %2040 = vmatprep.subr.mxu0 0.0
    %2041 = vmatpush1.msra.mxu0 0.0
    %2042 = vmatprep.mubr.f32.mxu0 0.0
    %2043 = vmatmul.mubr.f32.gmra.mrb[0].mxu0 %v1976
    %v2044 = vpop.f32.mrb[0].mxu0
    %v2045 = vadd.f32 %v1972, %v2044
    %v2046 = vpop.f32.mrb[0].mxu0
    %2047 = vdwg.mxu0
    %v2048 = vadd.f32 %v2045, %v296
    %v2049 = vxor.u32 %v2048, 2147483648
    %v2050 = vmul.f32 %v2049, 1.442695
    %v2051 = vpow.pop %v2050
    %v2052 = vadd.f32 %v2051, 1.0
    %v2053 = vrcp.pop %v2052
    %v2054 = vmul.f32 1.0, %v2053
    %v2055 = vtanh.pop %v2048
    %v2056 = vmul.f32 %v2054, %v1716
    %2058 = vrot.lane.b32.xlu0 %v2055, 64
    %v2059 = vpop.permute.xlu0 %2058
    %v2061 = vmul.f32 %v2054, %v2059
    %2063 = vrot.lane.b32.xlu0 %v2061, 32
    %v2064 = vpop.permute.xlu0 %2063
    %v2066 = vadd.f32 %v2056, %v2064
    %v2067 = vtanh.pop %v2066
    %2069 = vrot.lane.b32.xlu0 %v2067, 64
    %v2070 = vpop.permute.xlu0 %2069
    %v2072 = vmul.f32 %v2054, %v2070
    %v2073 = vsel %vm146, %v1899, 0
    %2075 = vmatprep.subr.mxu0 0.0
    %2076 = vmatpush1.msra.mxu0 %v99
    %2077 = vmatprep.subr.mxu0 0.0
    %2078 = vmatpush1.msra.mxu0 %v100
    %2079 = vmatprep.subr.mxu0 0.0
    %2080 = vmatpush1.msra.mxu0 %v101
    %2081 = vmatprep.subr.mxu0 0.0
    %2082 = vmatpush1.msra.mxu0 %v102
    %2083 = vmatprep.subr.mxu0 0.0
    %2084 = vmatpush1.msra.mxu0 0.0
    %2085 = vmatprep.subr.mxu0 0.0
    %2086 = vmatpush1.msra.mxu0 0.0
    %2087 = vmatprep.subr.mxu0 0.0
    %2088 = vmatpush1.msra.mxu0 0.0
    %2089 = vmatprep.subr.mxu0 0.0
    %2090 = vmatpush1.msra.mxu0 0.0
    %2091 = vmatprep.subr.mxu0 0.0
    %2092 = vmatpush1.msra.mxu0 0.0
    %2093 = vmatprep.subr.mxu0 0.0
    %2094 = vmatpush1.msra.mxu0 0.0
    %2095 = vmatprep.subr.mxu0 0.0
    %2096 = vmatpush1.msra.mxu0 0.0
    %2097 = vmatprep.subr.mxu0 0.0
    %2098 = vmatpush1.msra.mxu0 0.0
    %2099 = vmatprep.subr.mxu0 0.0
    %2100 = vmatpush1.msra.mxu0 0.0
    %2101 = vmatprep.subr.mxu0 0.0
    %2102 = vmatpush1.msra.mxu0 0.0
    %2103 = vmatprep.subr.mxu0 0.0
    %2104 = vmatpush1.msra.mxu0 0.0
    %2105 = vmatprep.subr.mxu0 0.0
    %2106 = vmatpush1.msra.mxu0 0.0
    %2107 = vmatprep.subr.mxu0 0.0
    %2108 = vmatpush1.msra.mxu0 0.0
    %2109 = vmatprep.subr.mxu0 0.0
    %2110 = vmatpush1.msra.mxu0 0.0
    %2111 = vmatprep.subr.mxu0 0.0
    %2112 = vmatpush1.msra.mxu0 0.0
    %2113 = vmatprep.subr.mxu0 0.0
    %2114 = vmatpush1.msra.mxu0 0.0
    %2115 = vmatprep.subr.mxu0 0.0
    %2116 = vmatpush1.msra.mxu0 0.0
    %2117 = vmatprep.subr.mxu0 0.0
    %2118 = vmatpush1.msra.mxu0 0.0
    %2119 = vmatprep.subr.mxu0 0.0
    %2120 = vmatpush1.msra.mxu0 0.0
    %2121 = vmatprep.subr.mxu0 0.0
    %2122 = vmatpush1.msra.mxu0 0.0
    %2123 = vmatprep.subr.mxu0 0.0
    %2124 = vmatpush1.msra.mxu0 0.0
    %2125 = vmatprep.subr.mxu0 0.0
    %2126 = vmatpush1.msra.mxu0 0.0
    %2127 = vmatprep.subr.mxu0 0.0
    %2128 = vmatpush1.msra.mxu0 0.0
    %2129 = vmatprep.subr.mxu0 0.0
    %2130 = vmatpush1.msra.mxu0 0.0
    %2131 = vmatprep.subr.mxu0 0.0
    %2132 = vmatpush1.msra.mxu0 0.0
    %2133 = vmatprep.subr.mxu0 0.0
    %2134 = vmatpush1.msra.mxu0 0.0
    %2135 = vmatprep.subr.mxu0 0.0
    %2136 = vmatpush1.msra.mxu0 0.0
    %2137 = vmatprep.subr.mxu0 0.0
    %2138 = vmatpush1.msra.mxu0 0.0
    %2139 = vmatprep.mubr.f32.mxu0 0.0
    %2140 = vmatmul.mubr.f32.gmra.mrb[0].mxu0 %v2073
    %v2141 = vpop.f32.mrb[0].mxu0
    %v2142 = vadd.f32 0.0, %v2141
    %v2143 = vpop.f32.mrb[0].mxu0
    %2144 = vdwg.mxu0
    %2146 = vrot.lane.b32.xlu0 %v2072, 32
    %v2147 = vpop.permute.xlu0 %2146
    %v2148 = vsel %vm146, %v2147, 0
    %2150 = vmatprep.subr.mxu0 0.0
    %2151 = vmatpush1.msra.mxu0 %v95
    %2152 = vmatprep.subr.mxu0 0.0
    %2153 = vmatpush1.msra.mxu0 %v96
    %2154 = vmatprep.subr.mxu0 0.0
    %2155 = vmatpush1.msra.mxu0 %v97
    %2156 = vmatprep.subr.mxu0 0.0
    %2157 = vmatpush1.msra.mxu0 %v98
    %2158 = vmatprep.subr.mxu0 0.0
    %2159 = vmatpush1.msra.mxu0 0.0
    %2160 = vmatprep.subr.mxu0 0.0
    %2161 = vmatpush1.msra.mxu0 0.0
    %2162 = vmatprep.subr.mxu0 0.0
    %2163 = vmatpush1.msra.mxu0 0.0
    %2164 = vmatprep.subr.mxu0 0.0
    %2165 = vmatpush1.msra.mxu0 0.0
    %2166 = vmatprep.subr.mxu0 0.0
    %2167 = vmatpush1.msra.mxu0 0.0
    %2168 = vmatprep.subr.mxu0 0.0
    %2169 = vmatpush1.msra.mxu0 0.0
    %2170 = vmatprep.subr.mxu0 0.0
    %2171 = vmatpush1.msra.mxu0 0.0
    %2172 = vmatprep.subr.mxu0 0.0
    %2173 = vmatpush1.msra.mxu0 0.0
    %2174 = vmatprep.subr.mxu0 0.0
    %2175 = vmatpush1.msra.mxu0 0.0
    %2176 = vmatprep.subr.mxu0 0.0
    %2177 = vmatpush1.msra.mxu0 0.0
    %2178 = vmatprep.subr.mxu0 0.0
    %2179 = vmatpush1.msra.mxu0 0.0
    %2180 = vmatprep.subr.mxu0 0.0
    %2181 = vmatpush1.msra.mxu0 0.0
    %2182 = vmatprep.subr.mxu0 0.0
    %2183 = vmatpush1.msra.mxu0 0.0
    %2184 = vmatprep.subr.mxu0 0.0
    %2185 = vmatpush1.msra.mxu0 0.0
    %2186 = vmatprep.subr.mxu0 0.0
    %2187 = vmatpush1.msra.mxu0 0.0
    %2188 = vmatprep.subr.mxu0 0.0
    %2189 = vmatpush1.msra.mxu0 0.0
    %2190 = vmatprep.subr.mxu0 0.0
    %2191 = vmatpush1.msra.mxu0 0.0
    %2192 = vmatprep.subr.mxu0 0.0
    %2193 = vmatpush1.msra.mxu0 0.0
    %2194 = vmatprep.subr.mxu0 0.0
    %2195 = vmatpush1.msra.mxu0 0.0
    %2196 = vmatprep.subr.mxu0 0.0
    %2197 = vmatpush1.msra.mxu0 0.0
    %2198 = vmatprep.subr.mxu0 0.0
    %2199 = vmatpush1.msra.mxu0 0.0
    %2200 = vmatprep.subr.mxu0 0.0
    %2201 = vmatpush1.msra.mxu0 0.0
    %2202 = vmatprep.subr.mxu0 0.0
    %2203 = vmatpush1.msra.mxu0 0.0
    %2204 = vmatprep.subr.mxu0 0.0
    %2205 = vmatpush1.msra.mxu0 0.0
    %2206 = vmatprep.subr.mxu0 0.0
    %2207 = vmatpush1.msra.mxu0 0.0
    %2208 = vmatprep.subr.mxu0 0.0
    %2209 = vmatpush1.msra.mxu0 0.0
    %2210 = vmatprep.subr.mxu0 0.0
    %2211 = vmatpush1.msra.mxu0 0.0
    %2212 = vmatprep.subr.mxu0 0.0
    %2213 = vmatpush1.msra.mxu0 0.0
    %2214 = vmatprep.mubr.f32.mxu0 0.0
    %2215 = vmatmul.mubr.f32.gmra.mrb[0].mxu0 %v2148
    %v2216 = vpop.f32.mrb[0].mxu0
    %v2217 = vadd.f32 %v2142, %v2216
    %v2218 = vpop.f32.mrb[0].mxu0
    %2219 = vdwg.mxu0
    %v2220 = vadd.f32 %v2217, %v470
    %v2221 = vxor.u32 %v2220, 2147483648
    %v2222 = vmul.f32 %v2221, 1.442695
    %v2223 = vpow.pop %v2222
    %v2224 = vadd.f32 %v2223, 1.0
    %v2225 = vrcp.pop %v2224
    %v2226 = vmul.f32 1.0, %v2225
    %v2227 = vtanh.pop %v2220
    %v2228 = vmul.f32 %v2226, %v1888
    %2230 = vrot.lane.b32.xlu0 %v2227, 64
    %v2231 = vpop.permute.xlu0 %2230
    %v2233 = vmul.f32 %v2226, %v2231
    %2235 = vrot.lane.b32.xlu0 %v2233, 32
    %v2236 = vpop.permute.xlu0 %2235
    %v2238 = vadd.f32 %v2228, %v2236
    %v2239 = vtanh.pop %v2238
    %2241 = vrot.lane.b32.xlu0 %v2239, 64
    %v2242 = vpop.permute.xlu0 %2241
    %v2244 = vmul.f32 %v2226, %v2242
    %s2245 = scalar_lea.vmem [#allocation5], 40
    %v2246 = vld [vmem:[%s2245] sm:$0xff]
    %2248 = vrot.lane.b32.xlu0 %v2244, 32
    %v2249 = vpop.permute.xlu0 %2248
    %v2251 = vmul.f32 %v2246, %v2249
    %v2252 = vmax.f32 %v1902, %v2251
    %s2253 = scalar_lea.vmem [#allocation2], 48
    %v2254 = vld [vmem:[%s2253] sm:$0xff]
    %2255 = vmatprep.subr.mxu0 0.0
    %2256 = vmatpush1.msra.mxu0 %v91
    %2257 = vmatprep.subr.mxu0 0.0
    %2258 = vmatpush1.msra.mxu0 %v92
    %2259 = vmatprep.subr.mxu0 0.0
    %2260 = vmatpush1.msra.mxu0 %v93
    %2261 = vmatprep.subr.mxu0 0.0
    %2262 = vmatpush1.msra.mxu0 %v94
    %2263 = vmatprep.subr.mxu0 0.0
    %2264 = vmatpush1.msra.mxu0 0.0
    %2265 = vmatprep.subr.mxu0 0.0
    %2266 = vmatpush1.msra.mxu0 0.0
    %2267 = vmatprep.subr.mxu0 0.0
    %2268 = vmatpush1.msra.mxu0 0.0
    %2269 = vmatprep.subr.mxu0 0.0
    %2270 = vmatpush1.msra.mxu0 0.0
    %2271 = vmatprep.subr.mxu0 0.0
    %2272 = vmatpush1.msra.mxu0 0.0
    %2273 = vmatprep.subr.mxu0 0.0
    %2274 = vmatpush1.msra.mxu0 0.0
    %2275 = vmatprep.subr.mxu0 0.0
    %2276 = vmatpush1.msra.mxu0 0.0
    %2277 = vmatprep.subr.mxu0 0.0
    %2278 = vmatpush1.msra.mxu0 0.0
    %2279 = vmatprep.subr.mxu0 0.0
    %2280 = vmatpush1.msra.mxu0 0.0
    %2281 = vmatprep.subr.mxu0 0.0
    %2282 = vmatpush1.msra.mxu0 0.0
    %2283 = vmatprep.subr.mxu0 0.0
    %2284 = vmatpush1.msra.mxu0 0.0
    %2285 = vmatprep.subr.mxu0 0.0
    %2286 = vmatpush1.msra.mxu0 0.0
    %2287 = vmatprep.subr.mxu0 0.0
    %2288 = vmatpush1.msra.mxu0 0.0
    %2289 = vmatprep.subr.mxu0 0.0
    %2290 = vmatpush1.msra.mxu0 0.0
    %2291 = vmatprep.subr.mxu0 0.0
    %2292 = vmatpush1.msra.mxu0 0.0
    %2293 = vmatprep.subr.mxu0 0.0
    %2294 = vmatpush1.msra.mxu0 0.0
    %2295 = vmatprep.subr.mxu0 0.0
    %2296 = vmatpush1.msra.mxu0 0.0
    %2297 = vmatprep.subr.mxu0 0.0
    %2298 = vmatpush1.msra.mxu0 0.0
    %2299 = vmatprep.subr.mxu0 0.0
    %2300 = vmatpush1.msra.mxu0 0.0
    %2301 = vmatprep.subr.mxu0 0.0
    %2302 = vmatpush1.msra.mxu0 0.0
    %2303 = vmatprep.subr.mxu0 0.0
    %2304 = vmatpush1.msra.mxu0 0.0
    %2305 = vmatprep.subr.mxu0 0.0
    %2306 = vmatpush1.msra.mxu0 0.0
    %2307 = vmatprep.subr.mxu0 0.0
    %2308 = vmatpush1.msra.mxu0 0.0
    %2309 = vmatprep.subr.mxu0 0.0
    %2310 = vmatpush1.msra.mxu0 0.0
    %2311 = vmatprep.subr.mxu0 0.0
    %2312 = vmatpush1.msra.mxu0 0.0
    %2313 = vmatprep.subr.mxu0 0.0
    %2314 = vmatpush1.msra.mxu0 0.0
    %2315 = vmatprep.subr.mxu0 0.0
    %2316 = vmatpush1.msra.mxu0 0.0
    %2317 = vmatprep.subr.mxu0 0.0
    %2318 = vmatpush1.msra.mxu0 0.0
    %2319 = vmatprep.mubr.f32.mxu0 0.0
    %2320 = vmatmul.mubr.f32.gmra.mrb[0].mxu0 %v2148
    %v2321 = vpop.f32.mrb[0].mxu0
    %v2322 = vadd.f32 0.0, %v2321
    %v2323 = vpop.f32.mrb[0].mxu0
    %2324 = vdwg.mxu0
    %v2326 = vsel %vm146, %v2254, 0
    %2328 = vmatprep.subr.mxu0 0.0
    %2329 = vmatpush1.msra.mxu0 %v87
    %2330 = vmatprep.subr.mxu0 0.0
    %2331 = vmatpush1.msra.mxu0 %v88
    %2332 = vmatprep.subr.mxu0 0.0
    %2333 = vmatpush1.msra.mxu0 %v89
    %2334 = vmatprep.subr.mxu0 0.0
    %2335 = vmatpush1.msra.mxu0 %v90
    %2336 = vmatprep.subr.mxu0 0.0
    %2337 = vmatpush1.msra.mxu0 0.0
    %2338 = vmatprep.subr.mxu0 0.0
    %2339 = vmatpush1.msra.mxu0 0.0
    %2340 = vmatprep.subr.mxu0 0.0
    %2341 = vmatpush1.msra.mxu0 0.0
    %2342 = vmatprep.subr.mxu0 0.0
    %2343 = vmatpush1.msra.mxu0 0.0
    %2344 = vmatprep.subr.mxu0 0.0
    %2345 = vmatpush1.msra.mxu0 0.0
    %2346 = vmatprep.subr.mxu0 0.0
    %2347 = vmatpush1.msra.mxu0 0.0
    %2348 = vmatprep.subr.mxu0 0.0
    %2349 = vmatpush1.msra.mxu0 0.0
    %2350 = vmatprep.subr.mxu0 0.0
    %2351 = vmatpush1.msra.mxu0 0.0
    %2352 = vmatprep.subr.mxu0 0.0
    %2353 = vmatpush1.msra.mxu0 0.0
    %2354 = vmatprep.subr.mxu0 0.0
    %2355 = vmatpush1.msra.mxu0 0.0
    %2356 = vmatprep.subr.mxu0 0.0
    %2357 = vmatpush1.msra.mxu0 0.0
    %2358 = vmatprep.subr.mxu0 0.0
    %2359 = vmatpush1.msra.mxu0 0.0
    %2360 = vmatprep.subr.mxu0 0.0
    %2361 = vmatpush1.msra.mxu0 0.0
    %2362 = vmatprep.subr.mxu0 0.0
    %2363 = vmatpush1.msra.mxu0 0.0
    %2364 = vmatprep.subr.mxu0 0.0
    %2365 = vmatpush1.msra.mxu0 0.0
    %2366 = vmatprep.subr.mxu0 0.0
    %2367 = vmatpush1.msra.mxu0 0.0
    %2368 = vmatprep.subr.mxu0 0.0
    %2369 = vmatpush1.msra.mxu0 0.0
    %2370 = vmatprep.subr.mxu0 0.0
    %2371 = vmatpush1.msra.mxu0 0.0
    %2372 = vmatprep.subr.mxu0 0.0
    %2373 = vmatpush1.msra.mxu0 0.0
    %2374 = vmatprep.subr.mxu0 0.0
    %2375 = vmatpush1.msra.mxu0 0.0
    %2376 = vmatprep.subr.mxu0 0.0
    %2377 = vmatpush1.msra.mxu0 0.0
    %2378 = vmatprep.subr.mxu0 0.0
    %2379 = vmatpush1.msra.mxu0 0.0
    %2380 = vmatprep.subr.mxu0 0.0
    %2381 = vmatpush1.msra.mxu0 0.0
    %2382 = vmatprep.subr.mxu0 0.0
    %2383 = vmatpush1.msra.mxu0 0.0
    %2384 = vmatprep.subr.mxu0 0.0
    %2385 = vmatpush1.msra.mxu0 0.0
    %2386 = vmatprep.subr.mxu0 0.0
    %2387 = vmatpush1.msra.mxu0 0.0
    %2388 = vmatprep.subr.mxu0 0.0
    %2389 = vmatpush1.msra.mxu0 0.0
    %2390 = vmatprep.subr.mxu0 0.0
    %2391 = vmatpush1.msra.mxu0 0.0
    %2392 = vmatprep.mubr.f32.mxu0 0.0
    %2393 = vmatmul.mubr.f32.gmra.mrb[0].mxu0 %v2326
    %v2394 = vpop.f32.mrb[0].mxu0
    %v2395 = vadd.f32 %v2322, %v2394
    %v2396 = vpop.f32.mrb[0].mxu0
    %2397 = vdwg.mxu0
    %v2398 = vadd.f32 %v2395, %v296
    %v2399 = vxor.u32 %v2398, 2147483648
    %v2400 = vmul.f32 %v2399, 1.442695
    %v2401 = vpow.pop %v2400
    %v2402 = vadd.f32 %v2401, 1.0
    %v2403 = vrcp.pop %v2402
    %v2404 = vmul.f32 1.0, %v2403
    %v2405 = vtanh.pop %v2398
    %v2406 = vmul.f32 %v2404, %v2066
    %2408 = vrot.lane.b32.xlu0 %v2405, 64
    %v2409 = vpop.permute.xlu0 %2408
    %v2411 = vmul.f32 %v2404, %v2409
    %2413 = vrot.lane.b32.xlu0 %v2411, 32
    %v2414 = vpop.permute.xlu0 %2413
    %v2416 = vadd.f32 %v2406, %v2414
    %v2417 = vtanh.pop %v2416
    %2419 = vrot.lane.b32.xlu0 %v2417, 64
    %v2420 = vpop.permute.xlu0 %2419
    %v2422 = vmul.f32 %v2404, %v2420
    %v2423 = vsel %vm146, %v2249, 0
    %2425 = vmatprep.subr.mxu0 0.0
    %2426 = vmatpush1.msra.mxu0 %v99
    %2427 = vmatprep.subr.mxu0 0.0
    %2428 = vmatpush1.msra.mxu0 %v100
    %2429 = vmatprep.subr.mxu0 0.0
    %2430 = vmatpush1.msra.mxu0 %v101
    %2431 = vmatprep.subr.mxu0 0.0
    %2432 = vmatpush1.msra.mxu0 %v102
    %2433 = vmatprep.subr.mxu0 0.0
    %2434 = vmatpush1.msra.mxu0 0.0
    %2435 = vmatprep.subr.mxu0 0.0
    %2436 = vmatpush1.msra.mxu0 0.0
    %2437 = vmatprep.subr.mxu0 0.0
    %2438 = vmatpush1.msra.mxu0 0.0
    %2439 = vmatprep.subr.mxu0 0.0
    %2440 = vmatpush1.msra.mxu0 0.0
    %2441 = vmatprep.subr.mxu0 0.0
    %2442 = vmatpush1.msra.mxu0 0.0
    %2443 = vmatprep.subr.mxu0 0.0
    %2444 = vmatpush1.msra.mxu0 0.0
    %2445 = vmatprep.subr.mxu0 0.0
    %2446 = vmatpush1.msra.mxu0 0.0
    %2447 = vmatprep.subr.mxu0 0.0
    %2448 = vmatpush1.msra.mxu0 0.0
    %2449 = vmatprep.subr.mxu0 0.0
    %2450 = vmatpush1.msra.mxu0 0.0
    %2451 = vmatprep.subr.mxu0 0.0
    %2452 = vmatpush1.msra.mxu0 0.0
    %2453 = vmatprep.subr.mxu0 0.0
    %2454 = vmatpush1.msra.mxu0 0.0
    %2455 = vmatprep.subr.mxu0 0.0
    %2456 = vmatpush1.msra.mxu0 0.0
    %2457 = vmatprep.subr.mxu0 0.0
    %2458 = vmatpush1.msra.mxu0 0.0
    %2459 = vmatprep.subr.mxu0 0.0
    %2460 = vmatpush1.msra.mxu0 0.0
    %2461 = vmatprep.subr.mxu0 0.0
    %2462 = vmatpush1.msra.mxu0 0.0
    %2463 = vmatprep.subr.mxu0 0.0
    %2464 = vmatpush1.msra.mxu0 0.0
    %2465 = vmatprep.subr.mxu0 0.0
    %2466 = vmatpush1.msra.mxu0 0.0
    %2467 = vmatprep.subr.mxu0 0.0
    %2468 = vmatpush1.msra.mxu0 0.0
    %2469 = vmatprep.subr.mxu0 0.0
    %2470 = vmatpush1.msra.mxu0 0.0
    %2471 = vmatprep.subr.mxu0 0.0
    %2472 = vmatpush1.msra.mxu0 0.0
    %2473 = vmatprep.subr.mxu0 0.0
    %2474 = vmatpush1.msra.mxu0 0.0
    %2475 = vmatprep.subr.mxu0 0.0
    %2476 = vmatpush1.msra.mxu0 0.0
    %2477 = vmatprep.subr.mxu0 0.0
    %2478 = vmatpush1.msra.mxu0 0.0
    %2479 = vmatprep.subr.mxu0 0.0
    %2480 = vmatpush1.msra.mxu0 0.0
    %2481 = vmatprep.subr.mxu0 0.0
    %2482 = vmatpush1.msra.mxu0 0.0
    %2483 = vmatprep.subr.mxu0 0.0
    %2484 = vmatpush1.msra.mxu0 0.0
    %2485 = vmatprep.subr.mxu0 0.0
    %2486 = vmatpush1.msra.mxu0 0.0
    %2487 = vmatprep.subr.mxu0 0.0
    %2488 = vmatpush1.msra.mxu0 0.0
    %2489 = vmatprep.mubr.f32.mxu0 0.0
    %2490 = vmatmul.mubr.f32.gmra.mrb[0].mxu0 %v2423
    %v2491 = vpop.f32.mrb[0].mxu0
    %v2492 = vadd.f32 0.0, %v2491
    %v2493 = vpop.f32.mrb[0].mxu0
    %2494 = vdwg.mxu0
    %2496 = vrot.lane.b32.xlu0 %v2422, 32
    %v2497 = vpop.permute.xlu0 %2496
    %v2498 = vsel %vm146, %v2497, 0
    %2500 = vmatprep.subr.mxu0 0.0
    %2501 = vmatpush1.msra.mxu0 %v95
    %2502 = vmatprep.subr.mxu0 0.0
    %2503 = vmatpush1.msra.mxu0 %v96
    %2504 = vmatprep.subr.mxu0 0.0
    %2505 = vmatpush1.msra.mxu0 %v97
    %2506 = vmatprep.subr.mxu0 0.0
    %2507 = vmatpush1.msra.mxu0 %v98
    %2508 = vmatprep.subr.mxu0 0.0
    %2509 = vmatpush1.msra.mxu0 0.0
    %2510 = vmatprep.subr.mxu0 0.0
    %2511 = vmatpush1.msra.mxu0 0.0
    %2512 = vmatprep.subr.mxu0 0.0
    %2513 = vmatpush1.msra.mxu0 0.0
    %2514 = vmatprep.subr.mxu0 0.0
    %2515 = vmatpush1.msra.mxu0 0.0
    %2516 = vmatprep.subr.mxu0 0.0
    %2517 = vmatpush1.msra.mxu0 0.0
    %2518 = vmatprep.subr.mxu0 0.0
    %2519 = vmatpush1.msra.mxu0 0.0
    %2520 = vmatprep.subr.mxu0 0.0
    %2521 = vmatpush1.msra.mxu0 0.0
    %2522 = vmatprep.subr.mxu0 0.0
    %2523 = vmatpush1.msra.mxu0 0.0
    %2524 = vmatprep.subr.mxu0 0.0
    %2525 = vmatpush1.msra.mxu0 0.0
    %2526 = vmatprep.subr.mxu0 0.0
    %2527 = vmatpush1.msra.mxu0 0.0
    %2528 = vmatprep.subr.mxu0 0.0
    %2529 = vmatpush1.msra.mxu0 0.0
    %2530 = vmatprep.subr.mxu0 0.0
    %2531 = vmatpush1.msra.mxu0 0.0
    %2532 = vmatprep.subr.mxu0 0.0
    %2533 = vmatpush1.msra.mxu0 0.0
    %2534 = vmatprep.subr.mxu0 0.0
    %2535 = vmatpush1.msra.mxu0 0.0
    %2536 = vmatprep.subr.mxu0 0.0
    %2537 = vmatpush1.msra.mxu0 0.0
    %2538 = vmatprep.subr.mxu0 0.0
    %2539 = vmatpush1.msra.mxu0 0.0
    %2540 = vmatprep.subr.mxu0 0.0
    %2541 = vmatpush1.msra.mxu0 0.0
    %2542 = vmatprep.subr.mxu0 0.0
    %2543 = vmatpush1.msra.mxu0 0.0
    %2544 = vmatprep.subr.mxu0 0.0
    %2545 = vmatpush1.msra.mxu0 0.0
    %2546 = vmatprep.subr.mxu0 0.0
    %2547 = vmatpush1.msra.mxu0 0.0
    %2548 = vmatprep.subr.mxu0 0.0
    %2549 = vmatpush1.msra.mxu0 0.0
    %2550 = vmatprep.subr.mxu0 0.0
    %2551 = vmatpush1.msra.mxu0 0.0
    %2552 = vmatprep.subr.mxu0 0.0
    %2553 = vmatpush1.msra.mxu0 0.0
    %2554 = vmatprep.subr.mxu0 0.0
    %2555 = vmatpush1.msra.mxu0 0.0
    %2556 = vmatprep.subr.mxu0 0.0
    %2557 = vmatpush1.msra.mxu0 0.0
    %2558 = vmatprep.subr.mxu0 0.0
    %2559 = vmatpush1.msra.mxu0 0.0
    %2560 = vmatprep.subr.mxu0 0.0
    %2561 = vmatpush1.msra.mxu0 0.0
    %2562 = vmatprep.subr.mxu0 0.0
    %2563 = vmatpush1.msra.mxu0 0.0
    %2564 = vmatprep.mubr.f32.mxu0 0.0
    %2565 = vmatmul.mubr.f32.gmra.mrb[0].mxu0 %v2498
    %v2566 = vpop.f32.mrb[0].mxu0
    %v2567 = vadd.f32 %v2492, %v2566
    %v2568 = vpop.f32.mrb[0].mxu0
    %2569 = vdwg.mxu0
    %v2570 = vadd.f32 %v2567, %v470
    %v2571 = vxor.u32 %v2570, 2147483648
    %v2572 = vmul.f32 %v2571, 1.442695
    %v2573 = vpow.pop %v2572
    %v2574 = vadd.f32 %v2573, 1.0
    %v2575 = vrcp.pop %v2574
    %v2576 = vmul.f32 1.0, %v2575
    %v2577 = vtanh.pop %v2570
    %v2578 = vmul.f32 %v2576, %v2238
    %2580 = vrot.lane.b32.xlu0 %v2577, 64
    %v2581 = vpop.permute.xlu0 %2580
    %v2583 = vmul.f32 %v2576, %v2581
    %2585 = vrot.lane.b32.xlu0 %v2583, 32
    %v2586 = vpop.permute.xlu0 %2585
    %v2588 = vadd.f32 %v2578, %v2586
    %v2589 = vtanh.pop %v2588
    %2591 = vrot.lane.b32.xlu0 %v2589, 64
    %v2592 = vpop.permute.xlu0 %2591
    %v2594 = vmul.f32 %v2576, %v2592
    %s2595 = scalar_lea.vmem [#allocation5], 48
    %v2596 = vld [vmem:[%s2595] sm:$0xff]
    %2598 = vrot.lane.b32.xlu0 %v2594, 32
    %v2599 = vpop.permute.xlu0 %2598
    %v2601 = vmul.f32 %v2596, %v2599
    %v2602 = vmax.f32 %v2252, %v2601
    %s2603 = scalar_lea.vmem [#allocation2], 56
    %v2604 = vld [vmem:[%s2603] sm:$0xff]
    %2605 = vmatprep.subr.mxu0 0.0
    %2606 = vmatpush1.msra.mxu0 %v91
    %2607 = vmatprep.subr.mxu0 0.0
    %2608 = vmatpush1.msra.mxu0 %v92
    %2609 = vmatprep.subr.mxu0 0.0
    %2610 = vmatpush1.msra.mxu0 %v93
    %2611 = vmatprep.subr.mxu0 0.0
    %2612 = vmatpush1.msra.mxu0 %v94
    %2613 = vmatprep.subr.mxu0 0.0
    %2614 = vmatpush1.msra.mxu0 0.0
    %2615 = vmatprep.subr.mxu0 0.0
    %2616 = vmatpush1.msra.mxu0 0.0
    %2617 = vmatprep.subr.mxu0 0.0
    %2618 = vmatpush1.msra.mxu0 0.0
    %2619 = vmatprep.subr.mxu0 0.0
    %2620 = vmatpush1.msra.mxu0 0.0
    %2621 = vmatprep.subr.mxu0 0.0
    %2622 = vmatpush1.msra.mxu0 0.0
    %2623 = vmatprep.subr.mxu0 0.0
    %2624 = vmatpush1.msra.mxu0 0.0
    %2625 = vmatprep.subr.mxu0 0.0
    %2626 = vmatpush1.msra.mxu0 0.0
    %2627 = vmatprep.subr.mxu0 0.0
    %2628 = vmatpush1.msra.mxu0 0.0
    %2629 = vmatprep.subr.mxu0 0.0
    %2630 = vmatpush1.msra.mxu0 0.0
    %2631 = vmatprep.subr.mxu0 0.0
    %2632 = vmatpush1.msra.mxu0 0.0
    %2633 = vmatprep.subr.mxu0 0.0
    %2634 = vmatpush1.msra.mxu0 0.0
    %2635 = vmatprep.subr.mxu0 0.0
    %2636 = vmatpush1.msra.mxu0 0.0
    %2637 = vmatprep.subr.mxu0 0.0
    %2638 = vmatpush1.msra.mxu0 0.0
    %2639 = vmatprep.subr.mxu0 0.0
    %2640 = vmatpush1.msra.mxu0 0.0
    %2641 = vmatprep.subr.mxu0 0.0
    %2642 = vmatpush1.msra.mxu0 0.0
    %2643 = vmatprep.subr.mxu0 0.0
    %2644 = vmatpush1.msra.mxu0 0.0
    %2645 = vmatprep.subr.mxu0 0.0
    %2646 = vmatpush1.msra.mxu0 0.0
    %2647 = vmatprep.subr.mxu0 0.0
    %2648 = vmatpush1.msra.mxu0 0.0
    %2649 = vmatprep.subr.mxu0 0.0
    %2650 = vmatpush1.msra.mxu0 0.0
    %2651 = vmatprep.subr.mxu0 0.0
    %2652 = vmatpush1.msra.mxu0 0.0
    %2653 = vmatprep.subr.mxu0 0.0
    %2654 = vmatpush1.msra.mxu0 0.0
    %2655 = vmatprep.subr.mxu0 0.0
    %2656 = vmatpush1.msra.mxu0 0.0
    %2657 = vmatprep.subr.mxu0 0.0
    %2658 = vmatpush1.msra.mxu0 0.0
    %2659 = vmatprep.subr.mxu0 0.0
    %2660 = vmatpush1.msra.mxu0 0.0
    %2661 = vmatprep.subr.mxu0 0.0
    %2662 = vmatpush1.msra.mxu0 0.0
    %2663 = vmatprep.subr.mxu0 0.0
    %2664 = vmatpush1.msra.mxu0 0.0
    %2665 = vmatprep.subr.mxu0 0.0
    %2666 = vmatpush1.msra.mxu0 0.0
    %2667 = vmatprep.subr.mxu0 0.0
    %2668 = vmatpush1.msra.mxu0 0.0
    %2669 = vmatprep.mubr.f32.mxu0 0.0
    %2670 = vmatmul.mubr.f32.gmra.mrb[0].mxu0 %v2498
    %v2671 = vpop.f32.mrb[0].mxu0
    %v2672 = vadd.f32 0.0, %v2671
    %v2673 = vpop.f32.mrb[0].mxu0
    %2674 = vdwg.mxu0
    %v2676 = vsel %vm146, %v2604, 0
    %2678 = vmatprep.subr.mxu0 0.0
    %2679 = vmatpush1.msra.mxu0 %v87
    %2680 = vmatprep.subr.mxu0 0.0
    %2681 = vmatpush1.msra.mxu0 %v88
    %2682 = vmatprep.subr.mxu0 0.0
    %2683 = vmatpush1.msra.mxu0 %v89
    %2684 = vmatprep.subr.mxu0 0.0
    %2685 = vmatpush1.msra.mxu0 %v90
    %2686 = vmatprep.subr.mxu0 0.0
    %2687 = vmatpush1.msra.mxu0 0.0
    %2688 = vmatprep.subr.mxu0 0.0
    %2689 = vmatpush1.msra.mxu0 0.0
    %2690 = vmatprep.subr.mxu0 0.0
    %2691 = vmatpush1.msra.mxu0 0.0
    %2692 = vmatprep.subr.mxu0 0.0
    %2693 = vmatpush1.msra.mxu0 0.0
    %2694 = vmatprep.subr.mxu0 0.0
    %2695 = vmatpush1.msra.mxu0 0.0
    %2696 = vmatprep.subr.mxu0 0.0
    %2697 = vmatpush1.msra.mxu0 0.0
    %2698 = vmatprep.subr.mxu0 0.0
    %2699 = vmatpush1.msra.mxu0 0.0
    %2700 = vmatprep.subr.mxu0 0.0
    %2701 = vmatpush1.msra.mxu0 0.0
    %2702 = vmatprep.subr.mxu0 0.0
    %2703 = vmatpush1.msra.mxu0 0.0
    %2704 = vmatprep.subr.mxu0 0.0
    %2705 = vmatpush1.msra.mxu0 0.0
    %2706 = vmatprep.subr.mxu0 0.0
    %2707 = vmatpush1.msra.mxu0 0.0
    %2708 = vmatprep.subr.mxu0 0.0
    %2709 = vmatpush1.msra.mxu0 0.0
    %2710 = vmatprep.subr.mxu0 0.0
    %2711 = vmatpush1.msra.mxu0 0.0
    %2712 = vmatprep.subr.mxu0 0.0
    %2713 = vmatpush1.msra.mxu0 0.0
    %2714 = vmatprep.subr.mxu0 0.0
    %2715 = vmatpush1.msra.mxu0 0.0
    %2716 = vmatprep.subr.mxu0 0.0
    %2717 = vmatpush1.msra.mxu0 0.0
    %2718 = vmatprep.subr.mxu0 0.0
    %2719 = vmatpush1.msra.mxu0 0.0
    %2720 = vmatprep.subr.mxu0 0.0
    %2721 = vmatpush1.msra.mxu0 0.0
    %2722 = vmatprep.subr.mxu0 0.0
    %2723 = vmatpush1.msra.mxu0 0.0
    %2724 = vmatprep.subr.mxu0 0.0
    %2725 = vmatpush1.msra.mxu0 0.0
    %2726 = vmatprep.subr.mxu0 0.0
    %2727 = vmatpush1.msra.mxu0 0.0
    %2728 = vmatprep.subr.mxu0 0.0
    %2729 = vmatpush1.msra.mxu0 0.0
    %2730 = vmatprep.subr.mxu0 0.0
    %2731 = vmatpush1.msra.mxu0 0.0
    %2732 = vmatprep.subr.mxu0 0.0
    %2733 = vmatpush1.msra.mxu0 0.0
    %2734 = vmatprep.subr.mxu0 0.0
    %2735 = vmatpush1.msra.mxu0 0.0
    %2736 = vmatprep.subr.mxu0 0.0
    %2737 = vmatpush1.msra.mxu0 0.0
    %2738 = vmatprep.subr.mxu0 0.0
    %2739 = vmatpush1.msra.mxu0 0.0
    %2740 = vmatprep.subr.mxu0 0.0
    %2741 = vmatpush1.msra.mxu0 0.0
    %2742 = vmatprep.mubr.f32.mxu0 0.0
    %2743 = vmatmul.mubr.f32.gmra.mrb[0].mxu0 %v2676
    %v2744 = vpop.f32.mrb[0].mxu0
    %v2745 = vadd.f32 %v2672, %v2744
    %v2746 = vpop.f32.mrb[0].mxu0
    %2747 = vdwg.mxu0
    %v2748 = vadd.f32 %v2745, %v296
    %v2749 = vxor.u32 %v2748, 2147483648
    %v2750 = vmul.f32 %v2749, 1.442695
    %v2751 = vpow.pop %v2750
    %v2752 = vadd.f32 %v2751, 1.0
    %v2753 = vrcp.pop %v2752
    %v2754 = vmul.f32 1.0, %v2753
    %v2755 = vtanh.pop %v2748
    %v2756 = vmul.f32 %v2754, %v2416
    %2758 = vrot.lane.b32.xlu0 %v2755, 64
    %v2759 = vpop.permute.xlu0 %2758
    %v2761 = vmul.f32 %v2754, %v2759
    %2763 = vrot.lane.b32.xlu0 %v2761, 32
    %v2764 = vpop.permute.xlu0 %2763
    %v2766 = vadd.f32 %v2756, %v2764
    %v2767 = vtanh.pop %v2766
    %2769 = vrot.lane.b32.xlu0 %v2767, 64
    %v2770 = vpop.permute.xlu0 %2769
    %v2772 = vmul.f32 %v2754, %v2770
    %v2773 = vsel %vm146, %v2599, 0
    %2775 = vmatprep.subr.mxu0 0.0
    %2776 = vmatpush1.msra.mxu0 %v99
    %2777 = vmatprep.subr.mxu0 0.0
    %2778 = vmatpush1.msra.mxu0 %v100
    %2779 = vmatprep.subr.mxu0 0.0
    %2780 = vmatpush1.msra.mxu0 %v101
    %2781 = vmatprep.subr.mxu0 0.0
    %2782 = vmatpush1.msra.mxu0 %v102
    %2783 = vmatprep.subr.mxu0 0.0
    %2784 = vmatpush1.msra.mxu0 0.0
    %2785 = vmatprep.subr.mxu0 0.0
    %2786 = vmatpush1.msra.mxu0 0.0
    %2787 = vmatprep.subr.mxu0 0.0
    %2788 = vmatpush1.msra.mxu0 0.0
    %2789 = vmatprep.subr.mxu0 0.0
    %2790 = vmatpush1.msra.mxu0 0.0
    %2791 = vmatprep.subr.mxu0 0.0
    %2792 = vmatpush1.msra.mxu0 0.0
    %2793 = vmatprep.subr.mxu0 0.0
    %2794 = vmatpush1.msra.mxu0 0.0
    %2795 = vmatprep.subr.mxu0 0.0
    %2796 = vmatpush1.msra.mxu0 0.0
    %2797 = vmatprep.subr.mxu0 0.0
    %2798 = vmatpush1.msra.mxu0 0.0
    %2799 = vmatprep.subr.mxu0 0.0
    %2800 = vmatpush1.msra.mxu0 0.0
    %2801 = vmatprep.subr.mxu0 0.0
    %2802 = vmatpush1.msra.mxu0 0.0
    %2803 = vmatprep.subr.mxu0 0.0
    %2804 = vmatpush1.msra.mxu0 0.0
    %2805 = vmatprep.subr.mxu0 0.0
    %2806 = vmatpush1.msra.mxu0 0.0
    %2807 = vmatprep.subr.mxu0 0.0
    %2808 = vmatpush1.msra.mxu0 0.0
    %2809 = vmatprep.subr.mxu0 0.0
    %2810 = vmatpush1.msra.mxu0 0.0
    %2811 = vmatprep.subr.mxu0 0.0
    %2812 = vmatpush1.msra.mxu0 0.0
    %2813 = vmatprep.subr.mxu0 0.0
    %2814 = vmatpush1.msra.mxu0 0.0
    %2815 = vmatprep.subr.mxu0 0.0
    %2816 = vmatpush1.msra.mxu0 0.0
    %2817 = vmatprep.subr.mxu0 0.0
    %2818 = vmatpush1.msra.mxu0 0.0
    %2819 = vmatprep.subr.mxu0 0.0
    %2820 = vmatpush1.msra.mxu0 0.0
    %2821 = vmatprep.subr.mxu0 0.0
    %2822 = vmatpush1.msra.mxu0 0.0
    %2823 = vmatprep.subr.mxu0 0.0
    %2824 = vmatpush1.msra.mxu0 0.0
    %2825 = vmatprep.subr.mxu0 0.0
    %2826 = vmatpush1.msra.mxu0 0.0
    %2827 = vmatprep.subr.mxu0 0.0
    %2828 = vmatpush1.msra.mxu0 0.0
    %2829 = vmatprep.subr.mxu0 0.0
    %2830 = vmatpush1.msra.mxu0 0.0
    %2831 = vmatprep.subr.mxu0 0.0
    %2832 = vmatpush1.msra.mxu0 0.0
    %2833 = vmatprep.subr.mxu0 0.0
    %2834 = vmatpush1.msra.mxu0 0.0
    %2835 = vmatprep.subr.mxu0 0.0
    %2836 = vmatpush1.msra.mxu0 0.0
    %2837 = vmatprep.subr.mxu0 0.0
    %2838 = vmatpush1.msra.mxu0 0.0
    %2839 = vmatprep.mubr.f32.mxu0 0.0
    %2840 = vmatmul.mubr.f32.gmra.mrb[0].mxu0 %v2773
    %v2841 = vpop.f32.mrb[0].mxu0
    %v2842 = vadd.f32 0.0, %v2841
    %v2843 = vpop.f32.mrb[0].mxu0
    %2844 = vdwg.mxu0
    %2846 = vrot.lane.b32.xlu0 %v2772, 32
    %v2847 = vpop.permute.xlu0 %2846
    %v2848 = vsel %vm146, %v2847, 0
    %2850 = vmatprep.subr.mxu0 0.0
    %2851 = vmatpush1.msra.mxu0 %v95
    %2852 = vmatprep.subr.mxu0 0.0
    %2853 = vmatpush1.msra.mxu0 %v96
    %2854 = vmatprep.subr.mxu0 0.0
    %2855 = vmatpush1.msra.mxu0 %v97
    %2856 = vmatprep.subr.mxu0 0.0
    %2857 = vmatpush1.msra.mxu0 %v98
    %2858 = vmatprep.subr.mxu0 0.0
    %2859 = vmatpush1.msra.mxu0 0.0
    %2860 = vmatprep.subr.mxu0 0.0
    %2861 = vmatpush1.msra.mxu0 0.0
    %2862 = vmatprep.subr.mxu0 0.0
    %2863 = vmatpush1.msra.mxu0 0.0
    %2864 = vmatprep.subr.mxu0 0.0
    %2865 = vmatpush1.msra.mxu0 0.0
    %2866 = vmatprep.subr.mxu0 0.0
    %2867 = vmatpush1.msra.mxu0 0.0
    %2868 = vmatprep.subr.mxu0 0.0
    %2869 = vmatpush1.msra.mxu0 0.0
    %2870 = vmatprep.subr.mxu0 0.0
    %2871 = vmatpush1.msra.mxu0 0.0
    %2872 = vmatprep.subr.mxu0 0.0
    %2873 = vmatpush1.msra.mxu0 0.0
    %2874 = vmatprep.subr.mxu0 0.0
    %2875 = vmatpush1.msra.mxu0 0.0
    %2876 = vmatprep.subr.mxu0 0.0
    %2877 = vmatpush1.msra.mxu0 0.0
    %2878 = vmatprep.subr.mxu0 0.0
    %2879 = vmatpush1.msra.mxu0 0.0
    %2880 = vmatprep.subr.mxu0 0.0
    %2881 = vmatpush1.msra.mxu0 0.0
    %2882 = vmatprep.subr.mxu0 0.0
    %2883 = vmatpush1.msra.mxu0 0.0
    %2884 = vmatprep.subr.mxu0 0.0
    %2885 = vmatpush1.msra.mxu0 0.0
    %2886 = vmatprep.subr.mxu0 0.0
    %2887 = vmatpush1.msra.mxu0 0.0
    %2888 = vmatprep.subr.mxu0 0.0
    %2889 = vmatpush1.msra.mxu0 0.0
    %2890 = vmatprep.subr.mxu0 0.0
    %2891 = vmatpush1.msra.mxu0 0.0
    %2892 = vmatprep.subr.mxu0 0.0
    %2893 = vmatpush1.msra.mxu0 0.0
    %2894 = vmatprep.subr.mxu0 0.0
    %2895 = vmatpush1.msra.mxu0 0.0
    %2896 = vmatprep.subr.mxu0 0.0
    %2897 = vmatpush1.msra.mxu0 0.0
    %2898 = vmatprep.subr.mxu0 0.0
    %2899 = vmatpush1.msra.mxu0 0.0
    %2900 = vmatprep.subr.mxu0 0.0
    %2901 = vmatpush1.msra.mxu0 0.0
    %2902 = vmatprep.subr.mxu0 0.0
    %2903 = vmatpush1.msra.mxu0 0.0
    %2904 = vmatprep.subr.mxu0 0.0
    %2905 = vmatpush1.msra.mxu0 0.0
    %2906 = vmatprep.subr.mxu0 0.0
    %2907 = vmatpush1.msra.mxu0 0.0
    %2908 = vmatprep.subr.mxu0 0.0
    %2909 = vmatpush1.msra.mxu0 0.0
    %2910 = vmatprep.subr.mxu0 0.0
    %2911 = vmatpush1.msra.mxu0 0.0
    %2912 = vmatprep.subr.mxu0 0.0
    %2913 = vmatpush1.msra.mxu0 0.0
    %2914 = vmatprep.mubr.f32.mxu0 0.0
    %2915 = vmatmul.mubr.f32.gmra.mrb[0].mxu0 %v2848
    %v2916 = vpop.f32.mrb[0].mxu0
    %v2917 = vadd.f32 %v2842, %v2916
    %v2918 = vpop.f32.mrb[0].mxu0
    %2919 = vdwg.mxu0
    %v2920 = vadd.f32 %v2917, %v470
    %v2921 = vxor.u32 %v2920, 2147483648
    %v2922 = vmul.f32 %v2921, 1.442695
    %v2923 = vpow.pop %v2922
    %v2924 = vadd.f32 %v2923, 1.0
    %v2925 = vrcp.pop %v2924
    %v2926 = vmul.f32 1.0, %v2925
    %v2927 = vtanh.pop %v2920
    %v2928 = vmul.f32 %v2926, %v2588
    %2930 = vrot.lane.b32.xlu0 %v2927, 64
    %v2931 = vpop.permute.xlu0 %2930
    %v2933 = vmul.f32 %v2926, %v2931
    %2935 = vrot.lane.b32.xlu0 %v2933, 32
    %v2936 = vpop.permute.xlu0 %2935
    %v2938 = vadd.f32 %v2928, %v2936
    %v2939 = vtanh.pop %v2938
    %2941 = vrot.lane.b32.xlu0 %v2939, 64
    %v2942 = vpop.permute.xlu0 %2941
    %v2944 = vmul.f32 %v2926, %v2942
    %s2945 = scalar_lea.vmem [#allocation5], 56
    %v2946 = vld [vmem:[%s2945] sm:$0xff]
    %2948 = vrot.lane.b32.xlu0 %v2944, 32
    %v2949 = vpop.permute.xlu0 %2948
    %v2951 = vmul.f32 %v2946, %v2949
    %v2952 = vmax.f32 %v2602, %v2951
    %v2954 = vsel %vm146, %v2952, 0
    %2956 = vmatprep.subr.mxu0 0.0
    %2957 = vmatpush1.msra.mxu0 %v105
    %2958 = vmatprep.subr.mxu0 0.0
    %2959 = vmatpush1.msra.mxu0 %v106
    %2960 = vmatprep.subr.mxu0 0.0
    %2961 = vmatpush1.msra.mxu0 %v107
    %2962 = vmatprep.subr.mxu0 0.0
    %2963 = vmatpush1.msra.mxu0 %v108
    %2964 = vmatprep.subr.mxu0 0.0
    %2965 = vmatpush1.msra.mxu0 0.0
    %2966 = vmatprep.subr.mxu0 0.0
    %2967 = vmatpush1.msra.mxu0 0.0
    %2968 = vmatprep.subr.mxu0 0.0
    %2969 = vmatpush1.msra.mxu0 0.0
    %2970 = vmatprep.subr.mxu0 0.0
    %2971 = vmatpush1.msra.mxu0 0.0
    %2972 = vmatprep.subr.mxu0 0.0
    %2973 = vmatpush1.msra.mxu0 0.0
    %2974 = vmatprep.subr.mxu0 0.0
    %2975 = vmatpush1.msra.mxu0 0.0
    %2976 = vmatprep.subr.mxu0 0.0
    %2977 = vmatpush1.msra.mxu0 0.0
    %2978 = vmatprep.subr.mxu0 0.0
    %2979 = vmatpush1.msra.mxu0 0.0
    %2980 = vmatprep.subr.mxu0 0.0
    %2981 = vmatpush1.msra.mxu0 0.0
    %2982 = vmatprep.subr.mxu0 0.0
    %2983 = vmatpush1.msra.mxu0 0.0
    %2984 = vmatprep.subr.mxu0 0.0
    %2985 = vmatpush1.msra.mxu0 0.0
    %2986 = vmatprep.subr.mxu0 0.0
    %2987 = vmatpush1.msra.mxu0 0.0
    %2988 = vmatprep.subr.mxu0 0.0
    %2989 = vmatpush1.msra.mxu0 0.0
    %2990 = vmatprep.subr.mxu0 0.0
    %2991 = vmatpush1.msra.mxu0 0.0
    %2992 = vmatprep.subr.mxu0 0.0
    %2993 = vmatpush1.msra.mxu0 0.0
    %2994 = vmatprep.subr.mxu0 0.0
    %2995 = vmatpush1.msra.mxu0 0.0
    %2996 = vmatprep.subr.mxu0 0.0
    %2997 = vmatpush1.msra.mxu0 0.0
    %2998 = vmatprep.subr.mxu0 0.0
    %2999 = vmatpush1.msra.mxu0 0.0
    %3000 = vmatprep.subr.mxu0 0.0
    %3001 = vmatpush1.msra.mxu0 0.0
    %3002 = vmatprep.subr.mxu0 0.0
    %3003 = vmatpush1.msra.mxu0 0.0
    %3004 = vmatprep.subr.mxu0 0.0
    %3005 = vmatpush1.msra.mxu0 0.0
    %3006 = vmatprep.subr.mxu0 0.0
    %3007 = vmatpush1.msra.mxu0 0.0
    %3008 = vmatprep.subr.mxu0 0.0
    %3009 = vmatpush1.msra.mxu0 0.0
    %3010 = vmatprep.subr.mxu0 0.0
    %3011 = vmatpush1.msra.mxu0 0.0
    %3012 = vmatprep.subr.mxu0 0.0
    %3013 = vmatpush1.msra.mxu0 0.0
    %3014 = vmatprep.subr.mxu0 0.0
    %3015 = vmatpush1.msra.mxu0 0.0
    %3016 = vmatprep.subr.mxu0 0.0
    %3017 = vmatpush1.msra.mxu0 0.0
    %3018 = vmatprep.subr.mxu0 0.0
    %3019 = vmatpush1.msra.mxu0 0.0
    %3020 = vmatprep.mubr.f32.mxu0 0.0
    %3021 = vmatmul.mubr.f32.gmra.mrb[0].mxu0 %v2954
    %v3022 = vpop.f32.mrb[0].mxu0
    %v3023 = vadd.f32 0.0, %v3022
    %v3024 = vpop.f32.mrb[0].mxu0
    %3025 = vdwg.mxu0
    %v3026 = vld [vmem:[#allocation7] sm:$0xff]
    %v3027 = vsub.f32 %v3023, %v3026
    %v3028 = vand.u32 2147483647, %v3027
    %v3029 = vmul.f32 %v3023, %v3026
    %3031 = vrot.lane.b32.xlu0 %v3026, 32
    %v3032 = vpop.permute.xlu0 %3031
    %3035 = vrot.lane.b32.xlu0 %v3028, 64
    %v3036 = vpop.permute.xlu0 %3035
    %3039 = vrot.lane.b32.xlu0 %v3029, 96
    %v3040 = vpop.permute.xlu0 %3039
    %v3042 = vsel %vm146, %v3023, %v3032
    %vm3043 = vcmask 523264
    %v3044 = vsel %vm3043, %v3042, %v3036
    %vm3045 = vcmask 785408
    %v3046 = vsel %vm3045, %v3044, %v3040
    %v3048 = vlaneseq
    %v3049 = vshrl.u32 %v3048, 7
    %v3050 = vsub.s32 0, %v3049
    %v3051 = vrot.slane %v142, %v3050
    %v3052 = vlaneseq
    %v3053 = vshrl.u32 %v3052, 7
    %v3054 = vsub.s32 1, %v3053
    %v3055 = vrot.slane %v142, %v3054
    %3058 = vmatprep.subr.mxu0 %v110
    %3059 = vmatpush1.msra.mxu0 %v109
    %3060 = vmatprep.subr.mxu0 %v112
    %3061 = vmatpush1.msra.mxu0 %v111
    %3062 = vmatprep.subr.mxu0 %v114
    %3063 = vmatpush1.msra.mxu0 %v113
    %3064 = vmatprep.subr.mxu0 %v116
    %3065 = vmatpush1.msra.mxu0 %v115
    %3066 = vmatprep.subr.mxu0 %v118
    %3067 = vmatpush1.msra.mxu0 %v117
    %3068 = vmatprep.subr.mxu0 %v120
    %3069 = vmatpush1.msra.mxu0 %v119
    %3070 = vmatprep.subr.mxu0 %v122
    %3071 = vmatpush1.msra.mxu0 %v121
    %3072 = vmatprep.subr.mxu0 %v124
    %3073 = vmatpush1.msra.mxu0 %v123
    %3074 = vmatprep.subr.mxu0 %v126
    %3075 = vmatpush1.msra.mxu0 %v125
    %3076 = vmatprep.subr.mxu0 %v128
    %3077 = vmatpush1.msra.mxu0 %v127
    %3078 = vmatprep.subr.mxu0 %v130
    %3079 = vmatpush1.msra.mxu0 %v129
    %3080 = vmatprep.subr.mxu0 %v132
    %3081 = vmatpush1.msra.mxu0 %v131
    %3082 = vmatprep.subr.mxu0 %v134
    %3083 = vmatpush1.msra.mxu0 %v133
    %3084 = vmatprep.subr.mxu0 %v136
    %3085 = vmatpush1.msra.mxu0 %v135
    %3086 = vmatprep.subr.mxu0 %v138
    %3087 = vmatpush1.msra.mxu0 %v137
    %3088 = vmatprep.subr.mxu0 %v140
    %3089 = vmatpush1.msra.mxu0 %v139
    %3090 = vmatprep.subr.mxu0 0.0
    %3091 = vmatpush1.msra.mxu0 0.0
    %3092 = vmatprep.subr.mxu0 0.0
    %3093 = vmatpush1.msra.mxu0 0.0
    %3094 = vmatprep.subr.mxu0 0.0
    %3095 = vmatpush1.msra.mxu0 0.0
    %3096 = vmatprep.subr.mxu0 0.0
    %3097 = vmatpush1.msra.mxu0 0.0
    %3098 = vmatprep.subr.mxu0 0.0
    %3099 = vmatpush1.msra.mxu0 0.0
    %3100 = vmatprep.subr.mxu0 0.0
    %3101 = vmatpush1.msra.mxu0 0.0
    %3102 = vmatprep.subr.mxu0 0.0
    %3103 = vmatpush1.msra.mxu0 0.0
    %3104 = vmatprep.subr.mxu0 0.0
    %3105 = vmatpush1.msra.mxu0 0.0
    %3106 = vmatprep.subr.mxu0 0.0
    %3107 = vmatpush1.msra.mxu0 0.0
    %3108 = vmatprep.subr.mxu0 0.0
    %3109 = vmatpush1.msra.mxu0 0.0
    %3110 = vmatprep.subr.mxu0 0.0
    %3111 = vmatpush1.msra.mxu0 0.0
    %3112 = vmatprep.subr.mxu0 0.0
    %3113 = vmatpush1.msra.mxu0 0.0
    %3114 = vmatprep.subr.mxu0 0.0
    %3115 = vmatpush1.msra.mxu0 0.0
    %3116 = vmatprep.subr.mxu0 0.0
    %3117 = vmatpush1.msra.mxu0 0.0
    %3118 = vmatprep.subr.mxu0 0.0
    %3119 = vmatpush1.msra.mxu0 0.0
    %3120 = vmatprep.subr.mxu0 0.0
    %3121 = vmatpush1.msra.mxu0 0.0
    %3122 = vmatprep.mubr.f32.mxu0 0.0
    %3123 = vmatmul.mubr.f32.gmra.mrb[0].mxu0 %v3046
    %v3124 = vpop.f32.mrb[0].mxu0
    %v3125 = vadd.f32 %v3051, %v3124
    %v3126 = vpop.f32.mrb[0].mxu0
    %v3127 = vadd.f32 %v3055, %v3126
    %3128 = vdwg.mxu0
    %v3129 = vmax.f32 %v3125, 0.0
    %v3130 = vmax.f32 %v3127, 0.0
    %v3132 = vlaneseq
    %v3133 = vshrl.u32 %v3132, 7
    %v3134 = vsub.s32 0, %v3133
    %v3135 = vrot.slane %v144, %v3134
    %v3136 = vlaneseq
    %v3137 = vshrl.u32 %v3136, 7
    %v3138 = vsub.s32 1, %v3137
    %v3139 = vrot.slane %v144, %v3138
    %v3142 = vmul.f32 %v3129, %v3135
    %v3143 = vmul.f32 %v3130, %v3139
    %v3144 = vadd.f32 %v3142, %v3143
    %3145 = vadd.xlane.f32.xlu0 %v3144
    %v3146 = vpop.xlane.xlu0 %3145
    %v3147 = vxor.u32 %v3146, 2147483648
    %v3148 = vmul.f32 %v3147, 1.442695
    %v3149 = vpow.pop %v3148
    %v3150 = vadd.f32 %v3149, 1.0
    %v3151 = vrcp.pop %v3150
    %v3152 = vmul.f32 1.0, %v3151
    %3153 = vst [vmem:[#allocation11] sm:$0xff] %v3152
    // Predicated region
    $region42: #{tpu_custom_call.1} parent=1 // pred_check
      _
    $region43: #{tpu_custom_call.1} parent=1 // pred_check_branch
      %3155 = sbr.rel (0) target = $region45
    $region44: #{tpu_custom_call.1} parent=1 // pred_region
      %s3157 = ssub.s32 128, 128
      %3158 = vsyncadd [#allocation4], %s3157
      %s3160 = sshll.u32 [#allocation11], 4
      %s3161 = int_to_ptr.vmem [resolvable:$true] %s3160
      %3163 = dma.vmem_to_hbm [thread:$0]  %s3161, 128, %s5, [#allocation4]
    $region45: #{tpu_custom_call.1} parent=1 // pred_fallthru
      _
    // Predicated region
    $region46: #{tpu_custom_call.1} parent=1 // pred_check
      _
    $region47: #{tpu_custom_call.1} parent=1 // pred_check_branch
      %3165 = sbr.rel (0) target = $region49
    $region48: #{tpu_custom_call.1} parent=1 // pred_region
      %3166 = dma.done [#allocation4], 128
    $region49: #{tpu_custom_call.1} parent=1 // pred_fallthru
      _
    %3167 = vsyncpa [#allocation3], 1
    %3168 = vsyncpa [#allocation6], 1
    %3169 = vsyncpa [#allocation9], 1
    %3170 = vsyncpa [#allocation4], 1

</llo_original>
